<compile_context>
chip_gen: v7x
topology: tpu7x:2x2x1
jax: 0.10.0
libtpu: 0.0.40
codegen_flags: <defaults>
</compile_context>

<pallas_src>
import functools

import jax
import jax.numpy as jnp
from jax.experimental import pallas as pl
from jax.experimental.pallas import tpu as pltpu

F32 = jnp.float32


# ---------------------------------------------------------------------------
# Fused Pallas kernel: whole forward pass for one batch element per program.
# ---------------------------------------------------------------------------
def _fused_cnn_kernel(x_ref, c1w_ref, c1b_ref, p1r_ref, p1c_ref,
                      c2m_ref, c2b_ref, p2r_ref, p2c_ref,
                      c3w_ref, c3b_ref, f1w_ref, f1b_ref,
                      f2w_ref, f2b_ref, out_ref):
    def mm(a, b):
        return jnp.dot(a, b, preferred_element_type=F32)

    x = x_ref[0]                                               # (H, W*3)

    # conv1 (1x1, 3->16): block-diagonal matmul + bias + ReLU
    h1 = jnp.maximum(mm(x, c1w_ref[...]) + c1b_ref[...], 0.0)  # (H, W*16)

    # maxpool 2x2: exact one-hot row/col selection matmuls + elementwise max
    t1 = jnp.maximum(mm(p1r_ref[0], h1), mm(p1r_ref[1], h1))   # (H/2, W*16)
    p1 = jnp.maximum(mm(t1, p1c_ref[0]), mm(t1, p1c_ref[1]))   # (H/2, W/2*16)

    # conv2 (3x3 valid, 16->32): 3 ky-shifted banded matmuls over the
    # VMEM-resident activation, accumulated in f32
    h2_rows = p2r_ref.shape[2]                                 # = Hp1 - 2
    acc = mm(p1[0:h2_rows, :], c2m_ref[0])
    for ky in range(1, 3):                                     # static unroll
        acc = acc + mm(p1[ky:ky + h2_rows, :], c2m_ref[ky])
    h2 = jnp.maximum(acc + c2b_ref[...], 0.0)                  # (13, 13*32)

    # maxpool 2x2 (floor on odd dims, like PyTorch)
    t2 = jnp.maximum(mm(p2r_ref[0], h2), mm(p2r_ref[1], h2))   # (6, 13*32)
    p2 = jnp.maximum(mm(t2, p2c_ref[0]), mm(t2, p2c_ref[1]))   # (6, 6*32)

    # conv3 (1x1, 32->64): block-diagonal matmul + bias + ReLU
    h3 = jnp.maximum(mm(p2, c3w_ref[...]) + c3b_ref[...], 0.0)  # (6, 6*64)

    # fc1: flatten is implicit -- wfc1 rows are already in NHWC (h, w, c)
    # order and reshaped to (Hf, Wf*C, 128); contract one spatial row at a
    # time (static unroll keeps the MXU fed without any in-kernel reshape).
    n_rows = f1w_ref.shape[0]
    a1 = mm(h3[0:1, :], f1w_ref[0])
    for h in range(1, n_rows):                                 # static unroll
        a1 = a1 + mm(h3[h:h + 1, :], f1w_ref[h])
    a1 = jnp.maximum(a1 + f1b_ref[...], 0.0)                   # (1, 128)

    # dropout(p=0.5): identity at inference time.
    # TODO(synk): training-mode dropout (pltpu.prng_random_bits mask) not wired in.

    # fc2, padded to 128 output lanes for a lane-dense store
    out_ref[0] = mm(a1, f2w_ref[...]) + f2b_ref[...]           # (1, 128)


# ---------------------------------------------------------------------------
# Wrapper-side (XLA) construction of the structured weight matrices.
# ---------------------------------------------------------------------------
def _row_select(h_in, h_out):
    """(2, h_out, h_in) one-hot matrices picking even / odd rows."""
    i = jnp.arange(h_out)
    e = jnp.zeros((h_out, h_in), F32).at[i, 2 * i].set(1.0)
    o = jnp.zeros((h_out, h_in), F32).at[i, 2 * i + 1].set(1.0)
    return jnp.stack([e, o])


def _col_select(w_in, w_out, c):
    """(2, w_in*c, w_out*c) one-hot matrices picking even / odd spatial cols."""
    i = jnp.arange(w_out)
    e = jnp.zeros((w_in, w_out), F32).at[2 * i, i].set(1.0)
    o = jnp.zeros((w_in, w_out), F32).at[2 * i + 1, i].set(1.0)
    eye_c = jnp.eye(c, dtype=F32)
    return jnp.stack([jnp.kron(e, eye_c), jnp.kron(o, eye_c)])


def _conv2_banded(w2, w_in, w_out):
    """w2: (3, 3, Cin, Cout) -> (3, w_in*Cin, w_out*Cout) banded matrices.

    M_ky[(wi*Cin + c), (ow*Cout + o)] = w2[ky, wi - ow, c, o]  (0 <= wi-ow <= 2)
    so that  h2 = sum_ky  p1[ky:ky+Hout, :] @ M_ky  is the valid 3x3 conv.
    """
    mats = []
    for ky in range(3):
        m = None
        for kx in range(3):
            band = jnp.zeros((w_in, w_out), F32).at[
                jnp.arange(w_out) + kx, jnp.arange(w_out)].set(1.0)
            term = jnp.kron(band, w2[ky, kx])
            m = term if m is None else m + term
        mats.append(m)
    return jnp.stack(mats)


# ---------------------------------------------------------------------------
# Model wrapper
# ---------------------------------------------------------------------------
def init_params(key, num_classes, fc1_in):
    ks = jax.random.split(key, 10)

    def w(k, shape, fan_in):
        return jax.random.normal(k, shape, F32) / jnp.sqrt(jnp.asarray(fan_in, F32))

    return {
        # conv1: 1x1, 3 -> 16 (stored as (in_c, out_c))
        "w1": w(ks[0], (3, 16), 3.0),
        "b1": jnp.zeros((16,), F32),
        # conv2: 3x3, 16 -> 32 (stored as (ky, kx, in_c, out_c))
        "w2": w(ks[1], (3, 3, 16, 32), 3.0 * 3.0 * 16.0),
        "b2": jnp.zeros((32,), F32),
        # conv3: 1x1, 32 -> 64
        "w3": w(ks[2], (32, 64), 32.0),
        "b3": jnp.zeros((64,), F32),
        # fc1 -- rows stored in NHWC (h, w, c) flatten order.
        # NOTE: loading real PyTorch weights (NCHW (c, h, w) flatten) would
        # require a row permutation.
        "wfc1": w(ks[3], (fc1_in, 128), float(fc1_in)),
        "bfc1": jnp.zeros((128,), F32),
        # fc2
        "wfc2": w(ks[4], (128, num_classes), 128.0),
        "bfc2": jnp.zeros((num_classes,), F32),
    }


def forward(x_nchw, params, num_classes):
    N, Cin, H, W = x_nchw.shape
    C1, C2, C3 = 16, 32, 64
    # geometry: H -(1x1)-> H -pool-> H/2 -(3x3)-> H/2-2 -pool-> (H/2-2)/2 -(1x1)->
    Hp1, Wp1 = H // 2, W // 2
    H2, W2 = Hp1 - 2, Wp1 - 2
    Hp2, Wp2 = H2 // 2, W2 // 2
    assert params["wfc1"].shape[0] == Hp2 * Wp2 * C3

    # --- layout glue (tiny, XLA side): NCHW -> (N, H, W*Cin) with (w, c) lanes
    x2d = jnp.transpose(x_nchw, (0, 2, 3, 1)).reshape(N, H, W * Cin).astype(F32)

    # --- structured weights (built once from the dense parameters)
    c1w = jnp.kron(jnp.eye(W, dtype=F32), params["w1"])            # (W*3,  W*16)
    c1b = jnp.tile(params["b1"], (W,)).reshape(1, W * C1)
    p1r = _row_select(H, Hp1)                                      # (2, Hp1, H)
    p1c = _col_select(W, Wp1, C1)                                  # (2, W*16, Wp1*16)
    c2m = _conv2_banded(params["w2"], Wp1, W2)                     # (3, Wp1*16, W2*32)
    c2b = jnp.tile(params["b2"], (W2,)).reshape(1, W2 * C2)
    p2r = _row_select(H2, Hp2)                                     # (2, Hp2, H2)
    p2c = _col_select(W2, Wp2, C2)                                 # (2, W2*32, Wp2*32)
    c3w = jnp.kron(jnp.eye(Wp2, dtype=F32), params["w3"])          # (Wp2*32, Wp2*64)
    c3b = jnp.tile(params["b3"], (Wp2,)).reshape(1, Wp2 * C3)
    f1w = params["wfc1"].reshape(Hp2, Wp2 * C3, 128)               # (Hp2, 384, 128)
    f1b = params["bfc1"].reshape(1, 128)
    # fc2 padded to 128 lanes so the final store is lane-dense
    f2w = jnp.zeros((128, 128), F32).at[:, :num_classes].set(params["wfc2"])
    f2b = jnp.zeros((1, 128), F32).at[0, :num_classes].set(params["bfc2"])

    def full(arr):
        # Full-array block with a constant index_map: DMA'd once, then
        # VMEM-resident for every grid step (no per-step re-copy).
        nd = arr.ndim
        return pl.BlockSpec(arr.shape, lambda n, _nd=nd: (0,) * _nd)

    out = pl.pallas_call(
        _fused_cnn_kernel,
        out_shape=jax.ShapeDtypeStruct((N, 1, 128), F32),
        grid=(N,),
        in_specs=[
            pl.BlockSpec((1, H, W * Cin), lambda n: (n, 0, 0)),
            full(c1w), full(c1b), full(p1r), full(p1c),
            full(c2m), full(c2b), full(p2r), full(p2c),
            full(c3w), full(c3b), full(f1w), full(f1b),
            full(f2w), full(f2b),
        ],
        out_specs=pl.BlockSpec((1, 1, 128), lambda n: (n, 0, 0)),
        compiler_params=pltpu.CompilerParams(
            dimension_semantics=("parallel",),
            vmem_limit_bytes=40 * 1024 * 1024,
        ),
    )(x2d, c1w, c1b, p1r, p1c, c2m, c2b, p2r, p2c, c3w, c3b, f1w, f1b, f2w, f2b)

    return out.reshape(N, 128)[:, :num_classes]


# ---------------------------------------------------------------------------
# Pure-JAX reference (same semantics as the PyTorch module, inference mode,
# with fc1 rows in NHWC flatten order -- matching init_params above).
# ---------------------------------------------------------------------------
def reference_forward(x_nchw, params):
    x = jnp.transpose(x_nchw, (0, 2, 3, 1)).astype(F32)            # NHWC
    h = jax.nn.relu(jnp.einsum("nhwc,cd->nhwd", x, params["w1"]) + params["b1"])
    h = jax.lax.reduce_window(h, -jnp.inf, jax.lax.max,
                              (1, 2, 2, 1), (1, 2, 2, 1), "VALID")
    h = jax.lax.conv_general_dilated(h, params["w2"], (1, 1), "VALID",
                                     dimension_numbers=("NHWC", "HWIO", "NHWC"))
    h = jax.nn.relu(h + params["b2"])
    h = jax.lax.reduce_window(h, -jnp.inf, jax.lax.max,
                              (1, 2, 2, 1), (1, 2, 2, 1), "VALID")
    h = jax.nn.relu(jnp.einsum("nhwc,cd->nhwd", h, params["w3"]) + params["b3"])
    h = h.reshape(h.shape[0], -1)                                  # NHWC flatten
    h = jax.nn.relu(h @ params["wfc1"] + params["bfc1"])
    return h @ params["wfc2"] + params["bfc2"]                     # dropout = identity


if __name__ == "__main__":
    num_classes = 10
    N, Cin, H, W = 2, 3, 30, 30  # small spatial size (see note at top re: fc1 sizing)

    key = jax.random.PRNGKey(0)
    kx, kp = jax.random.split(key)
    x = jax.random.normal(kx, (N, Cin, H, W), F32)

    # 30 ->(1x1) 30 ->pool 15 ->(3x3) 13 ->pool 6 ->(1x1) 6  => 64*6*6 = 2304
    fc1_in = 64 * 6 * 6
    params = init_params(kp, num_classes, fc1_in)

    fwd = jax.jit(functools.partial(forward, num_classes=num_classes))
    logits = fwd(x, params)
    jax.block_until_ready(logits)
    assert logits.shape == (N, num_classes)

    # Correctness check vs pure-JAX reference (loose tolerance: MXU default
    # precision uses bf16 passes for f32 matmuls, so small drift is expected).
    ref = jax.jit(reference_forward)(x, params)
    jax.block_until_ready(ref)
    scale = jnp.maximum(jnp.max(jnp.abs(ref)), 1.0)
    rel_err = float(jnp.max(jnp.abs(logits - ref)) / scale)
    assert rel_err < 0.1, f"mismatch vs reference: rel_err={rel_err}"

    print("KERNEL_OK")
</pallas_src>

<mosaic_0001>
module attributes {stable_mosaic.version = 11 : i64} {
  func.func @_fused_cnn_kernel(%arg0: i32, %arg1: memref<1x30x90xf32, #tpu.memory_space<vmem>>, %arg2: memref<90x480xf32, #tpu.memory_space<vmem>>, %arg3: memref<1x480xf32, #tpu.memory_space<vmem>>, %arg4: memref<2x15x30xf32, #tpu.memory_space<vmem>>, %arg5: memref<2x480x240xf32, #tpu.memory_space<vmem>>, %arg6: memref<3x240x416xf32, #tpu.memory_space<vmem>>, %arg7: memref<1x416xf32, #tpu.memory_space<vmem>>, %arg8: memref<2x6x13xf32, #tpu.memory_space<vmem>>, %arg9: memref<2x416x192xf32, #tpu.memory_space<vmem>>, %arg10: memref<192x384xf32, #tpu.memory_space<vmem>>, %arg11: memref<1x384xf32, #tpu.memory_space<vmem>>, %arg12: memref<6x384x128xf32, #tpu.memory_space<vmem>>, %arg13: memref<1x128xf32, #tpu.memory_space<vmem>>, %arg14: memref<128x128xf32, #tpu.memory_space<vmem>>, %arg15: memref<1x128xf32, #tpu.memory_space<vmem>>, %arg16: memref<1x1x128xf32, #tpu.memory_space<vmem>>) attributes {dimension_semantics = [#tpu.dimension_semantics<parallel>], iteration_bounds = array<i64: 2>, scalar_prefetch = 0 : i64, scratch_operands = 0 : i64, tpu.core_type = #tpu.core_type<tc>, window_params = [{transform_indices = @transform_0, window_bounds = array<i64: 1, 30, 90>}, {pipeline_mode = #tpu.pipeline_mode<synchronous>, transform_indices = @transform_1, window_bounds = array<i64: 90, 480>}, {pipeline_mode = #tpu.pipeline_mode<synchronous>, transform_indices = @transform_2, window_bounds = array<i64: 1, 480>}, {pipeline_mode = #tpu.pipeline_mode<synchronous>, transform_indices = @transform_3, window_bounds = array<i64: 2, 15, 30>}, {pipeline_mode = #tpu.pipeline_mode<synchronous>, transform_indices = @transform_4, window_bounds = array<i64: 2, 480, 240>}, {pipeline_mode = #tpu.pipeline_mode<synchronous>, transform_indices = @transform_5, window_bounds = array<i64: 3, 240, 416>}, {pipeline_mode = #tpu.pipeline_mode<synchronous>, transform_indices = @transform_6, window_bounds = array<i64: 1, 416>}, {pipeline_mode = #tpu.pipeline_mode<synchronous>, transform_indices = @transform_7, window_bounds = array<i64: 2, 6, 13>}, {pipeline_mode = #tpu.pipeline_mode<synchronous>, transform_indices = @transform_8, window_bounds = array<i64: 2, 416, 192>}, {pipeline_mode = #tpu.pipeline_mode<synchronous>, transform_indices = @transform_9, window_bounds = array<i64: 192, 384>}, {pipeline_mode = #tpu.pipeline_mode<synchronous>, transform_indices = @transform_10, window_bounds = array<i64: 1, 384>}, {pipeline_mode = #tpu.pipeline_mode<synchronous>, transform_indices = @transform_11, window_bounds = array<i64: 6, 384, 128>}, {pipeline_mode = #tpu.pipeline_mode<synchronous>, transform_indices = @transform_12, window_bounds = array<i64: 1, 128>}, {pipeline_mode = #tpu.pipeline_mode<synchronous>, transform_indices = @transform_13, window_bounds = array<i64: 128, 128>}, {pipeline_mode = #tpu.pipeline_mode<synchronous>, transform_indices = @transform_14, window_bounds = array<i64: 1, 128>}, {transform_indices = @transform_15, window_bounds = array<i64: 1, 1, 128>}]} {
    %c0 = arith.constant 0 : index
    %c0_0 = arith.constant 0 : index
    %c0_1 = arith.constant 0 : index
    %0 = vector.load %arg1[%c0, %c0_0, %c0_1] : memref<1x30x90xf32, #tpu.memory_space<vmem>>, vector<1x30x90xf32>
    %1 = vector.shape_cast %0 : vector<1x30x90xf32> to vector<30x90xf32>
    %c0_2 = arith.constant 0 : index
    %c0_3 = arith.constant 0 : index
    %2 = vector.load %arg2[%c0_2, %c0_3] : memref<90x480xf32, #tpu.memory_space<vmem>>, vector<90x480xf32>
    %cst = arith.constant dense<0.000000e+00> : vector<30x480xf32>
    %3 = tpu.matmul %1, %2, %cst {dimension_numbers = #tpu.dot_dimension_numbers<[1], [0], [0], [1], [0, 0, 1, 1], [], []>} : vector<30x90xf32>, vector<90x480xf32>, vector<30x480xf32> -> vector<30x480xf32>
    %c0_4 = arith.constant 0 : index
    %c0_5 = arith.constant 0 : index
    %4 = vector.load %arg3[%c0_4, %c0_5] : memref<1x480xf32, #tpu.memory_space<vmem>>, vector<1x480xf32>
    %5 = vector.broadcast %4 : vector<1x480xf32> to vector<30x480xf32>
    %6 = arith.addf %3, %5 : vector<30x480xf32>
    %cst_6 = arith.constant 0.000000e+00 : f32
    %7 = vector.broadcast %cst_6 : f32 to vector<30x480xf32>
    %8 = arith.maximumf %6, %7 : vector<30x480xf32>
    %c0_7 = arith.constant 0 : index
    %c0_8 = arith.constant 0 : index
    %c0_9 = arith.constant 0 : index
    %9 = vector.load %arg4[%c0_7, %c0_8, %c0_9] : memref<2x15x30xf32, #tpu.memory_space<vmem>>, vector<1x15x30xf32>
    %10 = vector.shape_cast %9 : vector<1x15x30xf32> to vector<15x30xf32>
    %cst_10 = arith.constant dense<0.000000e+00> : vector<15x480xf32>
    %11 = tpu.matmul %10, %8, %cst_10 {dimension_numbers = #tpu.dot_dimension_numbers<[1], [0], [0], [1], [0, 0, 1, 1], [], []>} : vector<15x30xf32>, vector<30x480xf32>, vector<15x480xf32> -> vector<15x480xf32>
    %c1 = arith.constant 1 : index
    %c0_11 = arith.constant 0 : index
    %c0_12 = arith.constant 0 : index
    %12 = vector.load %arg4[%c1, %c0_11, %c0_12] : memref<2x15x30xf32, #tpu.memory_space<vmem>>, vector<1x15x30xf32>
    %13 = vector.shape_cast %12 : vector<1x15x30xf32> to vector<15x30xf32>
    %cst_13 = arith.constant dense<0.000000e+00> : vector<15x480xf32>
    %14 = tpu.matmul %13, %8, %cst_13 {dimension_numbers = #tpu.dot_dimension_numbers<[1], [0], [0], [1], [0, 0, 1, 1], [], []>} : vector<15x30xf32>, vector<30x480xf32>, vector<15x480xf32> -> vector<15x480xf32>
    %15 = arith.maximumf %11, %14 : vector<15x480xf32>
    %c0_14 = arith.constant 0 : index
    %c0_15 = arith.constant 0 : index
    %c0_16 = arith.constant 0 : index
    %16 = vector.load %arg5[%c0_14, %c0_15, %c0_16] : memref<2x480x240xf32, #tpu.memory_space<vmem>>, vector<1x480x240xf32>
    %17 = vector.shape_cast %16 : vector<1x480x240xf32> to vector<480x240xf32>
    %cst_17 = arith.constant dense<0.000000e+00> : vector<15x240xf32>
    %18 = tpu.matmul %15, %17, %cst_17 {dimension_numbers = #tpu.dot_dimension_numbers<[1], [0], [0], [1], [0, 0, 1, 1], [], []>} : vector<15x480xf32>, vector<480x240xf32>, vector<15x240xf32> -> vector<15x240xf32>
    %c1_18 = arith.constant 1 : index
    %c0_19 = arith.constant 0 : index
    %c0_20 = arith.constant 0 : index
    %19 = vector.load %arg5[%c1_18, %c0_19, %c0_20] : memref<2x480x240xf32, #tpu.memory_space<vmem>>, vector<1x480x240xf32>
    %20 = vector.shape_cast %19 : vector<1x480x240xf32> to vector<480x240xf32>
    %cst_21 = arith.constant dense<0.000000e+00> : vector<15x240xf32>
    %21 = tpu.matmul %15, %20, %cst_21 {dimension_numbers = #tpu.dot_dimension_numbers<[1], [0], [0], [1], [0, 0, 1, 1], [], []>} : vector<15x480xf32>, vector<480x240xf32>, vector<15x240xf32> -> vector<15x240xf32>
    %22 = arith.maximumf %18, %21 : vector<15x240xf32>
    %23 = vector.extract_strided_slice %22 {offsets = [0, 0], sizes = [13, 240], strides = [1, 1]} : vector<15x240xf32> to vector<13x240xf32>
    %c0_22 = arith.constant 0 : index
    %c0_23 = arith.constant 0 : index
    %c0_24 = arith.constant 0 : index
    %24 = vector.load %arg6[%c0_22, %c0_23, %c0_24] : memref<3x240x416xf32, #tpu.memory_space<vmem>>, vector<1x240x416xf32>
    %25 = vector.shape_cast %24 : vector<1x240x416xf32> to vector<240x416xf32>
    %cst_25 = arith.constant dense<0.000000e+00> : vector<13x416xf32>
    %26 = tpu.matmul %23, %25, %cst_25 {dimension_numbers = #tpu.dot_dimension_numbers<[1], [0], [0], [1], [0, 0, 1, 1], [], []>} : vector<13x240xf32>, vector<240x416xf32>, vector<13x416xf32> -> vector<13x416xf32>
    %27 = vector.extract_strided_slice %22 {offsets = [1, 0], sizes = [13, 240], strides = [1, 1]} : vector<15x240xf32> to vector<13x240xf32>
    %c1_26 = arith.constant 1 : index
    %c0_27 = arith.constant 0 : index
    %c0_28 = arith.constant 0 : index
    %28 = vector.load %arg6[%c1_26, %c0_27, %c0_28] : memref<3x240x416xf32, #tpu.memory_space<vmem>>, vector<1x240x416xf32>
    %29 = vector.shape_cast %28 : vector<1x240x416xf32> to vector<240x416xf32>
    %cst_29 = arith.constant dense<0.000000e+00> : vector<13x416xf32>
    %30 = tpu.matmul %27, %29, %cst_29 {dimension_numbers = #tpu.dot_dimension_numbers<[1], [0], [0], [1], [0, 0, 1, 1], [], []>} : vector<13x240xf32>, vector<240x416xf32>, vector<13x416xf32> -> vector<13x416xf32>
    %31 = arith.addf %26, %30 : vector<13x416xf32>
    %32 = vector.extract_strided_slice %22 {offsets = [2, 0], sizes = [13, 240], strides = [1, 1]} : vector<15x240xf32> to vector<13x240xf32>
    %c2 = arith.constant 2 : index
    %c0_30 = arith.constant 0 : index
    %c0_31 = arith.constant 0 : index
    %33 = vector.load %arg6[%c2, %c0_30, %c0_31] : memref<3x240x416xf32, #tpu.memory_space<vmem>>, vector<1x240x416xf32>
    %34 = vector.shape_cast %33 : vector<1x240x416xf32> to vector<240x416xf32>
    %cst_32 = arith.constant dense<0.000000e+00> : vector<13x416xf32>
    %35 = tpu.matmul %32, %34, %cst_32 {dimension_numbers = #tpu.dot_dimension_numbers<[1], [0], [0], [1], [0, 0, 1, 1], [], []>} : vector<13x240xf32>, vector<240x416xf32>, vector<13x416xf32> -> vector<13x416xf32>
    %36 = arith.addf %31, %35 : vector<13x416xf32>
    %c0_33 = arith.constant 0 : index
    %c0_34 = arith.constant 0 : index
    %37 = vector.load %arg7[%c0_33, %c0_34] : memref<1x416xf32, #tpu.memory_space<vmem>>, vector<1x416xf32>
    %38 = vector.broadcast %37 : vector<1x416xf32> to vector<13x416xf32>
    %39 = arith.addf %36, %38 : vector<13x416xf32>
    %cst_35 = arith.constant 0.000000e+00 : f32
    %40 = vector.broadcast %cst_35 : f32 to vector<13x416xf32>
    %41 = arith.maximumf %39, %40 : vector<13x416xf32>
    %c0_36 = arith.constant 0 : index
    %c0_37 = arith.constant 0 : index
    %c0_38 = arith.constant 0 : index
    %42 = vector.load %arg8[%c0_36, %c0_37, %c0_38] : memref<2x6x13xf32, #tpu.memory_space<vmem>>, vector<1x6x13xf32>
    %43 = vector.shape_cast %42 : vector<1x6x13xf32> to vector<6x13xf32>
    %cst_39 = arith.constant dense<0.000000e+00> : vector<6x416xf32>
    %44 = tpu.matmul %43, %41, %cst_39 {dimension_numbers = #tpu.dot_dimension_numbers<[1], [0], [0], [1], [0, 0, 1, 1], [], []>} : vector<6x13xf32>, vector<13x416xf32>, vector<6x416xf32> -> vector<6x416xf32>
    %c1_40 = arith.constant 1 : index
    %c0_41 = arith.constant 0 : index
    %c0_42 = arith.constant 0 : index
    %45 = vector.load %arg8[%c1_40, %c0_41, %c0_42] : memref<2x6x13xf32, #tpu.memory_space<vmem>>, vector<1x6x13xf32>
    %46 = vector.shape_cast %45 : vector<1x6x13xf32> to vector<6x13xf32>
    %cst_43 = arith.constant dense<0.000000e+00> : vector<6x416xf32>
    %47 = tpu.matmul %46, %41, %cst_43 {dimension_numbers = #tpu.dot_dimension_numbers<[1], [0], [0], [1], [0, 0, 1, 1], [], []>} : vector<6x13xf32>, vector<13x416xf32>, vector<6x416xf32> -> vector<6x416xf32>
    %48 = arith.maximumf %44, %47 : vector<6x416xf32>
    %c0_44 = arith.constant 0 : index
    %c0_45 = arith.constant 0 : index
    %c0_46 = arith.constant 0 : index
    %49 = vector.load %arg9[%c0_44, %c0_45, %c0_46] : memref<2x416x192xf32, #tpu.memory_space<vmem>>, vector<1x416x192xf32>
    %50 = vector.shape_cast %49 : vector<1x416x192xf32> to vector<416x192xf32>
    %cst_47 = arith.constant dense<0.000000e+00> : vector<6x192xf32>
    %51 = tpu.matmul %48, %50, %cst_47 {dimension_numbers = #tpu.dot_dimension_numbers<[1], [0], [0], [1], [0, 0, 1, 1], [], []>} : vector<6x416xf32>, vector<416x192xf32>, vector<6x192xf32> -> vector<6x192xf32>
    %c1_48 = arith.constant 1 : index
    %c0_49 = arith.constant 0 : index
    %c0_50 = arith.constant 0 : index
    %52 = vector.load %arg9[%c1_48, %c0_49, %c0_50] : memref<2x416x192xf32, #tpu.memory_space<vmem>>, vector<1x416x192xf32>
    %53 = vector.shape_cast %52 : vector<1x416x192xf32> to vector<416x192xf32>
    %cst_51 = arith.constant dense<0.000000e+00> : vector<6x192xf32>
    %54 = tpu.matmul %48, %53, %cst_51 {dimension_numbers = #tpu.dot_dimension_numbers<[1], [0], [0], [1], [0, 0, 1, 1], [], []>} : vector<6x416xf32>, vector<416x192xf32>, vector<6x192xf32> -> vector<6x192xf32>
    %55 = arith.maximumf %51, %54 : vector<6x192xf32>
    %c0_52 = arith.constant 0 : index
    %c0_53 = arith.constant 0 : index
    %56 = vector.load %arg10[%c0_52, %c0_53] : memref<192x384xf32, #tpu.memory_space<vmem>>, vector<192x384xf32>
    %cst_54 = arith.constant dense<0.000000e+00> : vector<6x384xf32>
    %57 = tpu.matmul %55, %56, %cst_54 {dimension_numbers = #tpu.dot_dimension_numbers<[1], [0], [0], [1], [0, 0, 1, 1], [], []>} : vector<6x192xf32>, vector<192x384xf32>, vector<6x384xf32> -> vector<6x384xf32>
    %c0_55 = arith.constant 0 : index
    %c0_56 = arith.constant 0 : index
    %58 = vector.load %arg11[%c0_55, %c0_56] : memref<1x384xf32, #tpu.memory_space<vmem>>, vector<1x384xf32>
    %59 = vector.broadcast %58 : vector<1x384xf32> to vector<6x384xf32>
    %60 = arith.addf %57, %59 : vector<6x384xf32>
    %cst_57 = arith.constant 0.000000e+00 : f32
    %61 = vector.broadcast %cst_57 : f32 to vector<6x384xf32>
    %62 = arith.maximumf %60, %61 : vector<6x384xf32>
    %63 = vector.extract_strided_slice %62 {offsets = [0, 0], sizes = [1, 384], strides = [1, 1]} : vector<6x384xf32> to vector<1x384xf32>
    %c0_58 = arith.constant 0 : index
    %c0_59 = arith.constant 0 : index
    %c0_60 = arith.constant 0 : index
    %64 = vector.load %arg12[%c0_58, %c0_59, %c0_60] : memref<6x384x128xf32, #tpu.memory_space<vmem>>, vector<1x384x128xf32>
    %65 = vector.shape_cast %64 : vector<1x384x128xf32> to vector<384x128xf32>
    %cst_61 = arith.constant dense<0.000000e+00> : vector<1x128xf32>
    %66 = tpu.matmul %63, %65, %cst_61 {dimension_numbers = #tpu.dot_dimension_numbers<[1], [0], [0], [1], [0, 0, 1, 1], [], []>} : vector<1x384xf32>, vector<384x128xf32>, vector<1x128xf32> -> vector<1x128xf32>
    %67 = vector.extract_strided_slice %62 {offsets = [1, 0], sizes = [1, 384], strides = [1, 1]} : vector<6x384xf32> to vector<1x384xf32>
    %c1_62 = arith.constant 1 : index
    %c0_63 = arith.constant 0 : index
    %c0_64 = arith.constant 0 : index
    %68 = vector.load %arg12[%c1_62, %c0_63, %c0_64] : memref<6x384x128xf32, #tpu.memory_space<vmem>>, vector<1x384x128xf32>
    %69 = vector.shape_cast %68 : vector<1x384x128xf32> to vector<384x128xf32>
    %cst_65 = arith.constant dense<0.000000e+00> : vector<1x128xf32>
    %70 = tpu.matmul %67, %69, %cst_65 {dimension_numbers = #tpu.dot_dimension_numbers<[1], [0], [0], [1], [0, 0, 1, 1], [], []>} : vector<1x384xf32>, vector<384x128xf32>, vector<1x128xf32> -> vector<1x128xf32>
    %71 = arith.addf %66, %70 : vector<1x128xf32>
    %72 = vector.extract_strided_slice %62 {offsets = [2, 0], sizes = [1, 384], strides = [1, 1]} : vector<6x384xf32> to vector<1x384xf32>
    %c2_66 = arith.constant 2 : index
    %c0_67 = arith.constant 0 : index
    %c0_68 = arith.constant 0 : index
    %73 = vector.load %arg12[%c2_66, %c0_67, %c0_68] : memref<6x384x128xf32, #tpu.memory_space<vmem>>, vector<1x384x128xf32>
    %74 = vector.shape_cast %73 : vector<1x384x128xf32> to vector<384x128xf32>
    %cst_69 = arith.constant dense<0.000000e+00> : vector<1x128xf32>
    %75 = tpu.matmul %72, %74, %cst_69 {dimension_numbers = #tpu.dot_dimension_numbers<[1], [0], [0], [1], [0, 0, 1, 1], [], []>} : vector<1x384xf32>, vector<384x128xf32>, vector<1x128xf32> -> vector<1x128xf32>
    %76 = arith.addf %71, %75 : vector<1x128xf32>
    %77 = vector.extract_strided_slice %62 {offsets = [3, 0], sizes = [1, 384], strides = [1, 1]} : vector<6x384xf32> to vector<1x384xf32>
    %c3 = arith.constant 3 : index
    %c0_70 = arith.constant 0 : index
    %c0_71 = arith.constant 0 : index
    %78 = vector.load %arg12[%c3, %c0_70, %c0_71] : memref<6x384x128xf32, #tpu.memory_space<vmem>>, vector<1x384x128xf32>
    %79 = vector.shape_cast %78 : vector<1x384x128xf32> to vector<384x128xf32>
    %cst_72 = arith.constant dense<0.000000e+00> : vector<1x128xf32>
    %80 = tpu.matmul %77, %79, %cst_72 {dimension_numbers = #tpu.dot_dimension_numbers<[1], [0], [0], [1], [0, 0, 1, 1], [], []>} : vector<1x384xf32>, vector<384x128xf32>, vector<1x128xf32> -> vector<1x128xf32>
    %81 = arith.addf %76, %80 : vector<1x128xf32>
    %82 = vector.extract_strided_slice %62 {offsets = [4, 0], sizes = [1, 384], strides = [1, 1]} : vector<6x384xf32> to vector<1x384xf32>
    %c4 = arith.constant 4 : index
    %c0_73 = arith.constant 0 : index
    %c0_74 = arith.constant 0 : index
    %83 = vector.load %arg12[%c4, %c0_73, %c0_74] : memref<6x384x128xf32, #tpu.memory_space<vmem>>, vector<1x384x128xf32>
    %84 = vector.shape_cast %83 : vector<1x384x128xf32> to vector<384x128xf32>
    %cst_75 = arith.constant dense<0.000000e+00> : vector<1x128xf32>
    %85 = tpu.matmul %82, %84, %cst_75 {dimension_numbers = #tpu.dot_dimension_numbers<[1], [0], [0], [1], [0, 0, 1, 1], [], []>} : vector<1x384xf32>, vector<384x128xf32>, vector<1x128xf32> -> vector<1x128xf32>
    %86 = arith.addf %81, %85 : vector<1x128xf32>
    %87 = vector.extract_strided_slice %62 {offsets = [5, 0], sizes = [1, 384], strides = [1, 1]} : vector<6x384xf32> to vector<1x384xf32>
    %c5 = arith.constant 5 : index
    %c0_76 = arith.constant 0 : index
    %c0_77 = arith.constant 0 : index
    %88 = vector.load %arg12[%c5, %c0_76, %c0_77] : memref<6x384x128xf32, #tpu.memory_space<vmem>>, vector<1x384x128xf32>
    %89 = vector.shape_cast %88 : vector<1x384x128xf32> to vector<384x128xf32>
    %cst_78 = arith.constant dense<0.000000e+00> : vector<1x128xf32>
    %90 = tpu.matmul %87, %89, %cst_78 {dimension_numbers = #tpu.dot_dimension_numbers<[1], [0], [0], [1], [0, 0, 1, 1], [], []>} : vector<1x384xf32>, vector<384x128xf32>, vector<1x128xf32> -> vector<1x128xf32>
    %91 = arith.addf %86, %90 : vector<1x128xf32>
    %c0_79 = arith.constant 0 : index
    %c0_80 = arith.constant 0 : index
    %92 = vector.load %arg13[%c0_79, %c0_80] : memref<1x128xf32, #tpu.memory_space<vmem>>, vector<1x128xf32>
    %93 = arith.addf %91, %92 : vector<1x128xf32>
    %cst_81 = arith.constant 0.000000e+00 : f32
    %94 = vector.broadcast %cst_81 : f32 to vector<1x128xf32>
    %95 = arith.maximumf %93, %94 : vector<1x128xf32>
    %c0_82 = arith.constant 0 : index
    %c0_83 = arith.constant 0 : index
    %96 = vector.load %arg14[%c0_82, %c0_83] : memref<128x128xf32, #tpu.memory_space<vmem>>, vector<128x128xf32>
    %cst_84 = arith.constant dense<0.000000e+00> : vector<1x128xf32>
    %97 = tpu.matmul %95, %96, %cst_84 {dimension_numbers = #tpu.dot_dimension_numbers<[1], [0], [0], [1], [0, 0, 1, 1], [], []>} : vector<1x128xf32>, vector<128x128xf32>, vector<1x128xf32> -> vector<1x128xf32>
    %c0_85 = arith.constant 0 : index
    %c0_86 = arith.constant 0 : index
    %98 = vector.load %arg15[%c0_85, %c0_86] : memref<1x128xf32, #tpu.memory_space<vmem>>, vector<1x128xf32>
    %99 = arith.addf %97, %98 : vector<1x128xf32>
    %c0_87 = arith.constant 0 : index
    %c0_88 = arith.constant 0 : index
    %c0_89 = arith.constant 0 : index
    %100 = vector.load %arg16[%c0_87, %c0_88, %c0_89] : memref<1x1x128xf32, #tpu.memory_space<vmem>>, vector<1x1x128xf32>
    %101 = vector.shape_cast %100 : vector<1x1x128xf32> to vector<1x128xf32>
    %102 = vector.shape_cast %99 : vector<1x128xf32> to vector<1x1x128xf32>
    tpu.vector_store %arg16[%c0_87, %c0_88, %c0_89], %102 {strides = array<i32>} : memref<1x1x128xf32, #tpu.memory_space<vmem>>, vector<1x1x128xf32>,
    return
  }
  func.func @transform_0(%arg0: i32) -> (i32, i32, i32) {
    %c0_i32 = arith.constant 0 : i32
    %c0_i32_0 = arith.constant 0 : i32
    %c0_i32_1 = arith.constant 0 : i32
    return %arg0, %c0_i32, %c0_i32_0 : i32, i32, i32
  }
  func.func @transform_1(%arg0: i32) -> (i32, i32) {
    %c0_i32 = arith.constant 0 : i32
    %c0_i32_0 = arith.constant 0 : i32
    %c0_i32_1 = arith.constant 0 : i32
    return %c0_i32, %c0_i32_0 : i32, i32
  }
  func.func @transform_2(%arg0: i32) -> (i32, i32) {
    %c0_i32 = arith.constant 0 : i32
    %c0_i32_0 = arith.constant 0 : i32
    %c0_i32_1 = arith.constant 0 : i32
    return %c0_i32, %c0_i32_0 : i32, i32
  }
  func.func @transform_3(%arg0: i32) -> (i32, i32, i32) {
    %c0_i32 = arith.constant 0 : i32
    %c0_i32_0 = arith.constant 0 : i32
    %c0_i32_1 = arith.constant 0 : i32
    %c0_i32_2 = arith.constant 0 : i32
    return %c0_i32, %c0_i32_0, %c0_i32_1 : i32, i32, i32
  }
  func.func @transform_4(%arg0: i32) -> (i32, i32, i32) {
    %c0_i32 = arith.constant 0 : i32
    %c0_i32_0 = arith.constant 0 : i32
    %c0_i32_1 = arith.constant 0 : i32
    %c0_i32_2 = arith.constant 0 : i32
    return %c0_i32, %c0_i32_0, %c0_i32_1 : i32, i32, i32
  }
  func.func @transform_5(%arg0: i32) -> (i32, i32, i32) {
    %c0_i32 = arith.constant 0 : i32
    %c0_i32_0 = arith.constant 0 : i32
    %c0_i32_1 = arith.constant 0 : i32
    %c0_i32_2 = arith.constant 0 : i32
    return %c0_i32, %c0_i32_0, %c0_i32_1 : i32, i32, i32
  }
  func.func @transform_6(%arg0: i32) -> (i32, i32) {
    %c0_i32 = arith.constant 0 : i32
    %c0_i32_0 = arith.constant 0 : i32
    %c0_i32_1 = arith.constant 0 : i32
    return %c0_i32, %c0_i32_0 : i32, i32
  }
  func.func @transform_7(%arg0: i32) -> (i32, i32, i32) {
    %c0_i32 = arith.constant 0 : i32
    %c0_i32_0 = arith.constant 0 : i32
    %c0_i32_1 = arith.constant 0 : i32
    %c0_i32_2 = arith.constant 0 : i32
    return %c0_i32, %c0_i32_0, %c0_i32_1 : i32, i32, i32
  }
  func.func @transform_8(%arg0: i32) -> (i32, i32, i32) {
    %c0_i32 = arith.constant 0 : i32
    %c0_i32_0 = arith.constant 0 : i32
    %c0_i32_1 = arith.constant 0 : i32
    %c0_i32_2 = arith.constant 0 : i32
    return %c0_i32, %c0_i32_0, %c0_i32_1 : i32, i32, i32
  }
  func.func @transform_9(%arg0: i32) -> (i32, i32) {
    %c0_i32 = arith.constant 0 : i32
    %c0_i32_0 = arith.constant 0 : i32
    %c0_i32_1 = arith.constant 0 : i32
    return %c0_i32, %c0_i32_0 : i32, i32
  }
  func.func @transform_10(%arg0: i32) -> (i32, i32) {
    %c0_i32 = arith.constant 0 : i32
    %c0_i32_0 = arith.constant 0 : i32
    %c0_i32_1 = arith.constant 0 : i32
    return %c0_i32, %c0_i32_0 : i32, i32
  }
  func.func @transform_11(%arg0: i32) -> (i32, i32, i32) {
    %c0_i32 = arith.constant 0 : i32
    %c0_i32_0 = arith.constant 0 : i32
    %c0_i32_1 = arith.constant 0 : i32
    %c0_i32_2 = arith.constant 0 : i32
    return %c0_i32, %c0_i32_0, %c0_i32_1 : i32, i32, i32
  }
  func.func @transform_12(%arg0: i32) -> (i32, i32) {
    %c0_i32 = arith.constant 0 : i32
    %c0_i32_0 = arith.constant 0 : i32
    %c0_i32_1 = arith.constant 0 : i32
    return %c0_i32, %c0_i32_0 : i32, i32
  }
  func.func @transform_13(%arg0: i32) -> (i32, i32) {
    %c0_i32 = arith.constant 0 : i32
    %c0_i32_0 = arith.constant 0 : i32
    %c0_i32_1 = arith.constant 0 : i32
    return %c0_i32, %c0_i32_0 : i32, i32
  }
  func.func @transform_14(%arg0: i32) -> (i32, i32) {
    %c0_i32 = arith.constant 0 : i32
    %c0_i32_0 = arith.constant 0 : i32
    %c0_i32_1 = arith.constant 0 : i32
    return %c0_i32, %c0_i32_0 : i32, i32
  }
  func.func @transform_15(%arg0: i32) -> (i32, i32, i32) {
    %c0_i32 = arith.constant 0 : i32
    %c0_i32_0 = arith.constant 0 : i32
    %c0_i32_1 = arith.constant 0 : i32
    return %arg0, %c0_i32, %c0_i32_0 : i32, i32, i32
  }
}

</mosaic_0001>

<llo_original>
// kernel: tile.18
$region0: #{tile.18}
  #allocation0 [shape = 's32[1]{0}', space=sflag, size = 0x4, scoped, tag = 'scoped memory for tile.18']
  %s0 = inlined_call_operand.vmem [shape: f32[16], index: 0, kind: input, shape index: {}]
  %s1 = inlined_call_operand.vmem [shape: f32[30,16], index: 1, kind: output, shape index: {}]
  // Predicated region
  $region2: #{tile.18} parent=0 // pred_check
    _
  $region3: #{tile.18} parent=0 // pred_check_branch
    %3 = sbr.rel (0) target = $region5
  $region4: #{tile.18} parent=0 // pred_region
    _
  $region5: #{tile.18} parent=0 // pred_fallthru
    _
  %v4 = vld [vmem:[%s0] ss:$0 sm:$0xff]
  %5 = vst [vmem:[%s1] sm:$0xff] %v4
  %s6 = scalar_lea.vmem %s1, 8
  %7 = vst [vmem:[%s6] sm:$0xff] %v4
  %s8 = scalar_lea.vmem %s1, 16
  %9 = vst [vmem:[%s8] sm:$0xff] %v4
  %s10 = scalar_lea.vmem %s1, 24
  %11 = vst [vmem:[%s10] sm:$0xff] %v4

// kernel: tile.19
$region0: #{tile.19}
  %s0 = inlined_call_operand.vmem [shape: f32[30,16], index: 0, kind: input, shape index: {}]
  %s1 = inlined_call_operand.vmem [shape: f32[1,480], index: 1, kind: output, shape index: {}]
  $region1: #{tile.19} parent=0
    #allocation0 [shape = 'u8[16384]{0}', space=vmem, size = 0x4000, scoped, tag = 'scoped mem for output reshape']
    %v2 = vld [vmem:[%s0] ss:$8 sm:$0xf]
    %vm3 = vcmask 130048
    %4 = vst.msk [vmem:[#allocation0] ss:$8 sm:$0xf] %vm3, %v2
    %s5 = scalar_lea.vmem %s0, 7
    %v6 = vld [vmem:[%s5] ss:$8 sm:$0x7]
    %7 = vrot.lane.b32.xlu0 %v6, 112
    %v8 = vpop.permute.xlu0 %7
    %vm9 = vcmask 1048448
    %10 = vst.msk [vmem:[#allocation0] ss:$8 sm:$0x7] %vm9, %v8
    %s11 = scalar_lea.vmem %s0, 6
    %v12 = vld [vmem:[%s11] ss:$8 sm:$0x7]
    %13 = vrot.lane.b32.xlu0 %v12, 96
    %v14 = vpop.permute.xlu0 %13
    %vm15 = vcmask 917248
    %16 = vst.msk [vmem:[#allocation0] ss:$8 sm:$0x7] %vm15, %v14
    %s17 = scalar_lea.vmem %s0, 5
    %v18 = vld [vmem:[%s17] ss:$8 sm:$0xf]
    %19 = vrot.lane.b32.xlu0 %v18, 80
    %v20 = vpop.permute.xlu0 %19
    %vm21 = vcmask 786048
    %22 = vst.msk [vmem:[#allocation0] ss:$8 sm:$0xf] %vm21, %v20
    %s23 = scalar_lea.vmem %s0, 4
    %v24 = vld [vmem:[%s23] ss:$8 sm:$0xf]
    %25 = vrot.lane.b32.xlu0 %v24, 64
    %v26 = vpop.permute.xlu0 %25
    %vm27 = vcmask 654848
    %28 = vst.msk [vmem:[#allocation0] ss:$8 sm:$0xf] %vm27, %v26
    %s29 = scalar_lea.vmem %s0, 3
    %v30 = vld [vmem:[%s29] ss:$8 sm:$0xf]
    %31 = vrot.lane.b32.xlu0 %v30, 48
    %v32 = vpop.permute.xlu0 %31
    %vm33 = vcmask 523648
    %34 = vst.msk [vmem:[#allocation0] ss:$8 sm:$0xf] %vm33, %v32
    %s35 = scalar_lea.vmem %s0, 2
    %v36 = vld [vmem:[%s35] ss:$8 sm:$0xf]
    %37 = vrot.lane.b32.xlu0 %v36, 32
    %v38 = vpop.permute.xlu0 %37
    %vm39 = vcmask 392448
    %40 = vst.msk [vmem:[#allocation0] ss:$8 sm:$0xf] %vm39, %v38
    %s41 = scalar_lea.vmem %s0, 1
    %v42 = vld [vmem:[%s41] ss:$8 sm:$0xf]
    %43 = vrot.lane.b32.xlu0 %v42, 16
    %v44 = vpop.permute.xlu0 %43
    %vm45 = vcmask 261248
    %46 = vst.msk [vmem:[#allocation0] ss:$8 sm:$0xf] %vm45, %v44
    %s48 = sshllo.u32 0, 1
    %v50 = vld [vmem:[#allocation0] sm:%s48]
    %s51 = sshllo.u32 0, 1
    %52 = vst [vmem:[%s1] sm:%s51] %v50
    %s53 = scalar_lea.vmem [#allocation0], 8
    %v54 = vld [vmem:[%s53] sm:%s48]
    %s55 = sshllo.u32 0, 1
    %s56 = scalar_lea.vmem %s1, 1
    %57 = vst [vmem:[%s56] sm:%s55] %v54
    %s58 = scalar_lea.vmem [#allocation0], 16
    %v59 = vld [vmem:[%s58] sm:%s48]
    %s60 = sshllo.u32 0, 1
    %s61 = smul.addr 1, 2
    %s62 = scalar_lea.vmem %s1, %s61
    %63 = vst [vmem:[%s62] sm:%s60] %v59
    %s64 = scalar_lea.vmem [#allocation0], 24
    %v65 = vld [vmem:[%s64] sm:%s48]
    %s66 = sshllo.u32 0, 1
    %s67 = smul.addr 1, 3
    %s68 = scalar_lea.vmem %s1, %s67
    %69 = vst [vmem:[%s68] sm:%s66] %v65

// kernel: tile.23
$region0: #{tile.23}
  #allocation0 [shape = 's32[1]{0}', space=sflag, size = 0x4, scoped, tag = 'scoped memory for tile.23']
  %s0 = inlined_call_operand.vmem [shape: f32[32], index: 0, kind: input, shape index: {}]
  %s1 = inlined_call_operand.vmem [shape: f32[13,32], index: 1, kind: output, shape index: {}]
  // Predicated region
  $region2: #{tile.23} parent=0 // pred_check
    _
  $region3: #{tile.23} parent=0 // pred_check_branch
    %3 = sbr.rel (0) target = $region5
  $region4: #{tile.23} parent=0 // pred_region
    _
  $region5: #{tile.23} parent=0 // pred_fallthru
    _
  %v4 = vld [vmem:[%s0] ss:$0 sm:$0xff]
  %5 = vst [vmem:[%s1] sm:$0xff] %v4
  %s6 = scalar_lea.vmem %s1, 8
  %7 = vst [vmem:[%s6] sm:$0xff] %v4

// kernel: tile.24
$region0: #{tile.24}
  %s0 = inlined_call_operand.vmem [shape: f32[13,32], index: 0, kind: input, shape index: {}]
  %s1 = inlined_call_operand.vmem [shape: f32[1,416], index: 1, kind: output, shape index: {}]
  $region1: #{tile.24} parent=0
    #allocation0 [shape = 'u8[16384]{0}', space=vmem, size = 0x4000, scoped, tag = 'scoped mem for output reshape']
    %v2 = vld [vmem:[%s0] ss:$4 sm:$0xf]
    %vm3 = vcmask 261120
    %4 = vst.msk [vmem:[#allocation0] ss:$8 sm:$0xf] %vm3, %v2
    %s5 = scalar_lea.vmem %s0, 3
    %v6 = vld [vmem:[%s5] ss:$4 sm:$0x7]
    %7 = vrot.lane.b32.xlu0 %v6, 96
    %v8 = vpop.permute.xlu0 %7
    %vm9 = vcmask 1048320
    %10 = vst.msk [vmem:[#allocation0] ss:$8 sm:$0x7] %vm9, %v8
    %s11 = scalar_lea.vmem %s0, 2
    %v12 = vld [vmem:[%s11] ss:$4 sm:$0x7]
    %13 = vrot.lane.b32.xlu0 %v12, 64
    %v14 = vpop.permute.xlu0 %13
    %vm15 = vcmask 785920
    %16 = vst.msk [vmem:[#allocation0] ss:$8 sm:$0x7] %vm15, %v14
    %s17 = scalar_lea.vmem %s0, 1
    %v18 = vld [vmem:[%s17] ss:$4 sm:$0x7]
    %19 = vrot.lane.b32.xlu0 %v18, 32
    %v20 = vpop.permute.xlu0 %19
    %vm21 = vcmask 523520
    %22 = vst.msk [vmem:[#allocation0] ss:$8 sm:$0x7] %vm21, %v20
    %s24 = sshllo.u32 0, 1
    %v26 = vld [vmem:[#allocation0] sm:%s24]
    %s27 = sshllo.u32 0, 1
    %28 = vst [vmem:[%s1] sm:%s27] %v26
    %s29 = scalar_lea.vmem [#allocation0], 8
    %v30 = vld [vmem:[%s29] sm:%s24]
    %s31 = sshllo.u32 0, 1
    %s32 = scalar_lea.vmem %s1, 1
    %33 = vst [vmem:[%s32] sm:%s31] %v30
    %s34 = scalar_lea.vmem [#allocation0], 16
    %v35 = vld [vmem:[%s34] sm:%s24]
    %s36 = sshllo.u32 0, 1
    %s37 = smul.addr 1, 2
    %s38 = scalar_lea.vmem %s1, %s37
    %39 = vst [vmem:[%s38] sm:%s36] %v35
    %s40 = scalar_lea.vmem [#allocation0], 24
    %v41 = vld [vmem:[%s40] sm:%s24]
    %s42 = sshllo.u32 0, 1
    %s43 = smul.addr 1, 3
    %s44 = scalar_lea.vmem %s1, %s43
    %45 = vst [vmem:[%s44] sm:%s42] %v41

// kernel: tile.28
$region0: #{tile.28}
  #allocation0 [shape = 's32[1]{0}', space=sflag, size = 0x4, scoped, tag = 'scoped memory for tile.28']
  %s0 = inlined_call_operand.vmem [shape: f32[64], index: 0, kind: input, shape index: {}]
  %s1 = inlined_call_operand.vmem [shape: f32[6,64], index: 1, kind: output, shape index: {}]
  // Predicated region
  $region2: #{tile.28} parent=0 // pred_check
    _
  $region3: #{tile.28} parent=0 // pred_check_branch
    %3 = sbr.rel (0) target = $region5
  $region4: #{tile.28} parent=0 // pred_region
    _
  $region5: #{tile.28} parent=0 // pred_fallthru
    _
  %v4 = vld [vmem:[%s0] ss:$0 sm:$0xff]
  %5 = vst [vmem:[%s1] sm:$0xff] %v4

// kernel: tile.29
$region0: #{tile.29}
  %s0 = inlined_call_operand.vmem [shape: f32[6,64], index: 0, kind: input, shape index: {}]
  %s1 = inlined_call_operand.vmem [shape: f32[1,384], index: 1, kind: output, shape index: {}]
  $region1: #{tile.29} parent=0
    #allocation0 [shape = 'u8[12288]{0}', space=vmem, size = 0x3000, scoped, tag = 'scoped mem for output reshape']
    %v2 = vld [vmem:[%s0] ss:$2 sm:$0x7]
    %vm3 = vcmask 523264
    %4 = vst.msk [vmem:[#allocation0] ss:$8 sm:$0x7] %vm3, %v2
    %s5 = scalar_lea.vmem %s0, 1
    %v6 = vld [vmem:[%s5] ss:$2 sm:$0x7]
    %7 = vrot.lane.b32.xlu0 %v6, 64
    %v8 = vpop.permute.xlu0 %7
    %vm9 = vcmask 1048064
    %10 = vst.msk [vmem:[#allocation0] ss:$8 sm:$0x7] %vm9, %v8
    %s12 = sshllo.u32 0, 1
    %v14 = vld [vmem:[#allocation0] sm:%s12]
    %s15 = sshllo.u32 0, 1
    %16 = vst [vmem:[%s1] sm:%s15] %v14
    %s17 = scalar_lea.vmem [#allocation0], 8
    %v18 = vld [vmem:[%s17] sm:%s12]
    %s19 = sshllo.u32 0, 1
    %s20 = scalar_lea.vmem %s1, 1
    %21 = vst [vmem:[%s20] sm:%s19] %v18
    %s22 = scalar_lea.vmem [#allocation0], 16
    %v23 = vld [vmem:[%s22] sm:%s12]
    %s24 = sshllo.u32 0, 1
    %s25 = smul.addr 1, 2
    %s26 = scalar_lea.vmem %s1, %s25
    %27 = vst [vmem:[%s26] sm:%s24] %v23

// kernel: forward.1
$region0: #{forward.1}
  #allocation0 [shape = 'u32[]', space=smem, size = 0x4, offset = 0x4, fixed_abs, tag = 'smem constant byte address 0x4 - core index']
  #allocation1 [shape = 'u32[144,128]{1,0:T(1,128)}', space=vmem, size = 0x12000, scoped, tag = 'internal scratch']
  %s0 = inlined_call_operand.vmem [shape: f32[2,30,90], index: 0, kind: input, shape index: {}]
  %s1 = inlined_call_operand.vmem [shape: f32[90,480], index: 1, kind: input, shape index: {}]
  %s2 = inlined_call_operand.vmem [shape: f32[1,480], index: 2, kind: input, shape index: {}]
  %s3 = inlined_call_operand.vmem [shape: f32[2,15,30], index: 3, kind: input, shape index: {}]
  %s4 = inlined_call_operand.vmem [shape: f32[2,480,240], index: 4, kind: input, shape index: {}]
  %s5 = inlined_call_operand.vmem [shape: f32[3,240,416], index: 5, kind: input, shape index: {}]
  %s6 = inlined_call_operand.vmem [shape: f32[1,416], index: 6, kind: input, shape index: {}]
  %s7 = inlined_call_operand.vmem [shape: f32[2,6,13], index: 7, kind: input, shape index: {}]
  %s8 = inlined_call_operand.vmem [shape: f32[2,416,192], index: 8, kind: input, shape index: {}]
  %s9 = inlined_call_operand.vmem [shape: f32[192,384], index: 9, kind: input, shape index: {}]
  %s10 = inlined_call_operand.vmem [shape: f32[1,384], index: 10, kind: input, shape index: {}]
  %s11 = inlined_call_operand.vmem [shape: f32[6,384,128], index: 11, kind: input, shape index: {}]
  %s12 = inlined_call_operand.vmem [shape: f32[1,128], index: 12, kind: input, shape index: {}]
  %s13 = inlined_call_operand.vmem [shape: f32[128,128], index: 13, kind: input, shape index: {}]
  %s14 = inlined_call_operand.vmem [shape: f32[1,128], index: 14, kind: input, shape index: {}]
  %s15 = inlined_call_operand.hbm [shape: f32[2,1,128], index: 15, kind: output, shape index: {}]
  %s16 = sld [smem:[#allocation0]]
  $region93: #{forward.1} parent=0
    _
  %s18 = ssub.s32 1, %s16
  %s19 = scalar_select 0, %s18, %s16
  $region1: #{forward.1} parent=0
    #allocation2 [shape = 'u8[1024]{0}', space=vmem, size = 0x400, scoped, tag = 'output window, operand 0']
    #allocation3 [shape = 's32[2]{0}', space=sflag, size = 0x8, scoped, tag = 'scoped memory for forward.1']
    %20 = vsyncpa [#allocation3], 0
    %s21 = scalar_lea.sflag [#allocation3], 1
    %22 = vsyncpa %s21, 0
    loop: start=0, step=1, limit=4
    $region2: #{forward.1} parent=1 // loop_pre_header
      _
    $region3: #{forward.1} parent=1 // loop_header
      %s24 = sphi 0, %s28
      %p25 = scmp.ge.s32.totalorder %s24, 4
      %s34 = sphi 0, %s36
      %s37 = sphi 0, %s34
      %s38 = sphi 0, %s37
      %s54 = sphi 0, %s38
      %s58 = sphi 0, %s58
      %s60 = sphi 0, %s58
      %s61 = sphi 0, %s60
      %s75 = sphi 0, %s61
      %s79 = sphi 0, %s79
      %s81 = sphi 0, %s79
      %s82 = sphi 0, %s81
      %s96 = sphi 0, %s82
      %s100 = sphi 0, %s100
      %s102 = sphi 0, %s100
      %s103 = sphi 0, %s102
      %s117 = sphi 0, %s103
      %s121 = sphi 0, %s121
      %s123 = sphi 0, %s121
      %s124 = sphi 0, %s123
      %s138 = sphi 0, %s124
      %s142 = sphi 0, %s142
      %s144 = sphi 0, %s142
      %s145 = sphi 0, %s144
      %s159 = sphi 0, %s145
      %s163 = sphi 0, %s163
      %s165 = sphi 0, %s163
      %s166 = sphi 0, %s165
      %s180 = sphi 0, %s166
      %s184 = sphi 0, %s184
      %s186 = sphi 0, %s184
      %s187 = sphi 0, %s186
      %s201 = sphi 0, %s187
      %s205 = sphi 0, %s205
      %s207 = sphi 0, %s205
      %s208 = sphi 0, %s207
      %s222 = sphi 0, %s208
      %s226 = sphi 0, %s226
      %s228 = sphi 0, %s226
      %s229 = sphi 0, %s228
      %s243 = sphi 0, %s229
      %s247 = sphi 0, %s247
      %s249 = sphi 0, %s247
      %s250 = sphi 0, %s249
      %s264 = sphi 0, %s250
      %s268 = sphi 0, %s268
      %s270 = sphi 0, %s268
      %s271 = sphi 0, %s270
      %s285 = sphi 0, %s271
      %s289 = sphi 0, %s289
      %s291 = sphi 0, %s289
      %s292 = sphi 0, %s291
      %s306 = sphi 0, %s292
      %s310 = sphi 0, %s310
      %s312 = sphi 0, %s310
      %s313 = sphi 0, %s312
      %s327 = sphi 0, %s313
      %s331 = sphi 0, %s331
      %s333 = sphi 0, %s331
      %s334 = sphi 0, %s333
      %s348 = sphi 0, %s334
      %s354 = sphi 0, %s356
      %s357 = sphi 0, %s354
      %s358 = sphi 0, %s357
      %s374 = sphi 0, %s358
    $region4: #{forward.1} parent=1 // loop_header_branch
      %27 = sbr.rel (%p25) target = $region8
    $region5: #{forward.1} parent=1 // loop_body
      %s29 = ssub.s32 %s24, 1
      %s30 = ssub.s32 %s24, 2
      %s31 = sadd.s32 %s24, 1
      %s32 = ssub.s32 %s24, %s31
      %p33 = scmp.eq.s32.totalorder %s32, 0
      %s35 = sadd.s32 %s34, 1
      %s36 = scalar_select %p33, %s34, %s35
      %p39 = pneg %p33
      %p40 = scmp.eq.s32.totalorder %s24, 1
      %p41 = por %p39, %p40
      %p42 = scmp.ne.s32.totalorder %s34, %s37
      %p43 = scmp.eq.s32.totalorder %s24, 0
      %p44 = por %p42, %p43
      %p45 = scmp.ne.s32.totalorder %s34, %s37
      %p46 = scmp.eq.s32.totalorder %s29, 1
      %p47 = por %p45, %p46
      %p48 = scmp.ne.s32.totalorder %s37, %s38
      %p49 = scmp.eq.s32.totalorder %s29, 0
      %p50 = por %p48, %p49
      %p51 = scmp.ne.s32.totalorder %s37, %s38
      %p52 = scmp.eq.s32.totalorder %s30, 1
      %p53 = por %p51, %p52
      %p55 = scmp.ne.s32.totalorder %s38, %s54
      %p56 = scmp.eq.s32.totalorder %s30, 0
      %p57 = por %p55, %p56
      %s59 = sadd.s32 %s58, 1
      %p62 = scmp.eq.s32.totalorder %s24, 1
      %p63 = scmp.ne.s32.totalorder %s58, %s60
      %p64 = scmp.eq.s32.totalorder %s24, 0
      %p65 = por %p63, %p64
      %p66 = scmp.ne.s32.totalorder %s58, %s60
      %p67 = scmp.eq.s32.totalorder %s29, 1
      %p68 = por %p66, %p67
      %p69 = scmp.ne.s32.totalorder %s60, %s61
      %p70 = scmp.eq.s32.totalorder %s29, 0
      %p71 = por %p69, %p70
      %p72 = scmp.ne.s32.totalorder %s60, %s61
      %p73 = scmp.eq.s32.totalorder %s30, 1
      %p74 = por %p72, %p73
      %p76 = scmp.ne.s32.totalorder %s61, %s75
      %p77 = scmp.eq.s32.totalorder %s30, 0
      %p78 = por %p76, %p77
      %s80 = sadd.s32 %s79, 1
      %p83 = scmp.eq.s32.totalorder %s24, 1
      %p84 = scmp.ne.s32.totalorder %s79, %s81
      %p85 = scmp.eq.s32.totalorder %s24, 0
      %p86 = por %p84, %p85
      %p87 = scmp.ne.s32.totalorder %s79, %s81
      %p88 = scmp.eq.s32.totalorder %s29, 1
      %p89 = por %p87, %p88
      %p90 = scmp.ne.s32.totalorder %s81, %s82
      %p91 = scmp.eq.s32.totalorder %s29, 0
      %p92 = por %p90, %p91
      %p93 = scmp.ne.s32.totalorder %s81, %s82
      %p94 = scmp.eq.s32.totalorder %s30, 1
      %p95 = por %p93, %p94
      %p97 = scmp.ne.s32.totalorder %s82, %s96
      %p98 = scmp.eq.s32.totalorder %s30, 0
      %p99 = por %p97, %p98
      %s101 = sadd.s32 %s100, 1
      %p104 = scmp.eq.s32.totalorder %s24, 1
      %p105 = scmp.ne.s32.totalorder %s100, %s102
      %p106 = scmp.eq.s32.totalorder %s24, 0
      %p107 = por %p105, %p106
      %p108 = scmp.ne.s32.totalorder %s100, %s102
      %p109 = scmp.eq.s32.totalorder %s29, 1
      %p110 = por %p108, %p109
      %p111 = scmp.ne.s32.totalorder %s102, %s103
      %p112 = scmp.eq.s32.totalorder %s29, 0
      %p113 = por %p111, %p112
      %p114 = scmp.ne.s32.totalorder %s102, %s103
      %p115 = scmp.eq.s32.totalorder %s30, 1
      %p116 = por %p114, %p115
      %p118 = scmp.ne.s32.totalorder %s103, %s117
      %p119 = scmp.eq.s32.totalorder %s30, 0
      %p120 = por %p118, %p119
      %s122 = sadd.s32 %s121, 1
      %p125 = scmp.eq.s32.totalorder %s24, 1
      %p126 = scmp.ne.s32.totalorder %s121, %s123
      %p127 = scmp.eq.s32.totalorder %s24, 0
      %p128 = por %p126, %p127
      %p129 = scmp.ne.s32.totalorder %s121, %s123
      %p130 = scmp.eq.s32.totalorder %s29, 1
      %p131 = por %p129, %p130
      %p132 = scmp.ne.s32.totalorder %s123, %s124
      %p133 = scmp.eq.s32.totalorder %s29, 0
      %p134 = por %p132, %p133
      %p135 = scmp.ne.s32.totalorder %s123, %s124
      %p136 = scmp.eq.s32.totalorder %s30, 1
      %p137 = por %p135, %p136
      %p139 = scmp.ne.s32.totalorder %s124, %s138
      %p140 = scmp.eq.s32.totalorder %s30, 0
      %p141 = por %p139, %p140
      %s143 = sadd.s32 %s142, 1
      %p146 = scmp.eq.s32.totalorder %s24, 1
      %p147 = scmp.ne.s32.totalorder %s142, %s144
      %p148 = scmp.eq.s32.totalorder %s24, 0
      %p149 = por %p147, %p148
      %p150 = scmp.ne.s32.totalorder %s142, %s144
      %p151 = scmp.eq.s32.totalorder %s29, 1
      %p152 = por %p150, %p151
      %p153 = scmp.ne.s32.totalorder %s144, %s145
      %p154 = scmp.eq.s32.totalorder %s29, 0
      %p155 = por %p153, %p154
      %p156 = scmp.ne.s32.totalorder %s144, %s145
      %p157 = scmp.eq.s32.totalorder %s30, 1
      %p158 = por %p156, %p157
      %p160 = scmp.ne.s32.totalorder %s145, %s159
      %p161 = scmp.eq.s32.totalorder %s30, 0
      %p162 = por %p160, %p161
      %s164 = sadd.s32 %s163, 1
      %p167 = scmp.eq.s32.totalorder %s24, 1
      %p168 = scmp.ne.s32.totalorder %s163, %s165
      %p169 = scmp.eq.s32.totalorder %s24, 0
      %p170 = por %p168, %p169
      %p171 = scmp.ne.s32.totalorder %s163, %s165
      %p172 = scmp.eq.s32.totalorder %s29, 1
      %p173 = por %p171, %p172
      %p174 = scmp.ne.s32.totalorder %s165, %s166
      %p175 = scmp.eq.s32.totalorder %s29, 0
      %p176 = por %p174, %p175
      %p177 = scmp.ne.s32.totalorder %s165, %s166
      %p178 = scmp.eq.s32.totalorder %s30, 1
      %p179 = por %p177, %p178
      %p181 = scmp.ne.s32.totalorder %s166, %s180
      %p182 = scmp.eq.s32.totalorder %s30, 0
      %p183 = por %p181, %p182
      %s185 = sadd.s32 %s184, 1
      %p188 = scmp.eq.s32.totalorder %s24, 1
      %p189 = scmp.ne.s32.totalorder %s184, %s186
      %p190 = scmp.eq.s32.totalorder %s24, 0
      %p191 = por %p189, %p190
      %p192 = scmp.ne.s32.totalorder %s184, %s186
      %p193 = scmp.eq.s32.totalorder %s29, 1
      %p194 = por %p192, %p193
      %p195 = scmp.ne.s32.totalorder %s186, %s187
      %p196 = scmp.eq.s32.totalorder %s29, 0
      %p197 = por %p195, %p196
      %p198 = scmp.ne.s32.totalorder %s186, %s187
      %p199 = scmp.eq.s32.totalorder %s30, 1
      %p200 = por %p198, %p199
      %p202 = scmp.ne.s32.totalorder %s187, %s201
      %p203 = scmp.eq.s32.totalorder %s30, 0
      %p204 = por %p202, %p203
      %s206 = sadd.s32 %s205, 1
      %p209 = scmp.eq.s32.totalorder %s24, 1
      %p210 = scmp.ne.s32.totalorder %s205, %s207
      %p211 = scmp.eq.s32.totalorder %s24, 0
      %p212 = por %p210, %p211
      %p213 = scmp.ne.s32.totalorder %s205, %s207
      %p214 = scmp.eq.s32.totalorder %s29, 1
      %p215 = por %p213, %p214
      %p216 = scmp.ne.s32.totalorder %s207, %s208
      %p217 = scmp.eq.s32.totalorder %s29, 0
      %p218 = por %p216, %p217
      %p219 = scmp.ne.s32.totalorder %s207, %s208
      %p220 = scmp.eq.s32.totalorder %s30, 1
      %p221 = por %p219, %p220
      %p223 = scmp.ne.s32.totalorder %s208, %s222
      %p224 = scmp.eq.s32.totalorder %s30, 0
      %p225 = por %p223, %p224
      %s227 = sadd.s32 %s226, 1
      %p230 = scmp.eq.s32.totalorder %s24, 1
      %p231 = scmp.ne.s32.totalorder %s226, %s228
      %p232 = scmp.eq.s32.totalorder %s24, 0
      %p233 = por %p231, %p232
      %p234 = scmp.ne.s32.totalorder %s226, %s228
      %p235 = scmp.eq.s32.totalorder %s29, 1
      %p236 = por %p234, %p235
      %p237 = scmp.ne.s32.totalorder %s228, %s229
      %p238 = scmp.eq.s32.totalorder %s29, 0
      %p239 = por %p237, %p238
      %p240 = scmp.ne.s32.totalorder %s228, %s229
      %p241 = scmp.eq.s32.totalorder %s30, 1
      %p242 = por %p240, %p241
      %p244 = scmp.ne.s32.totalorder %s229, %s243
      %p245 = scmp.eq.s32.totalorder %s30, 0
      %p246 = por %p244, %p245
      %s248 = sadd.s32 %s247, 1
      %p251 = scmp.eq.s32.totalorder %s24, 1
      %p252 = scmp.ne.s32.totalorder %s247, %s249
      %p253 = scmp.eq.s32.totalorder %s24, 0
      %p254 = por %p252, %p253
      %p255 = scmp.ne.s32.totalorder %s247, %s249
      %p256 = scmp.eq.s32.totalorder %s29, 1
      %p257 = por %p255, %p256
      %p258 = scmp.ne.s32.totalorder %s249, %s250
      %p259 = scmp.eq.s32.totalorder %s29, 0
      %p260 = por %p258, %p259
      %p261 = scmp.ne.s32.totalorder %s249, %s250
      %p262 = scmp.eq.s32.totalorder %s30, 1
      %p263 = por %p261, %p262
      %p265 = scmp.ne.s32.totalorder %s250, %s264
      %p266 = scmp.eq.s32.totalorder %s30, 0
      %p267 = por %p265, %p266
      %s269 = sadd.s32 %s268, 1
      %p272 = scmp.eq.s32.totalorder %s24, 1
      %p273 = scmp.ne.s32.totalorder %s268, %s270
      %p274 = scmp.eq.s32.totalorder %s24, 0
      %p275 = por %p273, %p274
      %p276 = scmp.ne.s32.totalorder %s268, %s270
      %p277 = scmp.eq.s32.totalorder %s29, 1
      %p278 = por %p276, %p277
      %p279 = scmp.ne.s32.totalorder %s270, %s271
      %p280 = scmp.eq.s32.totalorder %s29, 0
      %p281 = por %p279, %p280
      %p282 = scmp.ne.s32.totalorder %s270, %s271
      %p283 = scmp.eq.s32.totalorder %s30, 1
      %p284 = por %p282, %p283
      %p286 = scmp.ne.s32.totalorder %s271, %s285
      %p287 = scmp.eq.s32.totalorder %s30, 0
      %p288 = por %p286, %p287
      %s290 = sadd.s32 %s289, 1
      %p293 = scmp.eq.s32.totalorder %s24, 1
      %p294 = scmp.ne.s32.totalorder %s289, %s291
      %p295 = scmp.eq.s32.totalorder %s24, 0
      %p296 = por %p294, %p295
      %p297 = scmp.ne.s32.totalorder %s289, %s291
      %p298 = scmp.eq.s32.totalorder %s29, 1
      %p299 = por %p297, %p298
      %p300 = scmp.ne.s32.totalorder %s291, %s292
      %p301 = scmp.eq.s32.totalorder %s29, 0
      %p302 = por %p300, %p301
      %p303 = scmp.ne.s32.totalorder %s291, %s292
      %p304 = scmp.eq.s32.totalorder %s30, 1
      %p305 = por %p303, %p304
      %p307 = scmp.ne.s32.totalorder %s292, %s306
      %p308 = scmp.eq.s32.totalorder %s30, 0
      %p309 = por %p307, %p308
      %s311 = sadd.s32 %s310, 1
      %p314 = scmp.eq.s32.totalorder %s24, 1
      %p315 = scmp.ne.s32.totalorder %s310, %s312
      %p316 = scmp.eq.s32.totalorder %s24, 0
      %p317 = por %p315, %p316
      %p318 = scmp.ne.s32.totalorder %s310, %s312
      %p319 = scmp.eq.s32.totalorder %s29, 1
      %p320 = por %p318, %p319
      %p321 = scmp.ne.s32.totalorder %s312, %s313
      %p322 = scmp.eq.s32.totalorder %s29, 0
      %p323 = por %p321, %p322
      %p324 = scmp.ne.s32.totalorder %s312, %s313
      %p325 = scmp.eq.s32.totalorder %s30, 1
      %p326 = por %p324, %p325
      %p328 = scmp.ne.s32.totalorder %s313, %s327
      %p329 = scmp.eq.s32.totalorder %s30, 0
      %p330 = por %p328, %p329
      %s332 = sadd.s32 %s331, 1
      %p335 = scmp.eq.s32.totalorder %s24, 1
      %p336 = scmp.ne.s32.totalorder %s331, %s333
      %p337 = scmp.eq.s32.totalorder %s24, 0
      %p338 = por %p336, %p337
      %p339 = scmp.ne.s32.totalorder %s331, %s333
      %p340 = scmp.eq.s32.totalorder %s29, 1
      %p341 = por %p339, %p340
      %p342 = scmp.ne.s32.totalorder %s333, %s334
      %p343 = scmp.eq.s32.totalorder %s29, 0
      %p344 = por %p342, %p343
      %p345 = scmp.ne.s32.totalorder %s333, %s334
      %p346 = scmp.eq.s32.totalorder %s30, 1
      %p347 = por %p345, %p346
      %p349 = scmp.ne.s32.totalorder %s334, %s348
      %p350 = scmp.eq.s32.totalorder %s30, 0
      %p351 = por %p349, %p350
      %s352 = ssub.s32 %s24, %s31
      %p353 = scmp.eq.s32.totalorder %s352, 0
      %s355 = sadd.s32 %s354, 1
      %s356 = scalar_select %p353, %s354, %s355
      %p359 = pneg %p353
      %p360 = scmp.eq.s32.totalorder %s24, 1
      %p361 = por %p359, %p360
      %p362 = scmp.ne.s32.totalorder %s354, %s357
      %p363 = scmp.eq.s32.totalorder %s24, 0
      %p364 = por %p362, %p363
      %p365 = scmp.ne.s32.totalorder %s354, %s357
      %p366 = scmp.eq.s32.totalorder %s29, 1
      %p367 = por %p365, %p366
      %p368 = scmp.ne.s32.totalorder %s357, %s358
      %p369 = scmp.eq.s32.totalorder %s29, 0
      %p370 = por %p368, %p369
      %p371 = scmp.ne.s32.totalorder %s357, %s358
      %p372 = scmp.eq.s32.totalorder %s30, 1
      %p373 = por %p371, %p372
      %p375 = scmp.ne.s32.totalorder %s358, %s374
      %p376 = scmp.eq.s32.totalorder %s30, 0
      %p377 = por %p375, %p376
      %p378 = scmp.le.s32.totalorder 1, %s24
      %p379 = scmp.lt.s32.totalorder %s24, 3
      %p380 = pnand %p378, %p379
      %p381 = pneg %p380
      // Predicated region
      $region9: #{forward.1} parent=5 // pred_check
        _
      $region10: #{forward.1} parent=5 // pred_check_branch
        %383 = sbr.rel (%p380) target = $region12
      $region11: #{forward.1} parent=5 // pred_region
        %s384 = ssub.s32 %s24, 1
        // Predicated region
        $region13: #{forward.1} parent=11 // pred_check
          %p385 = pneg %p71
        $region14: #{forward.1} parent=11 // pred_check_branch
          %387 = sbr.rel (%p385) target = $region16
        $region15: #{forward.1} parent=11 // pred_region
          _
        $region16: #{forward.1} parent=11 // pred_fallthru
          _
        // Predicated region
        $region17: #{forward.1} parent=11 // pred_check
          %p388 = pneg %p92
        $region18: #{forward.1} parent=11 // pred_check_branch
          %390 = sbr.rel (%p388) target = $region20
        $region19: #{forward.1} parent=11 // pred_region
          _
        $region20: #{forward.1} parent=11 // pred_fallthru
          _
        // Predicated region
        $region21: #{forward.1} parent=11 // pred_check
          %p391 = pneg %p113
        $region22: #{forward.1} parent=11 // pred_check_branch
          %393 = sbr.rel (%p391) target = $region24
        $region23: #{forward.1} parent=11 // pred_region
          _
        $region24: #{forward.1} parent=11 // pred_fallthru
          _
        // Predicated region
        $region25: #{forward.1} parent=11 // pred_check
          %p394 = pneg %p134
        $region26: #{forward.1} parent=11 // pred_check_branch
          %396 = sbr.rel (%p394) target = $region28
        $region27: #{forward.1} parent=11 // pred_region
          _
        $region28: #{forward.1} parent=11 // pred_fallthru
          _
        // Predicated region
        $region29: #{forward.1} parent=11 // pred_check
          %p397 = pneg %p155
        $region30: #{forward.1} parent=11 // pred_check_branch
          %399 = sbr.rel (%p397) target = $region32
        $region31: #{forward.1} parent=11 // pred_region
          _
        $region32: #{forward.1} parent=11 // pred_fallthru
          _
        // Predicated region
        $region33: #{forward.1} parent=11 // pred_check
          %p400 = pneg %p176
        $region34: #{forward.1} parent=11 // pred_check_branch
          %402 = sbr.rel (%p400) target = $region36
        $region35: #{forward.1} parent=11 // pred_region
          _
        $region36: #{forward.1} parent=11 // pred_fallthru
          _
        // Predicated region
        $region37: #{forward.1} parent=11 // pred_check
          %p403 = pneg %p197
        $region38: #{forward.1} parent=11 // pred_check_branch
          %405 = sbr.rel (%p403) target = $region40
        $region39: #{forward.1} parent=11 // pred_region
          _
        $region40: #{forward.1} parent=11 // pred_fallthru
          _
        // Predicated region
        $region41: #{forward.1} parent=11 // pred_check
          %p406 = pneg %p218
        $region42: #{forward.1} parent=11 // pred_check_branch
          %408 = sbr.rel (%p406) target = $region44
        $region43: #{forward.1} parent=11 // pred_region
          _
        $region44: #{forward.1} parent=11 // pred_fallthru
          _
        // Predicated region
        $region45: #{forward.1} parent=11 // pred_check
          %p409 = pneg %p239
        $region46: #{forward.1} parent=11 // pred_check_branch
          %411 = sbr.rel (%p409) target = $region48
        $region47: #{forward.1} parent=11 // pred_region
          _
        $region48: #{forward.1} parent=11 // pred_fallthru
          _
        // Predicated region
        $region49: #{forward.1} parent=11 // pred_check
          %p412 = pneg %p260
        $region50: #{forward.1} parent=11 // pred_check_branch
          %414 = sbr.rel (%p412) target = $region52
        $region51: #{forward.1} parent=11 // pred_region
          _
        $region52: #{forward.1} parent=11 // pred_fallthru
          _
        // Predicated region
        $region53: #{forward.1} parent=11 // pred_check
          %p415 = pneg %p281
        $region54: #{forward.1} parent=11 // pred_check_branch
          %417 = sbr.rel (%p415) target = $region56
        $region55: #{forward.1} parent=11 // pred_region
          _
        $region56: #{forward.1} parent=11 // pred_fallthru
          _
        // Predicated region
        $region57: #{forward.1} parent=11 // pred_check
          %p418 = pneg %p302
        $region58: #{forward.1} parent=11 // pred_check_branch
          %420 = sbr.rel (%p418) target = $region60
        $region59: #{forward.1} parent=11 // pred_region
          _
        $region60: #{forward.1} parent=11 // pred_fallthru
          _
        // Predicated region
        $region61: #{forward.1} parent=11 // pred_check
          %p421 = pneg %p323
        $region62: #{forward.1} parent=11 // pred_check_branch
          %423 = sbr.rel (%p421) target = $region64
        $region63: #{forward.1} parent=11 // pred_region
          _
        $region64: #{forward.1} parent=11 // pred_fallthru
          _
        // Predicated region
        $region65: #{forward.1} parent=11 // pred_check
          %p424 = pneg %p344
        $region66: #{forward.1} parent=11 // pred_check_branch
          %426 = sbr.rel (%p424) target = $region68
        $region67: #{forward.1} parent=11 // pred_region
          _
        $region68: #{forward.1} parent=11 // pred_fallthru
          _
      $region12: #{forward.1} parent=5 // pred_fallthru
        _
      %p427 = scmp.lt.s32.totalorder %s24, 2
      // Predicated region
      $region69: #{forward.1} parent=5 // pred_check
        %p428 = pneg %p427
      $region70: #{forward.1} parent=5 // pred_check_branch
        %430 = sbr.rel (%p428) target = $region72
      $region71: #{forward.1} parent=5 // pred_region
        // Predicated region
        $region73: #{forward.1} parent=71 // pred_check
          %p431 = pneg %p44
        $region74: #{forward.1} parent=71 // pred_check_branch
          %433 = sbr.rel (%p431) target = $region76
        $region75: #{forward.1} parent=71 // pred_region
          %p434 = scmp.lt.s32.totalorder %s24, 1
          %s435 = scalar_select %p434, %s24, 1
          %s436 = smul.addr %s435, 4
          %s437 = smul.addr %s436, 8
          %s438 = scalar_lea.vmem %s0, %s437
        $region76: #{forward.1} parent=71 // pred_fallthru
          _
      $region72: #{forward.1} parent=5 // pred_fallthru
        _
      %p439 = scmp.le.s32.totalorder 1, %s24
      %p440 = scmp.lt.s32.totalorder %s24, 3
      %p441 = pnand %p439, %p440
      %p442 = pneg %p441
      // Predicated region
      $region77: #{forward.1} parent=5 // pred_check
        _
      $region78: #{forward.1} parent=5 // pred_check_branch
        %444 = sbr.rel (%p441) target = $region80
      $region79: #{forward.1} parent=5 // pred_region
        %s445 = ssub.s32 %s24, 1
        %p446 = scmp.lt.s32.totalorder %s29, 1
        %s447 = scalar_select %p446, %s29, 1
        %s448 = smul.addr %s447, 4
        %s449 = smul.addr %s448, 8
        %s450 = scalar_lea.vmem %s0, %s449
        %p451 = pneg %p50
        %p452 = pneg %p47
        %p453 = pneg %p71
        %p454 = pneg %p68
        %p455 = pneg %p92
        %p456 = pneg %p89
        %p457 = pneg %p113
        %p458 = pneg %p110
        %p459 = pneg %p134
        %p460 = pneg %p131
        %p461 = pneg %p155
        %p462 = pneg %p152
        %p463 = pneg %p176
        %p464 = pneg %p173
        %p465 = pneg %p197
        %p466 = pneg %p194
        %p467 = pneg %p218
        %p468 = pneg %p215
        %p469 = pneg %p239
        %p470 = pneg %p236
        %p471 = pneg %p260
        %p472 = pneg %p257
        %p473 = pneg %p281
        %p474 = pneg %p278
        %p475 = pneg %p302
        %p476 = pneg %p299
        %p477 = pneg %p323
        %p478 = pneg %p320
        %p479 = pneg %p344
        %p480 = pneg %p341
        %p481 = pneg %p370
        %p482 = pneg %p367
        %s483 = sand.u32 %s357, 1
        %s484 = scalar_lea.sflag [#allocation3], %s483
        %s485 = sand.u32 %s357, 1
        %s486 = scalar_lea.vmem [#allocation2], %s485
        %p487 = scmp.lt.s32.totalorder %s29, 1
        %s488 = scalar_select %p487, %s29, 1
        %s489 = smul.addr %s488, 4
        %s490 = smul.addr %s489, 8
        %s491 = scalar_lea.vmem %s0, %s490
        %v492 = vld [vmem:[%s491] sm:$0xff]
        %v493 = vld [vmem:[%s491 + $0x8] sm:$0xff]
        %v494 = vld [vmem:[%s491 + $0x10] sm:$0xff]
        %v495 = vld [vmem:[%s491 + $0x18] sm:$0x3f]
        %v496 = vld [vmem:[%s1] sm:$0xff]
        %v497 = vld [vmem:[%s1 + $0x8] sm:$0xff]
        %v498 = vld [vmem:[%s1 + $0x10] sm:$0xff]
        %v499 = vld [vmem:[%s1 + $0x18] sm:$0xff]
        %v500 = vld [vmem:[%s1 + $0x20] sm:$0xff]
        %v501 = vld [vmem:[%s1 + $0x28] sm:$0xff]
        %v502 = vld [vmem:[%s1 + $0x30] sm:$0xff]
        %v503 = vld [vmem:[%s1 + $0x38] sm:$0xff]
        %v504 = vld [vmem:[%s1 + $0x40] sm:$0xff]
        %v505 = vld [vmem:[%s1 + $0x48] sm:$0xff]
        %v506 = vld [vmem:[%s1 + $0x50] sm:$0xff]
        %v507 = vld [vmem:[%s1 + $0x58] sm:$0xff]
        %v508 = vld [vmem:[%s1 + $0x60] sm:$0xff]
        %v509 = vld [vmem:[%s1 + $0x68] sm:$0xff]
        %v510 = vld [vmem:[%s1 + $0x70] sm:$0xff]
        %v511 = vld [vmem:[%s1 + $0x78] sm:$0xff]
        %v512 = vld [vmem:[%s1 + $0x80] sm:$0xff]
        %v513 = vld [vmem:[%s1 + $0x88] sm:$0xff]
        %v514 = vld [vmem:[%s1 + $0x90] sm:$0xff]
        %v515 = vld [vmem:[%s1 + $0x98] sm:$0xff]
        %v516 = vld [vmem:[%s1 + $0xa0] sm:$0xff]
        %v517 = vld [vmem:[%s1 + $0xa8] sm:$0xff]
        %v518 = vld [vmem:[%s1 + $0xb0] sm:$0xff]
        %v519 = vld [vmem:[%s1 + $0xb8] sm:$0xff]
        %v520 = vld [vmem:[%s1 + $0xc0] sm:$0xff]
        %v521 = vld [vmem:[%s1 + $0xc8] sm:$0xff]
        %v522 = vld [vmem:[%s1 + $0xd0] sm:$0xff]
        %v523 = vld [vmem:[%s1 + $0xd8] sm:$0xff]
        %v524 = vld [vmem:[%s1 + $0xe0] sm:$0xff]
        %v525 = vld [vmem:[%s1 + $0xe8] sm:$0xff]
        %v526 = vld [vmem:[%s1 + $0xf0] sm:$0xff]
        %v527 = vld [vmem:[%s1 + $0xf8] sm:$0xff]
        %v528 = vld [vmem:[%s1 + $0x100] sm:$0xff]
        %v529 = vld [vmem:[%s1 + $0x108] sm:$0xff]
        %v530 = vld [vmem:[%s1 + $0x110] sm:$0xff]
        %v531 = vld [vmem:[%s1 + $0x118] sm:$0xff]
        %v532 = vld [vmem:[%s1 + $0x120] sm:$0xff]
        %v533 = vld [vmem:[%s1 + $0x128] sm:$0xff]
        %v534 = vld [vmem:[%s1 + $0x130] sm:$0xff]
        %v535 = vld [vmem:[%s1 + $0x138] sm:$0xff]
        %v536 = vld [vmem:[%s1 + $0x140] sm:$0xff]
        %v537 = vld [vmem:[%s1 + $0x148] sm:$0xff]
        %v538 = vld [vmem:[%s1 + $0x150] sm:$0xff]
        %v539 = vld [vmem:[%s1 + $0x158] sm:$0xff]
        %v540 = vld [vmem:[%s1 + $0x160] sm:$0x3]
        %v541 = vld [vmem:[%s1 + $0x168] sm:$0x3]
        %v542 = vld [vmem:[%s1 + $0x170] sm:$0x3]
        %v543 = vld [vmem:[%s1 + $0x178] sm:$0x3]
        %v544 = vld [vmem:[%s2] sm:$0xf]
        %v546 = vlaneseq
        %v547 = vshrl.u32 %v546, 7
        %v548 = vsub.s32 0, %v547
        %v549 = vrot.slane %v544, %v548
        %v550 = vlaneseq
        %v551 = vshrl.u32 %v550, 7
        %v552 = vsub.s32 1, %v551
        %v553 = vrot.slane %v544, %v552
        %v554 = vlaneseq
        %v555 = vshrl.u32 %v554, 7
        %v556 = vsub.s32 2, %v555
        %v557 = vrot.slane %v544, %v556
        %v558 = vlaneseq
        %v559 = vshrl.u32 %v558, 7
        %v560 = vsub.s32 3, %v559
        %v561 = vrot.slane %v544, %v560
        %vm566 = vcmask 736256
        %v568 = vsel %vm566, %v492, 0
        %v571 = vsel %vm566, %v493, 0
        %v574 = vsel %vm566, %v494, 0
        %v577 = vsel %vm566, %v495, 0
        %vm579 = vcmask 1041408
        %v581 = vsel %vm579, %v540, 0
        %v584 = vsel %vm579, %v541, 0
        %v587 = vsel %vm579, %v542, 0
        %v590 = vsel %vm579, %v543, 0
        %592 = vmatprep.subr.mxu0 %v497
        %593 = vmatpush1.msra.mxu0 %v496
        %594 = vmatprep.subr.mxu0 %v501
        %595 = vmatpush1.msra.mxu0 %v500
        %596 = vmatprep.subr.mxu0 %v505
        %597 = vmatpush1.msra.mxu0 %v504
        %598 = vmatprep.subr.mxu0 %v509
        %599 = vmatpush1.msra.mxu0 %v508
        %600 = vmatprep.subr.mxu0 %v513
        %601 = vmatpush1.msra.mxu0 %v512
        %602 = vmatprep.subr.mxu0 %v517
        %603 = vmatpush1.msra.mxu0 %v516
        %604 = vmatprep.subr.mxu0 %v521
        %605 = vmatpush1.msra.mxu0 %v520
        %606 = vmatprep.subr.mxu0 %v525
        %607 = vmatpush1.msra.mxu0 %v524
        %608 = vmatprep.subr.mxu0 %v529
        %609 = vmatpush1.msra.mxu0 %v528
        %610 = vmatprep.subr.mxu0 %v533
        %611 = vmatpush1.msra.mxu0 %v532
        %612 = vmatprep.subr.mxu0 %v537
        %613 = vmatpush1.msra.mxu0 %v536
        %614 = vmatprep.subr.mxu0 %v584
        %615 = vmatpush1.msra.mxu0 %v581
        %616 = vmatprep.subr.mxu0 0.0
        %617 = vmatpush1.msra.mxu0 0.0
        %618 = vmatprep.subr.mxu0 0.0
        %619 = vmatpush1.msra.mxu0 0.0
        %620 = vmatprep.subr.mxu0 0.0
        %621 = vmatpush1.msra.mxu0 0.0
        %622 = vmatprep.subr.mxu0 0.0
        %623 = vmatpush1.msra.mxu0 0.0
        %624 = vmatprep.subr.mxu0 0.0
        %625 = vmatpush1.msra.mxu0 0.0
        %626 = vmatprep.subr.mxu0 0.0
        %627 = vmatpush1.msra.mxu0 0.0
        %628 = vmatprep.subr.mxu0 0.0
        %629 = vmatpush1.msra.mxu0 0.0
        %630 = vmatprep.subr.mxu0 0.0
        %631 = vmatpush1.msra.mxu0 0.0
        %632 = vmatprep.subr.mxu0 0.0
        %633 = vmatpush1.msra.mxu0 0.0
        %634 = vmatprep.subr.mxu0 0.0
        %635 = vmatpush1.msra.mxu0 0.0
        %636 = vmatprep.subr.mxu0 0.0
        %637 = vmatpush1.msra.mxu0 0.0
        %638 = vmatprep.subr.mxu0 0.0
        %639 = vmatpush1.msra.mxu0 0.0
        %640 = vmatprep.subr.mxu0 0.0
        %641 = vmatpush1.msra.mxu0 0.0
        %642 = vmatprep.subr.mxu0 0.0
        %643 = vmatpush1.msra.mxu0 0.0
        %644 = vmatprep.subr.mxu0 0.0
        %645 = vmatpush1.msra.mxu0 0.0
        %646 = vmatprep.subr.mxu0 0.0
        %647 = vmatpush1.msra.mxu0 0.0
        %648 = vmatprep.subr.mxu0 0.0
        %649 = vmatpush1.msra.mxu0 0.0
        %650 = vmatprep.subr.mxu0 0.0
        %651 = vmatpush1.msra.mxu0 0.0
        %652 = vmatprep.subr.mxu0 0.0
        %653 = vmatpush1.msra.mxu0 0.0
        %654 = vmatprep.subr.mxu0 0.0
        %655 = vmatpush1.msra.mxu0 0.0
        %656 = vmatprep.mubr.f32.mxu0 0.0
        %657 = vmatmul.mubr.f32.gmra.mrb[0].mxu0 %v568
        %v658 = vpop.f32.mrb[0].mxu0
        %v659 = vadd.f32 %v549, %v658
        %v660 = vpop.f32.mrb[0].mxu0
        %v661 = vadd.f32 %v553, %v660
        %662 = vmatprep.mubr.f32.mxu0 0.0
        %663 = vmatmul.mubr.f32.gmra.mrb[0].mxu0 %v571
        %v664 = vpop.f32.mrb[0].mxu0
        %v665 = vadd.f32 %v549, %v664
        %v666 = vpop.f32.mrb[0].mxu0
        %v667 = vadd.f32 %v553, %v666
        %668 = vmatprep.mubr.f32.mxu0 0.0
        %669 = vmatmul.mubr.f32.gmra.mrb[0].mxu0 %v574
        %v670 = vpop.f32.mrb[0].mxu0
        %v671 = vadd.f32 %v549, %v670
        %v672 = vpop.f32.mrb[0].mxu0
        %v673 = vadd.f32 %v553, %v672
        %674 = vmatprep.mubr.f32.mxu0 0.0
        %675 = vmatmul.mubr.f32.gmra.mrb[0].mxu0 %v577
        %v676 = vpop.f32.mrb[0].mxu0
        %v677 = vadd.f32 %v549, %v676
        %v678 = vpop.f32.mrb[0].mxu0
        %v679 = vadd.f32 %v553, %v678
        %680 = vdwg.mxu0
        %681 = vmatprep.subr.mxu0 %v499
        %682 = vmatpush1.msra.mxu0 %v498
        %683 = vmatprep.subr.mxu0 %v503
        %684 = vmatpush1.msra.mxu0 %v502
        %685 = vmatprep.subr.mxu0 %v507
        %686 = vmatpush1.msra.mxu0 %v506
        %687 = vmatprep.subr.mxu0 %v511
        %688 = vmatpush1.msra.mxu0 %v510
        %689 = vmatprep.subr.mxu0 %v515
        %690 = vmatpush1.msra.mxu0 %v514
        %691 = vmatprep.subr.mxu0 %v519
        %692 = vmatpush1.msra.mxu0 %v518
        %693 = vmatprep.subr.mxu0 %v523
        %694 = vmatpush1.msra.mxu0 %v522
        %695 = vmatprep.subr.mxu0 %v527
        %696 = vmatpush1.msra.mxu0 %v526
        %697 = vmatprep.subr.mxu0 %v531
        %698 = vmatpush1.msra.mxu0 %v530
        %699 = vmatprep.subr.mxu0 %v535
        %700 = vmatpush1.msra.mxu0 %v534
        %701 = vmatprep.subr.mxu0 %v539
        %702 = vmatpush1.msra.mxu0 %v538
        %703 = vmatprep.subr.mxu0 %v590
        %704 = vmatpush1.msra.mxu0 %v587
        %705 = vmatprep.subr.mxu0 0.0
        %706 = vmatpush1.msra.mxu0 0.0
        %707 = vmatprep.subr.mxu0 0.0
        %708 = vmatpush1.msra.mxu0 0.0
        %709 = vmatprep.subr.mxu0 0.0
        %710 = vmatpush1.msra.mxu0 0.0
        %711 = vmatprep.subr.mxu0 0.0
        %712 = vmatpush1.msra.mxu0 0.0
        %713 = vmatprep.subr.mxu0 0.0
        %714 = vmatpush1.msra.mxu0 0.0
        %715 = vmatprep.subr.mxu0 0.0
        %716 = vmatpush1.msra.mxu0 0.0
        %717 = vmatprep.subr.mxu0 0.0
        %718 = vmatpush1.msra.mxu0 0.0
        %719 = vmatprep.subr.mxu0 0.0
        %720 = vmatpush1.msra.mxu0 0.0
        %721 = vmatprep.subr.mxu0 0.0
        %722 = vmatpush1.msra.mxu0 0.0
        %723 = vmatprep.subr.mxu0 0.0
        %724 = vmatpush1.msra.mxu0 0.0
        %725 = vmatprep.subr.mxu0 0.0
        %726 = vmatpush1.msra.mxu0 0.0
        %727 = vmatprep.subr.mxu0 0.0
        %728 = vmatpush1.msra.mxu0 0.0
        %729 = vmatprep.subr.mxu0 0.0
        %730 = vmatpush1.msra.mxu0 0.0
        %731 = vmatprep.subr.mxu0 0.0
        %732 = vmatpush1.msra.mxu0 0.0
        %733 = vmatprep.subr.mxu0 0.0
        %734 = vmatpush1.msra.mxu0 0.0
        %735 = vmatprep.subr.mxu0 0.0
        %736 = vmatpush1.msra.mxu0 0.0
        %737 = vmatprep.subr.mxu0 0.0
        %738 = vmatpush1.msra.mxu0 0.0
        %739 = vmatprep.subr.mxu0 0.0
        %740 = vmatpush1.msra.mxu0 0.0
        %741 = vmatprep.subr.mxu0 0.0
        %742 = vmatpush1.msra.mxu0 0.0
        %743 = vmatprep.subr.mxu0 0.0
        %744 = vmatpush1.msra.mxu0 0.0
        %745 = vmatprep.mubr.f32.mxu0 0.0
        %746 = vmatmul.mubr.f32.gmra.mrb[0].mxu0 %v568
        %v747 = vpop.f32.mrb[0].mxu0
        %v748 = vadd.f32 %v557, %v747
        %v749 = vpop.f32.mrb[0].mxu0
        %v750 = vadd.f32 %v561, %v749
        %751 = vmatprep.mubr.f32.mxu0 0.0
        %752 = vmatmul.mubr.f32.gmra.mrb[0].mxu0 %v571
        %v753 = vpop.f32.mrb[0].mxu0
        %v754 = vadd.f32 %v557, %v753
        %v755 = vpop.f32.mrb[0].mxu0
        %v756 = vadd.f32 %v561, %v755
        %757 = vmatprep.mubr.f32.mxu0 0.0
        %758 = vmatmul.mubr.f32.gmra.mrb[0].mxu0 %v574
        %v759 = vpop.f32.mrb[0].mxu0
        %v760 = vadd.f32 %v557, %v759
        %v761 = vpop.f32.mrb[0].mxu0
        %v762 = vadd.f32 %v561, %v761
        %763 = vmatprep.mubr.f32.mxu0 0.0
        %764 = vmatmul.mubr.f32.gmra.mrb[0].mxu0 %v577
        %v765 = vpop.f32.mrb[0].mxu0
        %v766 = vadd.f32 %v557, %v765
        %v767 = vpop.f32.mrb[0].mxu0
        %v768 = vadd.f32 %v561, %v767
        %769 = vdwg.mxu0
        %v770 = vmax.f32 %v659, 0.0
        %v771 = vmax.f32 %v661, 0.0
        %v772 = vmax.f32 %v748, 0.0
        %v773 = vmax.f32 %v750, 0.0
        %v774 = vmax.f32 %v665, 0.0
        %v775 = vmax.f32 %v667, 0.0
        %v776 = vmax.f32 %v754, 0.0
        %v777 = vmax.f32 %v756, 0.0
        %v778 = vmax.f32 %v671, 0.0
        %v779 = vmax.f32 %v673, 0.0
        %v780 = vmax.f32 %v760, 0.0
        %v781 = vmax.f32 %v762, 0.0
        %v782 = vmax.f32 %v677, 0.0
        %v783 = vmax.f32 %v679, 0.0
        %v784 = vmax.f32 %v766, 0.0
        %v785 = vmax.f32 %v768, 0.0
        %v786 = vld [vmem:[%s3] sm:$0xff]
        %v787 = vld [vmem:[%s3 + $0x8] sm:$0x7f]
        %vm788 = vcmask 244736
        %v790 = vsel %vm788, %v786, 0
        %v793 = vsel %vm788, %v787, 0
        %vm795 = vcmask 1045504
        %v797 = vsel %vm795, %v782, 0
        %v800 = vsel %vm795, %v783, 0
        %v803 = vsel %vm795, %v784, 0
        %v806 = vsel %vm795, %v785, 0
        %808 = vmatprep.subr.mxu0 %v771
        %809 = vmatpush1.msra.mxu0 %v770
        %810 = vmatprep.subr.mxu0 %v775
        %811 = vmatpush1.msra.mxu0 %v774
        %812 = vmatprep.subr.mxu0 %v779
        %813 = vmatpush1.msra.mxu0 %v778
        %814 = vmatprep.subr.mxu0 %v800
        %815 = vmatpush1.msra.mxu0 %v797
        %816 = vmatprep.subr.mxu0 0.0
        %817 = vmatpush1.msra.mxu0 0.0
        %818 = vmatprep.subr.mxu0 0.0
        %819 = vmatpush1.msra.mxu0 0.0
        %820 = vmatprep.subr.mxu0 0.0
        %821 = vmatpush1.msra.mxu0 0.0
        %822 = vmatprep.subr.mxu0 0.0
        %823 = vmatpush1.msra.mxu0 0.0
        %824 = vmatprep.subr.mxu0 0.0
        %825 = vmatpush1.msra.mxu0 0.0
        %826 = vmatprep.subr.mxu0 0.0
        %827 = vmatpush1.msra.mxu0 0.0
        %828 = vmatprep.subr.mxu0 0.0
        %829 = vmatpush1.msra.mxu0 0.0
        %830 = vmatprep.subr.mxu0 0.0
        %831 = vmatpush1.msra.mxu0 0.0
        %832 = vmatprep.subr.mxu0 0.0
        %833 = vmatpush1.msra.mxu0 0.0
        %834 = vmatprep.subr.mxu0 0.0
        %835 = vmatpush1.msra.mxu0 0.0
        %836 = vmatprep.subr.mxu0 0.0
        %837 = vmatpush1.msra.mxu0 0.0
        %838 = vmatprep.subr.mxu0 0.0
        %839 = vmatpush1.msra.mxu0 0.0
        %840 = vmatprep.subr.mxu0 0.0
        %841 = vmatpush1.msra.mxu0 0.0
        %842 = vmatprep.subr.mxu0 0.0
        %843 = vmatpush1.msra.mxu0 0.0
        %844 = vmatprep.subr.mxu0 0.0
        %845 = vmatpush1.msra.mxu0 0.0
        %846 = vmatprep.subr.mxu0 0.0
        %847 = vmatpush1.msra.mxu0 0.0
        %848 = vmatprep.subr.mxu0 0.0
        %849 = vmatpush1.msra.mxu0 0.0
        %850 = vmatprep.subr.mxu0 0.0
        %851 = vmatpush1.msra.mxu0 0.0
        %852 = vmatprep.subr.mxu0 0.0
        %853 = vmatpush1.msra.mxu0 0.0
        %854 = vmatprep.subr.mxu0 0.0
        %855 = vmatpush1.msra.mxu0 0.0
        %856 = vmatprep.subr.mxu0 0.0
        %857 = vmatpush1.msra.mxu0 0.0
        %858 = vmatprep.subr.mxu0 0.0
        %859 = vmatpush1.msra.mxu0 0.0
        %860 = vmatprep.subr.mxu0 0.0
        %861 = vmatpush1.msra.mxu0 0.0
        %862 = vmatprep.subr.mxu0 0.0
        %863 = vmatpush1.msra.mxu0 0.0
        %864 = vmatprep.subr.mxu0 0.0
        %865 = vmatpush1.msra.mxu0 0.0
        %866 = vmatprep.subr.mxu0 0.0
        %867 = vmatpush1.msra.mxu0 0.0
        %868 = vmatprep.subr.mxu0 0.0
        %869 = vmatpush1.msra.mxu0 0.0
        %870 = vmatprep.subr.mxu0 0.0
        %871 = vmatpush1.msra.mxu0 0.0
        %872 = vmatprep.mubr.f32.mxu0 0.0
        %873 = vmatmul.mubr.f32.gmra.mrb[0].mxu0 %v790
        %v874 = vpop.f32.mrb[0].mxu0
        %v875 = vadd.f32 0.0, %v874
        %v876 = vpop.f32.mrb[0].mxu0
        %v877 = vadd.f32 0.0, %v876
        %878 = vmatprep.mubr.f32.mxu0 0.0
        %879 = vmatmul.mubr.f32.gmra.mrb[0].mxu0 %v793
        %v880 = vpop.f32.mrb[0].mxu0
        %v881 = vadd.f32 0.0, %v880
        %v882 = vpop.f32.mrb[0].mxu0
        %v883 = vadd.f32 0.0, %v882
        %884 = vdwg.mxu0
        %885 = vmatprep.subr.mxu0 %v773
        %886 = vmatpush1.msra.mxu0 %v772
        %887 = vmatprep.subr.mxu0 %v777
        %888 = vmatpush1.msra.mxu0 %v776
        %889 = vmatprep.subr.mxu0 %v781
        %890 = vmatpush1.msra.mxu0 %v780
        %891 = vmatprep.subr.mxu0 %v806
        %892 = vmatpush1.msra.mxu0 %v803
        %893 = vmatprep.subr.mxu0 0.0
        %894 = vmatpush1.msra.mxu0 0.0
        %895 = vmatprep.subr.mxu0 0.0
        %896 = vmatpush1.msra.mxu0 0.0
        %897 = vmatprep.subr.mxu0 0.0
        %898 = vmatpush1.msra.mxu0 0.0
        %899 = vmatprep.subr.mxu0 0.0
        %900 = vmatpush1.msra.mxu0 0.0
        %901 = vmatprep.subr.mxu0 0.0
        %902 = vmatpush1.msra.mxu0 0.0
        %903 = vmatprep.subr.mxu0 0.0
        %904 = vmatpush1.msra.mxu0 0.0
        %905 = vmatprep.subr.mxu0 0.0
        %906 = vmatpush1.msra.mxu0 0.0
        %907 = vmatprep.subr.mxu0 0.0
        %908 = vmatpush1.msra.mxu0 0.0
        %909 = vmatprep.subr.mxu0 0.0
        %910 = vmatpush1.msra.mxu0 0.0
        %911 = vmatprep.subr.mxu0 0.0
        %912 = vmatpush1.msra.mxu0 0.0
        %913 = vmatprep.subr.mxu0 0.0
        %914 = vmatpush1.msra.mxu0 0.0
        %915 = vmatprep.subr.mxu0 0.0
        %916 = vmatpush1.msra.mxu0 0.0
        %917 = vmatprep.subr.mxu0 0.0
        %918 = vmatpush1.msra.mxu0 0.0
        %919 = vmatprep.subr.mxu0 0.0
        %920 = vmatpush1.msra.mxu0 0.0
        %921 = vmatprep.subr.mxu0 0.0
        %922 = vmatpush1.msra.mxu0 0.0
        %923 = vmatprep.subr.mxu0 0.0
        %924 = vmatpush1.msra.mxu0 0.0
        %925 = vmatprep.subr.mxu0 0.0
        %926 = vmatpush1.msra.mxu0 0.0
        %927 = vmatprep.subr.mxu0 0.0
        %928 = vmatpush1.msra.mxu0 0.0
        %929 = vmatprep.subr.mxu0 0.0
        %930 = vmatpush1.msra.mxu0 0.0
        %931 = vmatprep.subr.mxu0 0.0
        %932 = vmatpush1.msra.mxu0 0.0
        %933 = vmatprep.subr.mxu0 0.0
        %934 = vmatpush1.msra.mxu0 0.0
        %935 = vmatprep.subr.mxu0 0.0
        %936 = vmatpush1.msra.mxu0 0.0
        %937 = vmatprep.subr.mxu0 0.0
        %938 = vmatpush1.msra.mxu0 0.0
        %939 = vmatprep.subr.mxu0 0.0
        %940 = vmatpush1.msra.mxu0 0.0
        %941 = vmatprep.subr.mxu0 0.0
        %942 = vmatpush1.msra.mxu0 0.0
        %943 = vmatprep.subr.mxu0 0.0
        %944 = vmatpush1.msra.mxu0 0.0
        %945 = vmatprep.subr.mxu0 0.0
        %946 = vmatpush1.msra.mxu0 0.0
        %947 = vmatprep.subr.mxu0 0.0
        %948 = vmatpush1.msra.mxu0 0.0
        %949 = vmatprep.mubr.f32.mxu0 0.0
        %950 = vmatmul.mubr.f32.gmra.mrb[0].mxu0 %v790
        %v951 = vpop.f32.mrb[0].mxu0
        %v952 = vadd.f32 0.0, %v951
        %v953 = vpop.f32.mrb[0].mxu0
        %v954 = vadd.f32 0.0, %v953
        %955 = vmatprep.mubr.f32.mxu0 0.0
        %956 = vmatmul.mubr.f32.gmra.mrb[0].mxu0 %v793
        %v957 = vpop.f32.mrb[0].mxu0
        %v958 = vadd.f32 0.0, %v957
        %v959 = vpop.f32.mrb[0].mxu0
        %v960 = vadd.f32 0.0, %v959
        %961 = vdwg.mxu0
        %s962 = scalar_lea.vmem %s3, 16
        %v963 = vld [vmem:[%s962] sm:$0xff]
        %v964 = vld [vmem:[%s962 + $0x8] sm:$0x7f]
        %v966 = vsel %vm788, %v963, 0
        %v969 = vsel %vm788, %v964, 0
        %971 = vmatprep.subr.mxu0 %v771
        %972 = vmatpush1.msra.mxu0 %v770
        %973 = vmatprep.subr.mxu0 %v775
        %974 = vmatpush1.msra.mxu0 %v774
        %975 = vmatprep.subr.mxu0 %v779
        %976 = vmatpush1.msra.mxu0 %v778
        %977 = vmatprep.subr.mxu0 %v800
        %978 = vmatpush1.msra.mxu0 %v797
        %979 = vmatprep.subr.mxu0 0.0
        %980 = vmatpush1.msra.mxu0 0.0
        %981 = vmatprep.subr.mxu0 0.0
        %982 = vmatpush1.msra.mxu0 0.0
        %983 = vmatprep.subr.mxu0 0.0
        %984 = vmatpush1.msra.mxu0 0.0
        %985 = vmatprep.subr.mxu0 0.0
        %986 = vmatpush1.msra.mxu0 0.0
        %987 = vmatprep.subr.mxu0 0.0
        %988 = vmatpush1.msra.mxu0 0.0
        %989 = vmatprep.subr.mxu0 0.0
        %990 = vmatpush1.msra.mxu0 0.0
        %991 = vmatprep.subr.mxu0 0.0
        %992 = vmatpush1.msra.mxu0 0.0
        %993 = vmatprep.subr.mxu0 0.0
        %994 = vmatpush1.msra.mxu0 0.0
        %995 = vmatprep.subr.mxu0 0.0
        %996 = vmatpush1.msra.mxu0 0.0
        %997 = vmatprep.subr.mxu0 0.0
        %998 = vmatpush1.msra.mxu0 0.0
        %999 = vmatprep.subr.mxu0 0.0
        %1000 = vmatpush1.msra.mxu0 0.0
        %1001 = vmatprep.subr.mxu0 0.0
        %1002 = vmatpush1.msra.mxu0 0.0
        %1003 = vmatprep.subr.mxu0 0.0
        %1004 = vmatpush1.msra.mxu0 0.0
        %1005 = vmatprep.subr.mxu0 0.0
        %1006 = vmatpush1.msra.mxu0 0.0
        %1007 = vmatprep.subr.mxu0 0.0
        %1008 = vmatpush1.msra.mxu0 0.0
        %1009 = vmatprep.subr.mxu0 0.0
        %1010 = vmatpush1.msra.mxu0 0.0
        %1011 = vmatprep.subr.mxu0 0.0
        %1012 = vmatpush1.msra.mxu0 0.0
        %1013 = vmatprep.subr.mxu0 0.0
        %1014 = vmatpush1.msra.mxu0 0.0
        %1015 = vmatprep.subr.mxu0 0.0
        %1016 = vmatpush1.msra.mxu0 0.0
        %1017 = vmatprep.subr.mxu0 0.0
        %1018 = vmatpush1.msra.mxu0 0.0
        %1019 = vmatprep.subr.mxu0 0.0
        %1020 = vmatpush1.msra.mxu0 0.0
        %1021 = vmatprep.subr.mxu0 0.0
        %1022 = vmatpush1.msra.mxu0 0.0
        %1023 = vmatprep.subr.mxu0 0.0
        %1024 = vmatpush1.msra.mxu0 0.0
        %1025 = vmatprep.subr.mxu0 0.0
        %1026 = vmatpush1.msra.mxu0 0.0
        %1027 = vmatprep.subr.mxu0 0.0
        %1028 = vmatpush1.msra.mxu0 0.0
        %1029 = vmatprep.subr.mxu0 0.0
        %1030 = vmatpush1.msra.mxu0 0.0
        %1031 = vmatprep.subr.mxu0 0.0
        %1032 = vmatpush1.msra.mxu0 0.0
        %1033 = vmatprep.subr.mxu0 0.0
        %1034 = vmatpush1.msra.mxu0 0.0
        %1035 = vmatprep.mubr.f32.mxu0 0.0
        %1036 = vmatmul.mubr.f32.gmra.mrb[0].mxu0 %v966
        %v1037 = vpop.f32.mrb[0].mxu0
        %v1038 = vadd.f32 0.0, %v1037
        %v1039 = vpop.f32.mrb[0].mxu0
        %v1040 = vadd.f32 0.0, %v1039
        %1041 = vmatprep.mubr.f32.mxu0 0.0
        %1042 = vmatmul.mubr.f32.gmra.mrb[0].mxu0 %v969
        %v1043 = vpop.f32.mrb[0].mxu0
        %v1044 = vadd.f32 0.0, %v1043
        %v1045 = vpop.f32.mrb[0].mxu0
        %v1046 = vadd.f32 0.0, %v1045
        %1047 = vdwg.mxu0
        %1048 = vmatprep.subr.mxu0 %v773
        %1049 = vmatpush1.msra.mxu0 %v772
        %1050 = vmatprep.subr.mxu0 %v777
        %1051 = vmatpush1.msra.mxu0 %v776
        %1052 = vmatprep.subr.mxu0 %v781
        %1053 = vmatpush1.msra.mxu0 %v780
        %1054 = vmatprep.subr.mxu0 %v806
        %1055 = vmatpush1.msra.mxu0 %v803
        %1056 = vmatprep.subr.mxu0 0.0
        %1057 = vmatpush1.msra.mxu0 0.0
        %1058 = vmatprep.subr.mxu0 0.0
        %1059 = vmatpush1.msra.mxu0 0.0
        %1060 = vmatprep.subr.mxu0 0.0
        %1061 = vmatpush1.msra.mxu0 0.0
        %1062 = vmatprep.subr.mxu0 0.0
        %1063 = vmatpush1.msra.mxu0 0.0
        %1064 = vmatprep.subr.mxu0 0.0
        %1065 = vmatpush1.msra.mxu0 0.0
        %1066 = vmatprep.subr.mxu0 0.0
        %1067 = vmatpush1.msra.mxu0 0.0
        %1068 = vmatprep.subr.mxu0 0.0
        %1069 = vmatpush1.msra.mxu0 0.0
        %1070 = vmatprep.subr.mxu0 0.0
        %1071 = vmatpush1.msra.mxu0 0.0
        %1072 = vmatprep.subr.mxu0 0.0
        %1073 = vmatpush1.msra.mxu0 0.0
        %1074 = vmatprep.subr.mxu0 0.0
        %1075 = vmatpush1.msra.mxu0 0.0
        %1076 = vmatprep.subr.mxu0 0.0
        %1077 = vmatpush1.msra.mxu0 0.0
        %1078 = vmatprep.subr.mxu0 0.0
        %1079 = vmatpush1.msra.mxu0 0.0
        %1080 = vmatprep.subr.mxu0 0.0
        %1081 = vmatpush1.msra.mxu0 0.0
        %1082 = vmatprep.subr.mxu0 0.0
        %1083 = vmatpush1.msra.mxu0 0.0
        %1084 = vmatprep.subr.mxu0 0.0
        %1085 = vmatpush1.msra.mxu0 0.0
        %1086 = vmatprep.subr.mxu0 0.0
        %1087 = vmatpush1.msra.mxu0 0.0
        %1088 = vmatprep.subr.mxu0 0.0
        %1089 = vmatpush1.msra.mxu0 0.0
        %1090 = vmatprep.subr.mxu0 0.0
        %1091 = vmatpush1.msra.mxu0 0.0
        %1092 = vmatprep.subr.mxu0 0.0
        %1093 = vmatpush1.msra.mxu0 0.0
        %1094 = vmatprep.subr.mxu0 0.0
        %1095 = vmatpush1.msra.mxu0 0.0
        %1096 = vmatprep.subr.mxu0 0.0
        %1097 = vmatpush1.msra.mxu0 0.0
        %1098 = vmatprep.subr.mxu0 0.0
        %1099 = vmatpush1.msra.mxu0 0.0
        %1100 = vmatprep.subr.mxu0 0.0
        %1101 = vmatpush1.msra.mxu0 0.0
        %1102 = vmatprep.subr.mxu0 0.0
        %1103 = vmatpush1.msra.mxu0 0.0
        %1104 = vmatprep.subr.mxu0 0.0
        %1105 = vmatpush1.msra.mxu0 0.0
        %1106 = vmatprep.subr.mxu0 0.0
        %1107 = vmatpush1.msra.mxu0 0.0
        %1108 = vmatprep.subr.mxu0 0.0
        %1109 = vmatpush1.msra.mxu0 0.0
        %1110 = vmatprep.subr.mxu0 0.0
        %1111 = vmatpush1.msra.mxu0 0.0
        %1112 = vmatprep.mubr.f32.mxu0 0.0
        %1113 = vmatmul.mubr.f32.gmra.mrb[0].mxu0 %v966
        %v1114 = vpop.f32.mrb[0].mxu0
        %v1115 = vadd.f32 0.0, %v1114
        %v1116 = vpop.f32.mrb[0].mxu0
        %v1117 = vadd.f32 0.0, %v1116
        %1118 = vmatprep.mubr.f32.mxu0 0.0
        %1119 = vmatmul.mubr.f32.gmra.mrb[0].mxu0 %v969
        %v1120 = vpop.f32.mrb[0].mxu0
        %v1121 = vadd.f32 0.0, %v1120
        %v1122 = vpop.f32.mrb[0].mxu0
        %v1123 = vadd.f32 0.0, %v1122
        %1124 = vdwg.mxu0
        %v1125 = vmax.f32 %v875, %v1038
        %v1126 = vmax.f32 %v877, %v1040
        %v1127 = vmax.f32 %v952, %v1115
        %v1128 = vmax.f32 %v954, %v1117
        %v1129 = vmax.f32 %v881, %v1044
        %v1130 = vmax.f32 %v883, %v1046
        %v1131 = vmax.f32 %v958, %v1121
        %v1132 = vmax.f32 %v960, %v1123
        %v1133 = vld [vmem:[%s4] sm:$0xff]
        %v1134 = vld [vmem:[%s4 + $0x8] sm:$0xff]
        %v1135 = vld [vmem:[%s4 + $0x10] sm:$0xff]
        %v1136 = vld [vmem:[%s4 + $0x18] sm:$0xff]
        %v1137 = vld [vmem:[%s4 + $0x20] sm:$0xff]
        %v1138 = vld [vmem:[%s4 + $0x28] sm:$0xff]
        %v1139 = vld [vmem:[%s4 + $0x30] sm:$0xff]
        %v1140 = vld [vmem:[%s4 + $0x38] sm:$0xff]
        %v1141 = vld [vmem:[%s4 + $0x40] sm:$0xff]
        %v1142 = vld [vmem:[%s4 + $0x48] sm:$0xff]
        %v1143 = vld [vmem:[%s4 + $0x50] sm:$0xff]
        %v1144 = vld [vmem:[%s4 + $0x58] sm:$0xff]
        %v1145 = vld [vmem:[%s4 + $0x60] sm:$0xff]
        %v1146 = vld [vmem:[%s4 + $0x68] sm:$0xff]
        %v1147 = vld [vmem:[%s4 + $0x70] sm:$0xff]
        %v1148 = vld [vmem:[%s4 + $0x78] sm:$0xff]
        %v1149 = vld [vmem:[%s4 + $0x80] sm:$0xff]
        %v1150 = vld [vmem:[%s4 + $0x88] sm:$0xff]
        %v1151 = vld [vmem:[%s4 + $0x90] sm:$0xff]
        %v1152 = vld [vmem:[%s4 + $0x98] sm:$0xff]
        %v1153 = vld [vmem:[%s4 + $0xa0] sm:$0xff]
        %v1154 = vld [vmem:[%s4 + $0xa8] sm:$0xff]
        %v1155 = vld [vmem:[%s4 + $0xb0] sm:$0xff]
        %v1156 = vld [vmem:[%s4 + $0xb8] sm:$0xff]
        %v1157 = vld [vmem:[%s4 + $0xc0] sm:$0xff]
        %v1158 = vld [vmem:[%s4 + $0xc8] sm:$0xff]
        %v1159 = vld [vmem:[%s4 + $0xd0] sm:$0xff]
        %v1160 = vld [vmem:[%s4 + $0xd8] sm:$0xff]
        %v1161 = vld [vmem:[%s4 + $0xe0] sm:$0xff]
        %v1162 = vld [vmem:[%s4 + $0xe8] sm:$0xff]
        %v1163 = vld [vmem:[%s4 + $0xf0] sm:$0xff]
        %v1164 = vld [vmem:[%s4 + $0xf8] sm:$0xff]
        %v1165 = vld [vmem:[%s4 + $0x100] sm:$0xff]
        %v1166 = vld [vmem:[%s4 + $0x108] sm:$0xff]
        %v1167 = vld [vmem:[%s4 + $0x110] sm:$0xff]
        %v1168 = vld [vmem:[%s4 + $0x118] sm:$0xff]
        %v1169 = vld [vmem:[%s4 + $0x120] sm:$0xff]
        %v1170 = vld [vmem:[%s4 + $0x128] sm:$0xff]
        %v1171 = vld [vmem:[%s4 + $0x130] sm:$0xff]
        %v1172 = vld [vmem:[%s4 + $0x138] sm:$0xff]
        %v1173 = vld [vmem:[%s4 + $0x140] sm:$0xff]
        %v1174 = vld [vmem:[%s4 + $0x148] sm:$0xff]
        %v1175 = vld [vmem:[%s4 + $0x150] sm:$0xff]
        %v1176 = vld [vmem:[%s4 + $0x158] sm:$0xff]
        %v1177 = vld [vmem:[%s4 + $0x160] sm:$0xff]
        %v1178 = vld [vmem:[%s4 + $0x168] sm:$0xff]
        %v1179 = vld [vmem:[%s4 + $0x170] sm:$0xff]
        %v1180 = vld [vmem:[%s4 + $0x178] sm:$0xff]
        %v1181 = vld [vmem:[%s4 + $0x180] sm:$0xff]
        %v1182 = vld [vmem:[%s4 + $0x188] sm:$0xff]
        %v1183 = vld [vmem:[%s4 + $0x190] sm:$0xff]
        %v1184 = vld [vmem:[%s4 + $0x198] sm:$0xff]
        %v1185 = vld [vmem:[%s4 + $0x1a0] sm:$0xff]
        %v1186 = vld [vmem:[%s4 + $0x1a8] sm:$0xff]
        %v1187 = vld [vmem:[%s4 + $0x1b0] sm:$0xff]
        %v1188 = vld [vmem:[%s4 + $0x1b8] sm:$0xff]
        %v1189 = vld [vmem:[%s4 + $0x1c0] sm:$0xff]
        %v1190 = vld [vmem:[%s4 + $0x1c8] sm:$0xff]
        %v1191 = vld [vmem:[%s4 + $0x1d0] sm:$0xff]
        %v1192 = vld [vmem:[%s4 + $0x1d8] sm:$0xff]
        %v1193 = vld [vmem:[%s4 + $0x1e0] sm:$0xff]
        %v1194 = vld [vmem:[%s4 + $0x1e8] sm:$0xff]
        %v1195 = vld [vmem:[%s4 + $0x1f0] sm:$0xff]
        %v1196 = vld [vmem:[%s4 + $0x1f8] sm:$0xff]
        %v1197 = vld [vmem:[%s4 + $0x200] sm:$0xff]
        %v1198 = vld [vmem:[%s4 + $0x208] sm:$0xff]
        %v1199 = vld [vmem:[%s4 + $0x210] sm:$0xff]
        %v1200 = vld [vmem:[%s4 + $0x218] sm:$0xff]
        %v1201 = vld [vmem:[%s4 + $0x220] sm:$0xff]
        %v1202 = vld [vmem:[%s4 + $0x228] sm:$0xff]
        %v1203 = vld [vmem:[%s4 + $0x230] sm:$0xff]
        %v1204 = vld [vmem:[%s4 + $0x238] sm:$0xff]
        %v1205 = vld [vmem:[%s4 + $0x240] sm:$0xff]
        %v1206 = vld [vmem:[%s4 + $0x248] sm:$0xff]
        %v1207 = vld [vmem:[%s4 + $0x250] sm:$0xff]
        %v1208 = vld [vmem:[%s4 + $0x258] sm:$0xff]
        %v1209 = vld [vmem:[%s4 + $0x260] sm:$0xff]
        %v1210 = vld [vmem:[%s4 + $0x268] sm:$0xff]
        %v1211 = vld [vmem:[%s4 + $0x270] sm:$0xff]
        %v1212 = vld [vmem:[%s4 + $0x278] sm:$0xff]
        %v1213 = vld [vmem:[%s4 + $0x280] sm:$0xff]
        %v1214 = vld [vmem:[%s4 + $0x288] sm:$0xff]
        %v1215 = vld [vmem:[%s4 + $0x290] sm:$0xff]
        %v1216 = vld [vmem:[%s4 + $0x298] sm:$0xff]
        %v1217 = vld [vmem:[%s4 + $0x2a0] sm:$0xff]
        %v1218 = vld [vmem:[%s4 + $0x2a8] sm:$0xff]
        %v1219 = vld [vmem:[%s4 + $0x2b0] sm:$0xff]
        %v1220 = vld [vmem:[%s4 + $0x2b8] sm:$0xff]
        %v1221 = vld [vmem:[%s4 + $0x2c0] sm:$0xff]
        %v1222 = vld [vmem:[%s4 + $0x2c8] sm:$0xff]
        %v1223 = vld [vmem:[%s4 + $0x2d0] sm:$0xff]
        %v1224 = vld [vmem:[%s4 + $0x2d8] sm:$0xff]
        %v1225 = vld [vmem:[%s4 + $0x2e0] sm:$0xff]
        %v1226 = vld [vmem:[%s4 + $0x2e8] sm:$0xff]
        %v1227 = vld [vmem:[%s4 + $0x2f0] sm:$0xff]
        %v1228 = vld [vmem:[%s4 + $0x2f8] sm:$0xff]
        %v1229 = vld [vmem:[%s4 + $0x300] sm:$0xff]
        %v1230 = vld [vmem:[%s4 + $0x308] sm:$0xff]
        %v1231 = vld [vmem:[%s4 + $0x310] sm:$0xff]
        %v1232 = vld [vmem:[%s4 + $0x318] sm:$0xff]
        %v1233 = vld [vmem:[%s4 + $0x320] sm:$0xff]
        %v1234 = vld [vmem:[%s4 + $0x328] sm:$0xff]
        %v1235 = vld [vmem:[%s4 + $0x330] sm:$0xff]
        %v1236 = vld [vmem:[%s4 + $0x338] sm:$0xff]
        %v1237 = vld [vmem:[%s4 + $0x340] sm:$0xff]
        %v1238 = vld [vmem:[%s4 + $0x348] sm:$0xff]
        %v1239 = vld [vmem:[%s4 + $0x350] sm:$0xff]
        %v1240 = vld [vmem:[%s4 + $0x358] sm:$0xff]
        %v1241 = vld [vmem:[%s4 + $0x360] sm:$0xff]
        %v1242 = vld [vmem:[%s4 + $0x368] sm:$0xff]
        %v1243 = vld [vmem:[%s4 + $0x370] sm:$0xff]
        %v1244 = vld [vmem:[%s4 + $0x378] sm:$0xff]
        %v1245 = vld [vmem:[%s4 + $0x380] sm:$0xff]
        %v1246 = vld [vmem:[%s4 + $0x388] sm:$0xff]
        %v1247 = vld [vmem:[%s4 + $0x390] sm:$0xff]
        %v1248 = vld [vmem:[%s4 + $0x398] sm:$0xff]
        %v1249 = vld [vmem:[%s4 + $0x3a0] sm:$0xff]
        %v1250 = vld [vmem:[%s4 + $0x3a8] sm:$0xff]
        %v1251 = vld [vmem:[%s4 + $0x3b0] sm:$0xff]
        %v1252 = vld [vmem:[%s4 + $0x3b8] sm:$0xff]
        %vm1253 = vcmask 785408
        %v1255 = vsel %vm1253, %v1128, 0
        %v1258 = vsel %vm1253, %v1132, 0
        %1260 = vmatprep.subr.mxu0 %v1134
        %1261 = vmatpush1.msra.mxu0 %v1133
        %1262 = vmatprep.subr.mxu0 %v1136
        %1263 = vmatpush1.msra.mxu0 %v1135
        %1264 = vmatprep.subr.mxu0 %v1138
        %1265 = vmatpush1.msra.mxu0 %v1137
        %1266 = vmatprep.subr.mxu0 %v1140
        %1267 = vmatpush1.msra.mxu0 %v1139
        %1268 = vmatprep.subr.mxu0 %v1142
        %1269 = vmatpush1.msra.mxu0 %v1141
        %1270 = vmatprep.subr.mxu0 %v1144
        %1271 = vmatpush1.msra.mxu0 %v1143
        %1272 = vmatprep.subr.mxu0 %v1146
        %1273 = vmatpush1.msra.mxu0 %v1145
        %1274 = vmatprep.subr.mxu0 %v1148
        %1275 = vmatpush1.msra.mxu0 %v1147
        %1276 = vmatprep.subr.mxu0 %v1150
        %1277 = vmatpush1.msra.mxu0 %v1149
        %1278 = vmatprep.subr.mxu0 %v1152
        %1279 = vmatpush1.msra.mxu0 %v1151
        %1280 = vmatprep.subr.mxu0 %v1154
        %1281 = vmatpush1.msra.mxu0 %v1153
        %1282 = vmatprep.subr.mxu0 %v1156
        %1283 = vmatpush1.msra.mxu0 %v1155
        %1284 = vmatprep.subr.mxu0 %v1158
        %1285 = vmatpush1.msra.mxu0 %v1157
        %1286 = vmatprep.subr.mxu0 %v1160
        %1287 = vmatpush1.msra.mxu0 %v1159
        %1288 = vmatprep.subr.mxu0 %v1162
        %1289 = vmatpush1.msra.mxu0 %v1161
        %1290 = vmatprep.subr.mxu0 %v1164
        %1291 = vmatpush1.msra.mxu0 %v1163
        %1292 = vmatprep.subr.mxu0 %v1166
        %1293 = vmatpush1.msra.mxu0 %v1165
        %1294 = vmatprep.subr.mxu0 %v1168
        %1295 = vmatpush1.msra.mxu0 %v1167
        %1296 = vmatprep.subr.mxu0 %v1170
        %1297 = vmatpush1.msra.mxu0 %v1169
        %1298 = vmatprep.subr.mxu0 %v1172
        %1299 = vmatpush1.msra.mxu0 %v1171
        %1300 = vmatprep.subr.mxu0 %v1174
        %1301 = vmatpush1.msra.mxu0 %v1173
        %1302 = vmatprep.subr.mxu0 %v1176
        %1303 = vmatpush1.msra.mxu0 %v1175
        %1304 = vmatprep.subr.mxu0 %v1178
        %1305 = vmatpush1.msra.mxu0 %v1177
        %1306 = vmatprep.subr.mxu0 %v1180
        %1307 = vmatpush1.msra.mxu0 %v1179
        %1308 = vmatprep.subr.mxu0 %v1182
        %1309 = vmatpush1.msra.mxu0 %v1181
        %1310 = vmatprep.subr.mxu0 %v1184
        %1311 = vmatpush1.msra.mxu0 %v1183
        %1312 = vmatprep.subr.mxu0 %v1186
        %1313 = vmatpush1.msra.mxu0 %v1185
        %1314 = vmatprep.subr.mxu0 %v1188
        %1315 = vmatpush1.msra.mxu0 %v1187
        %1316 = vmatprep.subr.mxu0 %v1190
        %1317 = vmatpush1.msra.mxu0 %v1189
        %1318 = vmatprep.subr.mxu0 %v1192
        %1319 = vmatpush1.msra.mxu0 %v1191
        %1320 = vmatprep.subr.mxu0 %v1194
        %1321 = vmatpush1.msra.mxu0 %v1193
        %1322 = vmatprep.subr.mxu0 %v1196
        %1323 = vmatpush1.msra.mxu0 %v1195
        %1324 = vmatprep.mubr.f32.mxu0 %v1126
        %1325 = vmatmul.mubr.f32.gmra.mrb[0].mxu0 %v1125
        %v1326 = vpop.f32.mrb[0].mxu0
        %v1327 = vadd.f32 0.0, %v1326
        %v1328 = vpop.f32.mrb[0].mxu0
        %v1329 = vadd.f32 0.0, %v1328
        %1330 = vmatprep.mubr.f32.mxu0 %v1130
        %1331 = vmatmul.mubr.f32.gmra.mrb[0].mxu0 %v1129
        %v1332 = vpop.f32.mrb[0].mxu0
        %v1333 = vadd.f32 0.0, %v1332
        %v1334 = vpop.f32.mrb[0].mxu0
        %v1335 = vadd.f32 0.0, %v1334
        %1336 = vdwg.mxu0
        %1337 = vmatprep.subr.mxu0 %v1198
        %1338 = vmatpush1.msra.mxu0 %v1197
        %1339 = vmatprep.subr.mxu0 %v1200
        %1340 = vmatpush1.msra.mxu0 %v1199
        %1341 = vmatprep.subr.mxu0 %v1202
        %1342 = vmatpush1.msra.mxu0 %v1201
        %1343 = vmatprep.subr.mxu0 %v1204
        %1344 = vmatpush1.msra.mxu0 %v1203
        %1345 = vmatprep.subr.mxu0 %v1206
        %1346 = vmatpush1.msra.mxu0 %v1205
        %1347 = vmatprep.subr.mxu0 %v1208
        %1348 = vmatpush1.msra.mxu0 %v1207
        %1349 = vmatprep.subr.mxu0 %v1210
        %1350 = vmatpush1.msra.mxu0 %v1209
        %1351 = vmatprep.subr.mxu0 %v1212
        %1352 = vmatpush1.msra.mxu0 %v1211
        %1353 = vmatprep.subr.mxu0 %v1214
        %1354 = vmatpush1.msra.mxu0 %v1213
        %1355 = vmatprep.subr.mxu0 %v1216
        %1356 = vmatpush1.msra.mxu0 %v1215
        %1357 = vmatprep.subr.mxu0 %v1218
        %1358 = vmatpush1.msra.mxu0 %v1217
        %1359 = vmatprep.subr.mxu0 %v1220
        %1360 = vmatpush1.msra.mxu0 %v1219
        %1361 = vmatprep.subr.mxu0 %v1222
        %1362 = vmatpush1.msra.mxu0 %v1221
        %1363 = vmatprep.subr.mxu0 %v1224
        %1364 = vmatpush1.msra.mxu0 %v1223
        %1365 = vmatprep.subr.mxu0 %v1226
        %1366 = vmatpush1.msra.mxu0 %v1225
        %1367 = vmatprep.subr.mxu0 %v1228
        %1368 = vmatpush1.msra.mxu0 %v1227
        %1369 = vmatprep.subr.mxu0 %v1230
        %1370 = vmatpush1.msra.mxu0 %v1229
        %1371 = vmatprep.subr.mxu0 %v1232
        %1372 = vmatpush1.msra.mxu0 %v1231
        %1373 = vmatprep.subr.mxu0 %v1234
        %1374 = vmatpush1.msra.mxu0 %v1233
        %1375 = vmatprep.subr.mxu0 %v1236
        %1376 = vmatpush1.msra.mxu0 %v1235
        %1377 = vmatprep.subr.mxu0 %v1238
        %1378 = vmatpush1.msra.mxu0 %v1237
        %1379 = vmatprep.subr.mxu0 %v1240
        %1380 = vmatpush1.msra.mxu0 %v1239
        %1381 = vmatprep.subr.mxu0 %v1242
        %1382 = vmatpush1.msra.mxu0 %v1241
        %1383 = vmatprep.subr.mxu0 %v1244
        %1384 = vmatpush1.msra.mxu0 %v1243
        %1385 = vmatprep.subr.mxu0 %v1246
        %1386 = vmatpush1.msra.mxu0 %v1245
        %1387 = vmatprep.subr.mxu0 %v1248
        %1388 = vmatpush1.msra.mxu0 %v1247
        %1389 = vmatprep.subr.mxu0 %v1250
        %1390 = vmatpush1.msra.mxu0 %v1249
        %1391 = vmatprep.subr.mxu0 %v1252
        %1392 = vmatpush1.msra.mxu0 %v1251
        %1393 = vmatprep.subr.mxu0 0.0
        %1394 = vmatpush1.msra.mxu0 0.0
        %1395 = vmatprep.subr.mxu0 0.0
        %1396 = vmatpush1.msra.mxu0 0.0
        %1397 = vmatprep.subr.mxu0 0.0
        %1398 = vmatpush1.msra.mxu0 0.0
        %1399 = vmatprep.subr.mxu0 0.0
        %1400 = vmatpush1.msra.mxu0 0.0
        %1401 = vmatprep.mubr.f32.mxu0 %v1255
        %1402 = vmatmul.mubr.f32.gmra.mrb[0].mxu0 %v1127
        %v1403 = vpop.f32.mrb[0].mxu0
        %v1404 = vadd.f32 %v1327, %v1403
        %v1405 = vpop.f32.mrb[0].mxu0
        %v1406 = vadd.f32 %v1329, %v1405
        %1407 = vmatprep.mubr.f32.mxu0 %v1258
        %1408 = vmatmul.mubr.f32.gmra.mrb[0].mxu0 %v1131
        %v1409 = vpop.f32.mrb[0].mxu0
        %v1410 = vadd.f32 %v1333, %v1409
        %v1411 = vpop.f32.mrb[0].mxu0
        %v1412 = vadd.f32 %v1335, %v1411
        %1413 = vdwg.mxu0
        %s1414 = scalar_lea.vmem %s4, 960
        %v1415 = vld [vmem:[%s1414] sm:$0xff]
        %v1416 = vld [vmem:[%s1414 + $0x8] sm:$0xff]
        %v1417 = vld [vmem:[%s1414 + $0x10] sm:$0xff]
        %v1418 = vld [vmem:[%s1414 + $0x18] sm:$0xff]
        %v1419 = vld [vmem:[%s1414 + $0x20] sm:$0xff]
        %v1420 = vld [vmem:[%s1414 + $0x28] sm:$0xff]
        %v1421 = vld [vmem:[%s1414 + $0x30] sm:$0xff]
        %v1422 = vld [vmem:[%s1414 + $0x38] sm:$0xff]
        %v1423 = vld [vmem:[%s1414 + $0x40] sm:$0xff]
        %v1424 = vld [vmem:[%s1414 + $0x48] sm:$0xff]
        %v1425 = vld [vmem:[%s1414 + $0x50] sm:$0xff]
        %v1426 = vld [vmem:[%s1414 + $0x58] sm:$0xff]
        %v1427 = vld [vmem:[%s1414 + $0x60] sm:$0xff]
        %v1428 = vld [vmem:[%s1414 + $0x68] sm:$0xff]
        %v1429 = vld [vmem:[%s1414 + $0x70] sm:$0xff]
        %v1430 = vld [vmem:[%s1414 + $0x78] sm:$0xff]
        %v1431 = vld [vmem:[%s1414 + $0x80] sm:$0xff]
        %v1432 = vld [vmem:[%s1414 + $0x88] sm:$0xff]
        %v1433 = vld [vmem:[%s1414 + $0x90] sm:$0xff]
        %v1434 = vld [vmem:[%s1414 + $0x98] sm:$0xff]
        %v1435 = vld [vmem:[%s1414 + $0xa0] sm:$0xff]
        %v1436 = vld [vmem:[%s1414 + $0xa8] sm:$0xff]
        %v1437 = vld [vmem:[%s1414 + $0xb0] sm:$0xff]
        %v1438 = vld [vmem:[%s1414 + $0xb8] sm:$0xff]
        %v1439 = vld [vmem:[%s1414 + $0xc0] sm:$0xff]
        %v1440 = vld [vmem:[%s1414 + $0xc8] sm:$0xff]
        %v1441 = vld [vmem:[%s1414 + $0xd0] sm:$0xff]
        %v1442 = vld [vmem:[%s1414 + $0xd8] sm:$0xff]
        %v1443 = vld [vmem:[%s1414 + $0xe0] sm:$0xff]
        %v1444 = vld [vmem:[%s1414 + $0xe8] sm:$0xff]
        %v1445 = vld [vmem:[%s1414 + $0xf0] sm:$0xff]
        %v1446 = vld [vmem:[%s1414 + $0xf8] sm:$0xff]
        %v1447 = vld [vmem:[%s1414 + $0x100] sm:$0xff]
        %v1448 = vld [vmem:[%s1414 + $0x108] sm:$0xff]
        %v1449 = vld [vmem:[%s1414 + $0x110] sm:$0xff]
        %v1450 = vld [vmem:[%s1414 + $0x118] sm:$0xff]
        %v1451 = vld [vmem:[%s1414 + $0x120] sm:$0xff]
        %v1452 = vld [vmem:[%s1414 + $0x128] sm:$0xff]
        %v1453 = vld [vmem:[%s1414 + $0x130] sm:$0xff]
        %v1454 = vld [vmem:[%s1414 + $0x138] sm:$0xff]
        %v1455 = vld [vmem:[%s1414 + $0x140] sm:$0xff]
        %v1456 = vld [vmem:[%s1414 + $0x148] sm:$0xff]
        %v1457 = vld [vmem:[%s1414 + $0x150] sm:$0xff]
        %v1458 = vld [vmem:[%s1414 + $0x158] sm:$0xff]
        %v1459 = vld [vmem:[%s1414 + $0x160] sm:$0xff]
        %v1460 = vld [vmem:[%s1414 + $0x168] sm:$0xff]
        %v1461 = vld [vmem:[%s1414 + $0x170] sm:$0xff]
        %v1462 = vld [vmem:[%s1414 + $0x178] sm:$0xff]
        %v1463 = vld [vmem:[%s1414 + $0x180] sm:$0xff]
        %v1464 = vld [vmem:[%s1414 + $0x188] sm:$0xff]
        %v1465 = vld [vmem:[%s1414 + $0x190] sm:$0xff]
        %v1466 = vld [vmem:[%s1414 + $0x198] sm:$0xff]
        %v1467 = vld [vmem:[%s1414 + $0x1a0] sm:$0xff]
        %v1468 = vld [vmem:[%s1414 + $0x1a8] sm:$0xff]
        %v1469 = vld [vmem:[%s1414 + $0x1b0] sm:$0xff]
        %v1470 = vld [vmem:[%s1414 + $0x1b8] sm:$0xff]
        %v1471 = vld [vmem:[%s1414 + $0x1c0] sm:$0xff]
        %v1472 = vld [vmem:[%s1414 + $0x1c8] sm:$0xff]
        %v1473 = vld [vmem:[%s1414 + $0x1d0] sm:$0xff]
        %v1474 = vld [vmem:[%s1414 + $0x1d8] sm:$0xff]
        %v1475 = vld [vmem:[%s1414 + $0x1e0] sm:$0xff]
        %v1476 = vld [vmem:[%s1414 + $0x1e8] sm:$0xff]
        %v1477 = vld [vmem:[%s1414 + $0x1f0] sm:$0xff]
        %v1478 = vld [vmem:[%s1414 + $0x1f8] sm:$0xff]
        %v1479 = vld [vmem:[%s1414 + $0x200] sm:$0xff]
        %v1480 = vld [vmem:[%s1414 + $0x208] sm:$0xff]
        %v1481 = vld [vmem:[%s1414 + $0x210] sm:$0xff]
        %v1482 = vld [vmem:[%s1414 + $0x218] sm:$0xff]
        %v1483 = vld [vmem:[%s1414 + $0x220] sm:$0xff]
        %v1484 = vld [vmem:[%s1414 + $0x228] sm:$0xff]
        %v1485 = vld [vmem:[%s1414 + $0x230] sm:$0xff]
        %v1486 = vld [vmem:[%s1414 + $0x238] sm:$0xff]
        %v1487 = vld [vmem:[%s1414 + $0x240] sm:$0xff]
        %v1488 = vld [vmem:[%s1414 + $0x248] sm:$0xff]
        %v1489 = vld [vmem:[%s1414 + $0x250] sm:$0xff]
        %v1490 = vld [vmem:[%s1414 + $0x258] sm:$0xff]
        %v1491 = vld [vmem:[%s1414 + $0x260] sm:$0xff]
        %v1492 = vld [vmem:[%s1414 + $0x268] sm:$0xff]
        %v1493 = vld [vmem:[%s1414 + $0x270] sm:$0xff]
        %v1494 = vld [vmem:[%s1414 + $0x278] sm:$0xff]
        %v1495 = vld [vmem:[%s1414 + $0x280] sm:$0xff]
        %v1496 = vld [vmem:[%s1414 + $0x288] sm:$0xff]
        %v1497 = vld [vmem:[%s1414 + $0x290] sm:$0xff]
        %v1498 = vld [vmem:[%s1414 + $0x298] sm:$0xff]
        %v1499 = vld [vmem:[%s1414 + $0x2a0] sm:$0xff]
        %v1500 = vld [vmem:[%s1414 + $0x2a8] sm:$0xff]
        %v1501 = vld [vmem:[%s1414 + $0x2b0] sm:$0xff]
        %v1502 = vld [vmem:[%s1414 + $0x2b8] sm:$0xff]
        %v1503 = vld [vmem:[%s1414 + $0x2c0] sm:$0xff]
        %v1504 = vld [vmem:[%s1414 + $0x2c8] sm:$0xff]
        %v1505 = vld [vmem:[%s1414 + $0x2d0] sm:$0xff]
        %v1506 = vld [vmem:[%s1414 + $0x2d8] sm:$0xff]
        %v1507 = vld [vmem:[%s1414 + $0x2e0] sm:$0xff]
        %v1508 = vld [vmem:[%s1414 + $0x2e8] sm:$0xff]
        %v1509 = vld [vmem:[%s1414 + $0x2f0] sm:$0xff]
        %v1510 = vld [vmem:[%s1414 + $0x2f8] sm:$0xff]
        %v1511 = vld [vmem:[%s1414 + $0x300] sm:$0xff]
        %v1512 = vld [vmem:[%s1414 + $0x308] sm:$0xff]
        %v1513 = vld [vmem:[%s1414 + $0x310] sm:$0xff]
        %v1514 = vld [vmem:[%s1414 + $0x318] sm:$0xff]
        %v1515 = vld [vmem:[%s1414 + $0x320] sm:$0xff]
        %v1516 = vld [vmem:[%s1414 + $0x328] sm:$0xff]
        %v1517 = vld [vmem:[%s1414 + $0x330] sm:$0xff]
        %v1518 = vld [vmem:[%s1414 + $0x338] sm:$0xff]
        %v1519 = vld [vmem:[%s1414 + $0x340] sm:$0xff]
        %v1520 = vld [vmem:[%s1414 + $0x348] sm:$0xff]
        %v1521 = vld [vmem:[%s1414 + $0x350] sm:$0xff]
        %v1522 = vld [vmem:[%s1414 + $0x358] sm:$0xff]
        %v1523 = vld [vmem:[%s1414 + $0x360] sm:$0xff]
        %v1524 = vld [vmem:[%s1414 + $0x368] sm:$0xff]
        %v1525 = vld [vmem:[%s1414 + $0x370] sm:$0xff]
        %v1526 = vld [vmem:[%s1414 + $0x378] sm:$0xff]
        %v1527 = vld [vmem:[%s1414 + $0x380] sm:$0xff]
        %v1528 = vld [vmem:[%s1414 + $0x388] sm:$0xff]
        %v1529 = vld [vmem:[%s1414 + $0x390] sm:$0xff]
        %v1530 = vld [vmem:[%s1414 + $0x398] sm:$0xff]
        %v1531 = vld [vmem:[%s1414 + $0x3a0] sm:$0xff]
        %v1532 = vld [vmem:[%s1414 + $0x3a8] sm:$0xff]
        %v1533 = vld [vmem:[%s1414 + $0x3b0] sm:$0xff]
        %v1534 = vld [vmem:[%s1414 + $0x3b8] sm:$0xff]
        %1535 = vmatprep.subr.mxu0 %v1416
        %1536 = vmatpush1.msra.mxu0 %v1415
        %1537 = vmatprep.subr.mxu0 %v1418
        %1538 = vmatpush1.msra.mxu0 %v1417
        %1539 = vmatprep.subr.mxu0 %v1420
        %1540 = vmatpush1.msra.mxu0 %v1419
        %1541 = vmatprep.subr.mxu0 %v1422
        %1542 = vmatpush1.msra.mxu0 %v1421
        %1543 = vmatprep.subr.mxu0 %v1424
        %1544 = vmatpush1.msra.mxu0 %v1423
        %1545 = vmatprep.subr.mxu0 %v1426
        %1546 = vmatpush1.msra.mxu0 %v1425
        %1547 = vmatprep.subr.mxu0 %v1428
        %1548 = vmatpush1.msra.mxu0 %v1427
        %1549 = vmatprep.subr.mxu0 %v1430
        %1550 = vmatpush1.msra.mxu0 %v1429
        %1551 = vmatprep.subr.mxu0 %v1432
        %1552 = vmatpush1.msra.mxu0 %v1431
        %1553 = vmatprep.subr.mxu0 %v1434
        %1554 = vmatpush1.msra.mxu0 %v1433
        %1555 = vmatprep.subr.mxu0 %v1436
        %1556 = vmatpush1.msra.mxu0 %v1435
        %1557 = vmatprep.subr.mxu0 %v1438
        %1558 = vmatpush1.msra.mxu0 %v1437
        %1559 = vmatprep.subr.mxu0 %v1440
        %1560 = vmatpush1.msra.mxu0 %v1439
        %1561 = vmatprep.subr.mxu0 %v1442
        %1562 = vmatpush1.msra.mxu0 %v1441
        %1563 = vmatprep.subr.mxu0 %v1444
        %1564 = vmatpush1.msra.mxu0 %v1443
        %1565 = vmatprep.subr.mxu0 %v1446
        %1566 = vmatpush1.msra.mxu0 %v1445
        %1567 = vmatprep.subr.mxu0 %v1448
        %1568 = vmatpush1.msra.mxu0 %v1447
        %1569 = vmatprep.subr.mxu0 %v1450
        %1570 = vmatpush1.msra.mxu0 %v1449
        %1571 = vmatprep.subr.mxu0 %v1452
        %1572 = vmatpush1.msra.mxu0 %v1451
        %1573 = vmatprep.subr.mxu0 %v1454
        %1574 = vmatpush1.msra.mxu0 %v1453
        %1575 = vmatprep.subr.mxu0 %v1456
        %1576 = vmatpush1.msra.mxu0 %v1455
        %1577 = vmatprep.subr.mxu0 %v1458
        %1578 = vmatpush1.msra.mxu0 %v1457
        %1579 = vmatprep.subr.mxu0 %v1460
        %1580 = vmatpush1.msra.mxu0 %v1459
        %1581 = vmatprep.subr.mxu0 %v1462
        %1582 = vmatpush1.msra.mxu0 %v1461
        %1583 = vmatprep.subr.mxu0 %v1464
        %1584 = vmatpush1.msra.mxu0 %v1463
        %1585 = vmatprep.subr.mxu0 %v1466
        %1586 = vmatpush1.msra.mxu0 %v1465
        %1587 = vmatprep.subr.mxu0 %v1468
        %1588 = vmatpush1.msra.mxu0 %v1467
        %1589 = vmatprep.subr.mxu0 %v1470
        %1590 = vmatpush1.msra.mxu0 %v1469
        %1591 = vmatprep.subr.mxu0 %v1472
        %1592 = vmatpush1.msra.mxu0 %v1471
        %1593 = vmatprep.subr.mxu0 %v1474
        %1594 = vmatpush1.msra.mxu0 %v1473
        %1595 = vmatprep.subr.mxu0 %v1476
        %1596 = vmatpush1.msra.mxu0 %v1475
        %1597 = vmatprep.subr.mxu0 %v1478
        %1598 = vmatpush1.msra.mxu0 %v1477
        %1599 = vmatprep.mubr.f32.mxu0 %v1126
        %1600 = vmatmul.mubr.f32.gmra.mrb[0].mxu0 %v1125
        %v1601 = vpop.f32.mrb[0].mxu0
        %v1602 = vadd.f32 0.0, %v1601
        %v1603 = vpop.f32.mrb[0].mxu0
        %v1604 = vadd.f32 0.0, %v1603
        %1605 = vmatprep.mubr.f32.mxu0 %v1130
        %1606 = vmatmul.mubr.f32.gmra.mrb[0].mxu0 %v1129
        %v1607 = vpop.f32.mrb[0].mxu0
        %v1608 = vadd.f32 0.0, %v1607
        %v1609 = vpop.f32.mrb[0].mxu0
        %v1610 = vadd.f32 0.0, %v1609
        %1611 = vdwg.mxu0
        %1612 = vmatprep.subr.mxu0 %v1480
        %1613 = vmatpush1.msra.mxu0 %v1479
        %1614 = vmatprep.subr.mxu0 %v1482
        %1615 = vmatpush1.msra.mxu0 %v1481
        %1616 = vmatprep.subr.mxu0 %v1484
        %1617 = vmatpush1.msra.mxu0 %v1483
        %1618 = vmatprep.subr.mxu0 %v1486
        %1619 = vmatpush1.msra.mxu0 %v1485
        %1620 = vmatprep.subr.mxu0 %v1488
        %1621 = vmatpush1.msra.mxu0 %v1487
        %1622 = vmatprep.subr.mxu0 %v1490
        %1623 = vmatpush1.msra.mxu0 %v1489
        %1624 = vmatprep.subr.mxu0 %v1492
        %1625 = vmatpush1.msra.mxu0 %v1491
        %1626 = vmatprep.subr.mxu0 %v1494
        %1627 = vmatpush1.msra.mxu0 %v1493
        %1628 = vmatprep.subr.mxu0 %v1496
        %1629 = vmatpush1.msra.mxu0 %v1495
        %1630 = vmatprep.subr.mxu0 %v1498
        %1631 = vmatpush1.msra.mxu0 %v1497
        %1632 = vmatprep.subr.mxu0 %v1500
        %1633 = vmatpush1.msra.mxu0 %v1499
        %1634 = vmatprep.subr.mxu0 %v1502
        %1635 = vmatpush1.msra.mxu0 %v1501
        %1636 = vmatprep.subr.mxu0 %v1504
        %1637 = vmatpush1.msra.mxu0 %v1503
        %1638 = vmatprep.subr.mxu0 %v1506
        %1639 = vmatpush1.msra.mxu0 %v1505
        %1640 = vmatprep.subr.mxu0 %v1508
        %1641 = vmatpush1.msra.mxu0 %v1507
        %1642 = vmatprep.subr.mxu0 %v1510
        %1643 = vmatpush1.msra.mxu0 %v1509
        %1644 = vmatprep.subr.mxu0 %v1512
        %1645 = vmatpush1.msra.mxu0 %v1511
        %1646 = vmatprep.subr.mxu0 %v1514
        %1647 = vmatpush1.msra.mxu0 %v1513
        %1648 = vmatprep.subr.mxu0 %v1516
        %1649 = vmatpush1.msra.mxu0 %v1515
        %1650 = vmatprep.subr.mxu0 %v1518
        %1651 = vmatpush1.msra.mxu0 %v1517
        %1652 = vmatprep.subr.mxu0 %v1520
        %1653 = vmatpush1.msra.mxu0 %v1519
        %1654 = vmatprep.subr.mxu0 %v1522
        %1655 = vmatpush1.msra.mxu0 %v1521
        %1656 = vmatprep.subr.mxu0 %v1524
        %1657 = vmatpush1.msra.mxu0 %v1523
        %1658 = vmatprep.subr.mxu0 %v1526
        %1659 = vmatpush1.msra.mxu0 %v1525
        %1660 = vmatprep.subr.mxu0 %v1528
        %1661 = vmatpush1.msra.mxu0 %v1527
        %1662 = vmatprep.subr.mxu0 %v1530
        %1663 = vmatpush1.msra.mxu0 %v1529
        %1664 = vmatprep.subr.mxu0 %v1532
        %1665 = vmatpush1.msra.mxu0 %v1531
        %1666 = vmatprep.subr.mxu0 %v1534
        %1667 = vmatpush1.msra.mxu0 %v1533
        %1668 = vmatprep.subr.mxu0 0.0
        %1669 = vmatpush1.msra.mxu0 0.0
        %1670 = vmatprep.subr.mxu0 0.0
        %1671 = vmatpush1.msra.mxu0 0.0
        %1672 = vmatprep.subr.mxu0 0.0
        %1673 = vmatpush1.msra.mxu0 0.0
        %1674 = vmatprep.subr.mxu0 0.0
        %1675 = vmatpush1.msra.mxu0 0.0
        %1676 = vmatprep.mubr.f32.mxu0 %v1255
        %1677 = vmatmul.mubr.f32.gmra.mrb[0].mxu0 %v1127
        %v1678 = vpop.f32.mrb[0].mxu0
        %v1679 = vadd.f32 %v1602, %v1678
        %v1680 = vpop.f32.mrb[0].mxu0
        %v1681 = vadd.f32 %v1604, %v1680
        %1682 = vmatprep.mubr.f32.mxu0 %v1258
        %1683 = vmatmul.mubr.f32.gmra.mrb[0].mxu0 %v1131
        %v1684 = vpop.f32.mrb[0].mxu0
        %v1685 = vadd.f32 %v1608, %v1684
        %v1686 = vpop.f32.mrb[0].mxu0
        %v1687 = vadd.f32 %v1610, %v1686
        %1688 = vdwg.mxu0
        %v1689 = vmax.f32 %v1404, %v1679
        %v1690 = vmax.f32 %v1406, %v1681
        %v1691 = vmax.f32 %v1410, %v1685
        %v1692 = vmax.f32 %v1412, %v1687
        %v1693 = vld [vmem:[%s5] sm:$0xff]
        %v1694 = vld [vmem:[%s5 + $0x8] sm:$0xff]
        %v1695 = vld [vmem:[%s5 + $0x10] sm:$0xff]
        %v1696 = vld [vmem:[%s5 + $0x18] sm:$0xff]
        %v1697 = vld [vmem:[%s5 + $0x20] sm:$0xff]
        %v1698 = vld [vmem:[%s5 + $0x28] sm:$0xff]
        %v1699 = vld [vmem:[%s5 + $0x30] sm:$0xff]
        %v1700 = vld [vmem:[%s5 + $0x38] sm:$0xff]
        %v1701 = vld [vmem:[%s5 + $0x40] sm:$0xff]
        %v1702 = vld [vmem:[%s5 + $0x48] sm:$0xff]
        %v1703 = vld [vmem:[%s5 + $0x50] sm:$0xff]
        %v1704 = vld [vmem:[%s5 + $0x58] sm:$0xff]
        %v1705 = vld [vmem:[%s5 + $0x60] sm:$0xff]
        %v1706 = vld [vmem:[%s5 + $0x68] sm:$0xff]
        %v1707 = vld [vmem:[%s5 + $0x70] sm:$0xff]
        %v1708 = vld [vmem:[%s5 + $0x78] sm:$0xff]
        %v1709 = vld [vmem:[%s5 + $0x80] sm:$0xff]
        %v1710 = vld [vmem:[%s5 + $0x88] sm:$0xff]
        %v1711 = vld [vmem:[%s5 + $0x90] sm:$0xff]
        %v1712 = vld [vmem:[%s5 + $0x98] sm:$0xff]
        %v1713 = vld [vmem:[%s5 + $0xa0] sm:$0xff]
        %v1714 = vld [vmem:[%s5 + $0xa8] sm:$0xff]
        %v1715 = vld [vmem:[%s5 + $0xb0] sm:$0xff]
        %v1716 = vld [vmem:[%s5 + $0xb8] sm:$0xff]
        %v1717 = vld [vmem:[%s5 + $0xc0] sm:$0xff]
        %v1718 = vld [vmem:[%s5 + $0xc8] sm:$0xff]
        %v1719 = vld [vmem:[%s5 + $0xd0] sm:$0xff]
        %v1720 = vld [vmem:[%s5 + $0xd8] sm:$0xff]
        %v1721 = vld [vmem:[%s5 + $0xe0] sm:$0xff]
        %v1722 = vld [vmem:[%s5 + $0xe8] sm:$0xff]
        %v1723 = vld [vmem:[%s5 + $0xf0] sm:$0xff]
        %v1724 = vld [vmem:[%s5 + $0xf8] sm:$0xff]
        %v1725 = vld [vmem:[%s5 + $0x100] sm:$0xff]
        %v1726 = vld [vmem:[%s5 + $0x108] sm:$0xff]
        %v1727 = vld [vmem:[%s5 + $0x110] sm:$0xff]
        %v1728 = vld [vmem:[%s5 + $0x118] sm:$0xff]
        %v1729 = vld [vmem:[%s5 + $0x120] sm:$0xff]
        %v1730 = vld [vmem:[%s5 + $0x128] sm:$0xff]
        %v1731 = vld [vmem:[%s5 + $0x130] sm:$0xff]
        %v1732 = vld [vmem:[%s5 + $0x138] sm:$0xff]
        %v1733 = vld [vmem:[%s5 + $0x140] sm:$0xff]
        %v1734 = vld [vmem:[%s5 + $0x148] sm:$0xff]
        %v1735 = vld [vmem:[%s5 + $0x150] sm:$0xff]
        %v1736 = vld [vmem:[%s5 + $0x158] sm:$0xff]
        %v1737 = vld [vmem:[%s5 + $0x160] sm:$0xff]
        %v1738 = vld [vmem:[%s5 + $0x168] sm:$0xff]
        %v1739 = vld [vmem:[%s5 + $0x170] sm:$0xff]
        %v1740 = vld [vmem:[%s5 + $0x178] sm:$0xff]
        %v1741 = vld [vmem:[%s5 + $0x180] sm:$0xff]
        %v1742 = vld [vmem:[%s5 + $0x188] sm:$0xff]
        %v1743 = vld [vmem:[%s5 + $0x190] sm:$0xff]
        %v1744 = vld [vmem:[%s5 + $0x198] sm:$0xff]
        %v1745 = vld [vmem:[%s5 + $0x1a0] sm:$0xff]
        %v1746 = vld [vmem:[%s5 + $0x1a8] sm:$0xff]
        %v1747 = vld [vmem:[%s5 + $0x1b0] sm:$0xff]
        %v1748 = vld [vmem:[%s5 + $0x1b8] sm:$0xff]
        %v1749 = vld [vmem:[%s5 + $0x1c0] sm:$0xff]
        %v1750 = vld [vmem:[%s5 + $0x1c8] sm:$0xff]
        %v1751 = vld [vmem:[%s5 + $0x1d0] sm:$0xff]
        %v1752 = vld [vmem:[%s5 + $0x1d8] sm:$0xff]
        %v1753 = vld [vmem:[%s5 + $0x1e0] sm:$0xff]
        %v1754 = vld [vmem:[%s5 + $0x1e8] sm:$0xff]
        %v1755 = vld [vmem:[%s5 + $0x1f0] sm:$0xff]
        %v1756 = vld [vmem:[%s5 + $0x1f8] sm:$0xff]
        %v1757 = vld [vmem:[%s5 + $0x200] sm:$0xff]
        %v1758 = vld [vmem:[%s5 + $0x208] sm:$0xff]
        %v1759 = vld [vmem:[%s5 + $0x210] sm:$0xff]
        %v1760 = vld [vmem:[%s5 + $0x218] sm:$0xff]
        %v1761 = vld [vmem:[%s5 + $0x220] sm:$0xff]
        %v1762 = vld [vmem:[%s5 + $0x228] sm:$0xff]
        %v1763 = vld [vmem:[%s5 + $0x230] sm:$0xff]
        %v1764 = vld [vmem:[%s5 + $0x238] sm:$0xff]
        %v1765 = vld [vmem:[%s5 + $0x240] sm:$0xff]
        %v1766 = vld [vmem:[%s5 + $0x248] sm:$0xff]
        %v1767 = vld [vmem:[%s5 + $0x250] sm:$0xff]
        %v1768 = vld [vmem:[%s5 + $0x258] sm:$0xff]
        %v1769 = vld [vmem:[%s5 + $0x260] sm:$0xff]
        %v1770 = vld [vmem:[%s5 + $0x268] sm:$0xff]
        %v1771 = vld [vmem:[%s5 + $0x270] sm:$0xff]
        %v1772 = vld [vmem:[%s5 + $0x278] sm:$0xff]
        %v1773 = vld [vmem:[%s5 + $0x280] sm:$0xff]
        %v1774 = vld [vmem:[%s5 + $0x288] sm:$0xff]
        %v1775 = vld [vmem:[%s5 + $0x290] sm:$0xff]
        %v1776 = vld [vmem:[%s5 + $0x298] sm:$0xff]
        %v1777 = vld [vmem:[%s5 + $0x2a0] sm:$0xff]
        %v1778 = vld [vmem:[%s5 + $0x2a8] sm:$0xff]
        %v1779 = vld [vmem:[%s5 + $0x2b0] sm:$0xff]
        %v1780 = vld [vmem:[%s5 + $0x2b8] sm:$0xff]
        %v1781 = vld [vmem:[%s5 + $0x2c0] sm:$0xff]
        %v1782 = vld [vmem:[%s5 + $0x2c8] sm:$0xff]
        %v1783 = vld [vmem:[%s5 + $0x2d0] sm:$0xff]
        %v1784 = vld [vmem:[%s5 + $0x2d8] sm:$0xff]
        %v1785 = vld [vmem:[%s5 + $0x2e0] sm:$0xff]
        %v1786 = vld [vmem:[%s5 + $0x2e8] sm:$0xff]
        %v1787 = vld [vmem:[%s5 + $0x2f0] sm:$0xff]
        %v1788 = vld [vmem:[%s5 + $0x2f8] sm:$0xff]
        %v1789 = vld [vmem:[%s5 + $0x300] sm:$0xff]
        %v1790 = vld [vmem:[%s5 + $0x308] sm:$0xff]
        %v1791 = vld [vmem:[%s5 + $0x310] sm:$0xff]
        %v1792 = vld [vmem:[%s5 + $0x318] sm:$0xff]
        %v1793 = vld [vmem:[%s5 + $0x320] sm:$0xff]
        %v1794 = vld [vmem:[%s5 + $0x328] sm:$0xff]
        %v1795 = vld [vmem:[%s5 + $0x330] sm:$0xff]
        %v1796 = vld [vmem:[%s5 + $0x338] sm:$0xff]
        %v1797 = vld [vmem:[%s5 + $0x340] sm:$0xff]
        %v1798 = vld [vmem:[%s5 + $0x348] sm:$0xff]
        %v1799 = vld [vmem:[%s5 + $0x350] sm:$0xff]
        %v1800 = vld [vmem:[%s5 + $0x358] sm:$0xff]
        %v1801 = vld [vmem:[%s5 + $0x360] sm:$0xff]
        %v1802 = vld [vmem:[%s5 + $0x368] sm:$0xff]
        %v1803 = vld [vmem:[%s5 + $0x370] sm:$0xff]
        %v1804 = vld [vmem:[%s5 + $0x378] sm:$0xff]
        %v1805 = vld [vmem:[%s5 + $0x380] sm:$0xff]
        %v1806 = vld [vmem:[%s5 + $0x388] sm:$0xff]
        %v1807 = vld [vmem:[%s5 + $0x390] sm:$0xff]
        %v1808 = vld [vmem:[%s5 + $0x398] sm:$0xff]
        %v1809 = vld [vmem:[%s5 + $0x3a0] sm:$0xff]
        %v1810 = vld [vmem:[%s5 + $0x3a8] sm:$0xff]
        %v1811 = vld [vmem:[%s5 + $0x3b0] sm:$0xff]
        %v1812 = vld [vmem:[%s5 + $0x3b8] sm:$0xff]
        %s1813 = scalar_lea.vmem %s5, 960
        %v1814 = vld [vmem:[%s1813] sm:$0xff]
        %v1815 = vld [vmem:[%s1813 + $0x8] sm:$0xff]
        %v1816 = vld [vmem:[%s1813 + $0x10] sm:$0xff]
        %v1817 = vld [vmem:[%s1813 + $0x18] sm:$0xff]
        %v1818 = vld [vmem:[%s1813 + $0x20] sm:$0xff]
        %v1819 = vld [vmem:[%s1813 + $0x28] sm:$0xff]
        %v1820 = vld [vmem:[%s1813 + $0x30] sm:$0xff]
        %v1821 = vld [vmem:[%s1813 + $0x38] sm:$0xff]
        %v1822 = vld [vmem:[%s1813 + $0x40] sm:$0xff]
        %v1823 = vld [vmem:[%s1813 + $0x48] sm:$0xff]
        %v1824 = vld [vmem:[%s1813 + $0x50] sm:$0xff]
        %v1825 = vld [vmem:[%s1813 + $0x58] sm:$0xff]
        %v1826 = vld [vmem:[%s1813 + $0x60] sm:$0xff]
        %v1827 = vld [vmem:[%s1813 + $0x68] sm:$0xff]
        %v1828 = vld [vmem:[%s1813 + $0x70] sm:$0xff]
        %v1829 = vld [vmem:[%s1813 + $0x78] sm:$0xff]
        %v1830 = vld [vmem:[%s1813 + $0x80] sm:$0xff]
        %v1831 = vld [vmem:[%s1813 + $0x88] sm:$0xff]
        %v1832 = vld [vmem:[%s1813 + $0x90] sm:$0xff]
        %v1833 = vld [vmem:[%s1813 + $0x98] sm:$0xff]
        %v1834 = vld [vmem:[%s1813 + $0xa0] sm:$0xff]
        %v1835 = vld [vmem:[%s1813 + $0xa8] sm:$0xff]
        %v1836 = vld [vmem:[%s1813 + $0xb0] sm:$0xff]
        %v1837 = vld [vmem:[%s1813 + $0xb8] sm:$0xff]
        %v1838 = vld [vmem:[%s1813 + $0xc0] sm:$0xff]
        %v1839 = vld [vmem:[%s1813 + $0xc8] sm:$0xff]
        %v1840 = vld [vmem:[%s1813 + $0xd0] sm:$0xff]
        %v1841 = vld [vmem:[%s1813 + $0xd8] sm:$0xff]
        %v1842 = vld [vmem:[%s1813 + $0xe0] sm:$0xff]
        %v1843 = vld [vmem:[%s1813 + $0xe8] sm:$0xff]
        %v1844 = vld [vmem:[%s1813 + $0xf0] sm:$0xff]
        %v1845 = vld [vmem:[%s1813 + $0xf8] sm:$0xff]
        %v1846 = vld [vmem:[%s1813 + $0x100] sm:$0xff]
        %v1847 = vld [vmem:[%s1813 + $0x108] sm:$0xff]
        %v1848 = vld [vmem:[%s1813 + $0x110] sm:$0xff]
        %v1849 = vld [vmem:[%s1813 + $0x118] sm:$0xff]
        %v1850 = vld [vmem:[%s1813 + $0x120] sm:$0xff]
        %v1851 = vld [vmem:[%s1813 + $0x128] sm:$0xff]
        %v1852 = vld [vmem:[%s1813 + $0x130] sm:$0xff]
        %v1853 = vld [vmem:[%s1813 + $0x138] sm:$0xff]
        %v1854 = vld [vmem:[%s1813 + $0x140] sm:$0xff]
        %v1855 = vld [vmem:[%s1813 + $0x148] sm:$0xff]
        %v1856 = vld [vmem:[%s1813 + $0x150] sm:$0xff]
        %v1857 = vld [vmem:[%s1813 + $0x158] sm:$0xff]
        %v1858 = vld [vmem:[%s1813 + $0x160] sm:$0xff]
        %v1859 = vld [vmem:[%s1813 + $0x168] sm:$0xff]
        %v1860 = vld [vmem:[%s1813 + $0x170] sm:$0xff]
        %v1861 = vld [vmem:[%s1813 + $0x178] sm:$0xff]
        %v1862 = vld [vmem:[%s1813 + $0x180] sm:$0xff]
        %v1863 = vld [vmem:[%s1813 + $0x188] sm:$0xff]
        %v1864 = vld [vmem:[%s1813 + $0x190] sm:$0xff]
        %v1865 = vld [vmem:[%s1813 + $0x198] sm:$0xff]
        %v1866 = vld [vmem:[%s1813 + $0x1a0] sm:$0xff]
        %v1867 = vld [vmem:[%s1813 + $0x1a8] sm:$0xff]
        %v1868 = vld [vmem:[%s1813 + $0x1b0] sm:$0xff]
        %v1869 = vld [vmem:[%s1813 + $0x1b8] sm:$0xff]
        %v1870 = vld [vmem:[%s1813 + $0x1c0] sm:$0xff]
        %v1871 = vld [vmem:[%s1813 + $0x1c8] sm:$0xff]
        %v1872 = vld [vmem:[%s1813 + $0x1d0] sm:$0xff]
        %v1873 = vld [vmem:[%s1813 + $0x1d8] sm:$0xff]
        %v1874 = vld [vmem:[%s1813 + $0x1e0] sm:$0xff]
        %v1875 = vld [vmem:[%s1813 + $0x1e8] sm:$0xff]
        %v1876 = vld [vmem:[%s1813 + $0x1f0] sm:$0xff]
        %v1877 = vld [vmem:[%s1813 + $0x1f8] sm:$0xff]
        %v1878 = vld [vmem:[%s1813 + $0x200] sm:$0xff]
        %v1879 = vld [vmem:[%s1813 + $0x208] sm:$0xff]
        %v1880 = vld [vmem:[%s1813 + $0x210] sm:$0xff]
        %v1881 = vld [vmem:[%s1813 + $0x218] sm:$0xff]
        %v1882 = vld [vmem:[%s1813 + $0x220] sm:$0xff]
        %v1883 = vld [vmem:[%s1813 + $0x228] sm:$0xff]
        %v1884 = vld [vmem:[%s1813 + $0x230] sm:$0xff]
        %v1885 = vld [vmem:[%s1813 + $0x238] sm:$0xff]
        %v1886 = vld [vmem:[%s1813 + $0x240] sm:$0xff]
        %v1887 = vld [vmem:[%s1813 + $0x248] sm:$0xff]
        %v1888 = vld [vmem:[%s1813 + $0x250] sm:$0xff]
        %v1889 = vld [vmem:[%s1813 + $0x258] sm:$0xff]
        %v1890 = vld [vmem:[%s1813 + $0x260] sm:$0xff]
        %v1891 = vld [vmem:[%s1813 + $0x268] sm:$0xff]
        %v1892 = vld [vmem:[%s1813 + $0x270] sm:$0xff]
        %v1893 = vld [vmem:[%s1813 + $0x278] sm:$0xff]
        %v1894 = vld [vmem:[%s1813 + $0x280] sm:$0xff]
        %v1895 = vld [vmem:[%s1813 + $0x288] sm:$0xff]
        %v1896 = vld [vmem:[%s1813 + $0x290] sm:$0xff]
        %v1897 = vld [vmem:[%s1813 + $0x298] sm:$0xff]
        %v1898 = vld [vmem:[%s1813 + $0x2a0] sm:$0xff]
        %v1899 = vld [vmem:[%s1813 + $0x2a8] sm:$0xff]
        %v1900 = vld [vmem:[%s1813 + $0x2b0] sm:$0xff]
        %v1901 = vld [vmem:[%s1813 + $0x2b8] sm:$0xff]
        %v1902 = vld [vmem:[%s1813 + $0x2c0] sm:$0xff]
        %v1903 = vld [vmem:[%s1813 + $0x2c8] sm:$0xff]
        %v1904 = vld [vmem:[%s1813 + $0x2d0] sm:$0xff]
        %v1905 = vld [vmem:[%s1813 + $0x2d8] sm:$0xff]
        %v1906 = vld [vmem:[%s1813 + $0x2e0] sm:$0xff]
        %v1907 = vld [vmem:[%s1813 + $0x2e8] sm:$0xff]
        %v1908 = vld [vmem:[%s1813 + $0x2f0] sm:$0xff]
        %v1909 = vld [vmem:[%s1813 + $0x2f8] sm:$0xff]
        %v1910 = vld [vmem:[%s1813 + $0x300] sm:$0xff]
        %v1911 = vld [vmem:[%s1813 + $0x308] sm:$0xff]
        %v1912 = vld [vmem:[%s1813 + $0x310] sm:$0xff]
        %v1913 = vld [vmem:[%s1813 + $0x318] sm:$0xff]
        %v1914 = vld [vmem:[%s1813 + $0x320] sm:$0xff]
        %v1915 = vld [vmem:[%s1813 + $0x328] sm:$0xff]
        %v1916 = vld [vmem:[%s1813 + $0x330] sm:$0xff]
        %v1917 = vld [vmem:[%s1813 + $0x338] sm:$0xff]
        %v1918 = vld [vmem:[%s1813 + $0x340] sm:$0xff]
        %v1919 = vld [vmem:[%s1813 + $0x348] sm:$0xff]
        %v1920 = vld [vmem:[%s1813 + $0x350] sm:$0xff]
        %v1921 = vld [vmem:[%s1813 + $0x358] sm:$0xff]
        %v1922 = vld [vmem:[%s1813 + $0x360] sm:$0xff]
        %v1923 = vld [vmem:[%s1813 + $0x368] sm:$0xff]
        %v1924 = vld [vmem:[%s1813 + $0x370] sm:$0xff]
        %v1925 = vld [vmem:[%s1813 + $0x378] sm:$0xff]
        %v1926 = vld [vmem:[%s1813 + $0x380] sm:$0xff]
        %v1927 = vld [vmem:[%s1813 + $0x388] sm:$0xff]
        %v1928 = vld [vmem:[%s1813 + $0x390] sm:$0xff]
        %v1929 = vld [vmem:[%s1813 + $0x398] sm:$0xff]
        %v1930 = vld [vmem:[%s1813 + $0x3a0] sm:$0xff]
        %v1931 = vld [vmem:[%s1813 + $0x3a8] sm:$0xff]
        %v1932 = vld [vmem:[%s1813 + $0x3b0] sm:$0xff]
        %v1933 = vld [vmem:[%s1813 + $0x3b8] sm:$0xff]
        %vm1938 = vcmask 1046528
        %v1939 = vrot.slane %v1689, 1
        %v1940 = vrot.slane %v1691, 1
        %v1941 = vsel %vm1938, %v1939, %v1940
        %v1942 = vrot.slane %v1690, 1
        %v1943 = vrot.slane %v1692, 1
        %v1944 = vsel %vm1938, %v1942, %v1943
        %vm1947 = vcmask 916480
        %v1948 = vsel %vm1947, %v1944, 0
        %v1950 = vsel %vm1947, %v1943, 0
        %1952 = vmatprep.subr.mxu0 %v1815
        %1953 = vmatpush1.msra.mxu0 %v1814
        %1954 = vmatprep.subr.mxu0 %v1819
        %1955 = vmatpush1.msra.mxu0 %v1818
        %1956 = vmatprep.subr.mxu0 %v1823
        %1957 = vmatpush1.msra.mxu0 %v1822
        %1958 = vmatprep.subr.mxu0 %v1827
        %1959 = vmatpush1.msra.mxu0 %v1826
        %1960 = vmatprep.subr.mxu0 %v1831
        %1961 = vmatpush1.msra.mxu0 %v1830
        %1962 = vmatprep.subr.mxu0 %v1835
        %1963 = vmatpush1.msra.mxu0 %v1834
        %1964 = vmatprep.subr.mxu0 %v1839
        %1965 = vmatpush1.msra.mxu0 %v1838
        %1966 = vmatprep.subr.mxu0 %v1843
        %1967 = vmatpush1.msra.mxu0 %v1842
        %1968 = vmatprep.subr.mxu0 %v1847
        %1969 = vmatpush1.msra.mxu0 %v1846
        %1970 = vmatprep.subr.mxu0 %v1851
        %1971 = vmatpush1.msra.mxu0 %v1850
        %1972 = vmatprep.subr.mxu0 %v1855
        %1973 = vmatpush1.msra.mxu0 %v1854
        %1974 = vmatprep.subr.mxu0 %v1859
        %1975 = vmatpush1.msra.mxu0 %v1858
        %1976 = vmatprep.subr.mxu0 %v1863
        %1977 = vmatpush1.msra.mxu0 %v1862
        %1978 = vmatprep.subr.mxu0 %v1867
        %1979 = vmatpush1.msra.mxu0 %v1866
        %1980 = vmatprep.subr.mxu0 %v1871
        %1981 = vmatpush1.msra.mxu0 %v1870
        %1982 = vmatprep.subr.mxu0 %v1875
        %1983 = vmatpush1.msra.mxu0 %v1874
        %1984 = vmatprep.subr.mxu0 %v1879
        %1985 = vmatpush1.msra.mxu0 %v1878
        %1986 = vmatprep.subr.mxu0 %v1883
        %1987 = vmatpush1.msra.mxu0 %v1882
        %1988 = vmatprep.subr.mxu0 %v1887
        %1989 = vmatpush1.msra.mxu0 %v1886
        %1990 = vmatprep.subr.mxu0 %v1891
        %1991 = vmatpush1.msra.mxu0 %v1890
        %1992 = vmatprep.subr.mxu0 %v1895
        %1993 = vmatpush1.msra.mxu0 %v1894
        %1994 = vmatprep.subr.mxu0 %v1899
        %1995 = vmatpush1.msra.mxu0 %v1898
        %1996 = vmatprep.subr.mxu0 %v1903
        %1997 = vmatpush1.msra.mxu0 %v1902
        %1998 = vmatprep.subr.mxu0 %v1907
        %1999 = vmatpush1.msra.mxu0 %v1906
        %2000 = vmatprep.subr.mxu0 %v1911
        %2001 = vmatpush1.msra.mxu0 %v1910
        %2002 = vmatprep.subr.mxu0 %v1915
        %2003 = vmatpush1.msra.mxu0 %v1914
        %2004 = vmatprep.subr.mxu0 %v1919
        %2005 = vmatpush1.msra.mxu0 %v1918
        %2006 = vmatprep.subr.mxu0 %v1923
        %2007 = vmatpush1.msra.mxu0 %v1922
        %2008 = vmatprep.subr.mxu0 %v1927
        %2009 = vmatpush1.msra.mxu0 %v1926
        %2010 = vmatprep.subr.mxu0 %v1931
        %2011 = vmatpush1.msra.mxu0 %v1930
        %2012 = vmatprep.subr.mxu0 0.0
        %2013 = vmatpush1.msra.mxu0 0.0
        %2014 = vmatprep.subr.mxu0 0.0
        %2015 = vmatpush1.msra.mxu0 0.0
        %2016 = vmatprep.mubr.f32.mxu0 %v1948
        %2017 = vmatmul.mubr.f32.gmra.mrb[0].mxu0 %v1941
        %v2018 = vpop.f32.mrb[0].mxu0
        %v2019 = vadd.f32 0.0, %v2018
        %v2020 = vpop.f32.mrb[0].mxu0
        %v2021 = vadd.f32 0.0, %v2020
        %2022 = vmatprep.mubr.f32.mxu0 %v1950
        %2023 = vmatmul.mubr.f32.gmra.mrb[0].mxu0 %v1940
        %v2024 = vpop.f32.mrb[0].mxu0
        %v2025 = vadd.f32 0.0, %v2024
        %v2026 = vpop.f32.mrb[0].mxu0
        %v2027 = vadd.f32 0.0, %v2026
        %2028 = vdwg.mxu0
        %2029 = vmatprep.subr.mxu0 %v1817
        %2030 = vmatpush1.msra.mxu0 %v1816
        %2031 = vmatprep.subr.mxu0 %v1821
        %2032 = vmatpush1.msra.mxu0 %v1820
        %2033 = vmatprep.subr.mxu0 %v1825
        %2034 = vmatpush1.msra.mxu0 %v1824
        %2035 = vmatprep.subr.mxu0 %v1829
        %2036 = vmatpush1.msra.mxu0 %v1828
        %2037 = vmatprep.subr.mxu0 %v1833
        %2038 = vmatpush1.msra.mxu0 %v1832
        %2039 = vmatprep.subr.mxu0 %v1837
        %2040 = vmatpush1.msra.mxu0 %v1836
        %2041 = vmatprep.subr.mxu0 %v1841
        %2042 = vmatpush1.msra.mxu0 %v1840
        %2043 = vmatprep.subr.mxu0 %v1845
        %2044 = vmatpush1.msra.mxu0 %v1844
        %2045 = vmatprep.subr.mxu0 %v1849
        %2046 = vmatpush1.msra.mxu0 %v1848
        %2047 = vmatprep.subr.mxu0 %v1853
        %2048 = vmatpush1.msra.mxu0 %v1852
        %2049 = vmatprep.subr.mxu0 %v1857
        %2050 = vmatpush1.msra.mxu0 %v1856
        %2051 = vmatprep.subr.mxu0 %v1861
        %2052 = vmatpush1.msra.mxu0 %v1860
        %2053 = vmatprep.subr.mxu0 %v1865
        %2054 = vmatpush1.msra.mxu0 %v1864
        %2055 = vmatprep.subr.mxu0 %v1869
        %2056 = vmatpush1.msra.mxu0 %v1868
        %2057 = vmatprep.subr.mxu0 %v1873
        %2058 = vmatpush1.msra.mxu0 %v1872
        %2059 = vmatprep.subr.mxu0 %v1877
        %2060 = vmatpush1.msra.mxu0 %v1876
        %2061 = vmatprep.subr.mxu0 %v1881
        %2062 = vmatpush1.msra.mxu0 %v1880
        %2063 = vmatprep.subr.mxu0 %v1885
        %2064 = vmatpush1.msra.mxu0 %v1884
        %2065 = vmatprep.subr.mxu0 %v1889
        %2066 = vmatpush1.msra.mxu0 %v1888
        %2067 = vmatprep.subr.mxu0 %v1893
        %2068 = vmatpush1.msra.mxu0 %v1892
        %2069 = vmatprep.subr.mxu0 %v1897
        %2070 = vmatpush1.msra.mxu0 %v1896
        %2071 = vmatprep.subr.mxu0 %v1901
        %2072 = vmatpush1.msra.mxu0 %v1900
        %2073 = vmatprep.subr.mxu0 %v1905
        %2074 = vmatpush1.msra.mxu0 %v1904
        %2075 = vmatprep.subr.mxu0 %v1909
        %2076 = vmatpush1.msra.mxu0 %v1908
        %2077 = vmatprep.subr.mxu0 %v1913
        %2078 = vmatpush1.msra.mxu0 %v1912
        %2079 = vmatprep.subr.mxu0 %v1917
        %2080 = vmatpush1.msra.mxu0 %v1916
        %2081 = vmatprep.subr.mxu0 %v1921
        %2082 = vmatpush1.msra.mxu0 %v1920
        %2083 = vmatprep.subr.mxu0 %v1925
        %2084 = vmatpush1.msra.mxu0 %v1924
        %2085 = vmatprep.subr.mxu0 %v1929
        %2086 = vmatpush1.msra.mxu0 %v1928
        %2087 = vmatprep.subr.mxu0 %v1933
        %2088 = vmatpush1.msra.mxu0 %v1932
        %2089 = vmatprep.subr.mxu0 0.0
        %2090 = vmatpush1.msra.mxu0 0.0
        %2091 = vmatprep.subr.mxu0 0.0
        %2092 = vmatpush1.msra.mxu0 0.0
        %2093 = vmatprep.mubr.f32.mxu0 %v1948
        %2094 = vmatmul.mubr.f32.gmra.mrb[0].mxu0 %v1941
        %v2095 = vpop.f32.mrb[0].mxu0
        %v2096 = vadd.f32 0.0, %v2095
        %v2097 = vpop.f32.mrb[0].mxu0
        %v2098 = vadd.f32 0.0, %v2097
        %2099 = vmatprep.mubr.f32.mxu0 %v1950
        %2100 = vmatmul.mubr.f32.gmra.mrb[0].mxu0 %v1940
        %v2101 = vpop.f32.mrb[0].mxu0
        %v2102 = vadd.f32 0.0, %v2101
        %v2103 = vpop.f32.mrb[0].mxu0
        %v2104 = vadd.f32 0.0, %v2103
        %2105 = vdwg.mxu0
        %v2106 = vsel %vm1947, %v1690, 0
        %v2108 = vsel %vm1947, %v1692, 0
        %2110 = vmatprep.subr.mxu0 %v1694
        %2111 = vmatpush1.msra.mxu0 %v1693
        %2112 = vmatprep.subr.mxu0 %v1698
        %2113 = vmatpush1.msra.mxu0 %v1697
        %2114 = vmatprep.subr.mxu0 %v1702
        %2115 = vmatpush1.msra.mxu0 %v1701
        %2116 = vmatprep.subr.mxu0 %v1706
        %2117 = vmatpush1.msra.mxu0 %v1705
        %2118 = vmatprep.subr.mxu0 %v1710
        %2119 = vmatpush1.msra.mxu0 %v1709
        %2120 = vmatprep.subr.mxu0 %v1714
        %2121 = vmatpush1.msra.mxu0 %v1713
        %2122 = vmatprep.subr.mxu0 %v1718
        %2123 = vmatpush1.msra.mxu0 %v1717
        %2124 = vmatprep.subr.mxu0 %v1722
        %2125 = vmatpush1.msra.mxu0 %v1721
        %2126 = vmatprep.subr.mxu0 %v1726
        %2127 = vmatpush1.msra.mxu0 %v1725
        %2128 = vmatprep.subr.mxu0 %v1730
        %2129 = vmatpush1.msra.mxu0 %v1729
        %2130 = vmatprep.subr.mxu0 %v1734
        %2131 = vmatpush1.msra.mxu0 %v1733
        %2132 = vmatprep.subr.mxu0 %v1738
        %2133 = vmatpush1.msra.mxu0 %v1737
        %2134 = vmatprep.subr.mxu0 %v1742
        %2135 = vmatpush1.msra.mxu0 %v1741
        %2136 = vmatprep.subr.mxu0 %v1746
        %2137 = vmatpush1.msra.mxu0 %v1745
        %2138 = vmatprep.subr.mxu0 %v1750
        %2139 = vmatpush1.msra.mxu0 %v1749
        %2140 = vmatprep.subr.mxu0 %v1754
        %2141 = vmatpush1.msra.mxu0 %v1753
        %2142 = vmatprep.subr.mxu0 %v1758
        %2143 = vmatpush1.msra.mxu0 %v1757
        %2144 = vmatprep.subr.mxu0 %v1762
        %2145 = vmatpush1.msra.mxu0 %v1761
        %2146 = vmatprep.subr.mxu0 %v1766
        %2147 = vmatpush1.msra.mxu0 %v1765
        %2148 = vmatprep.subr.mxu0 %v1770
        %2149 = vmatpush1.msra.mxu0 %v1769
        %2150 = vmatprep.subr.mxu0 %v1774
        %2151 = vmatpush1.msra.mxu0 %v1773
        %2152 = vmatprep.subr.mxu0 %v1778
        %2153 = vmatpush1.msra.mxu0 %v1777
        %2154 = vmatprep.subr.mxu0 %v1782
        %2155 = vmatpush1.msra.mxu0 %v1781
        %2156 = vmatprep.subr.mxu0 %v1786
        %2157 = vmatpush1.msra.mxu0 %v1785
        %2158 = vmatprep.subr.mxu0 %v1790
        %2159 = vmatpush1.msra.mxu0 %v1789
        %2160 = vmatprep.subr.mxu0 %v1794
        %2161 = vmatpush1.msra.mxu0 %v1793
        %2162 = vmatprep.subr.mxu0 %v1798
        %2163 = vmatpush1.msra.mxu0 %v1797
        %2164 = vmatprep.subr.mxu0 %v1802
        %2165 = vmatpush1.msra.mxu0 %v1801
        %2166 = vmatprep.subr.mxu0 %v1806
        %2167 = vmatpush1.msra.mxu0 %v1805
        %2168 = vmatprep.subr.mxu0 %v1810
        %2169 = vmatpush1.msra.mxu0 %v1809
        %2170 = vmatprep.subr.mxu0 0.0
        %2171 = vmatpush1.msra.mxu0 0.0
        %2172 = vmatprep.subr.mxu0 0.0
        %2173 = vmatpush1.msra.mxu0 0.0
        %2174 = vmatprep.mubr.f32.mxu0 %v2106
        %2175 = vmatmul.mubr.f32.gmra.mrb[0].mxu0 %v1689
        %v2176 = vpop.f32.mrb[0].mxu0
        %v2177 = vadd.f32 %v2019, %v2176
        %v2178 = vpop.f32.mrb[0].mxu0
        %v2179 = vadd.f32 %v2021, %v2178
        %2180 = vmatprep.mubr.f32.mxu0 %v2108
        %2181 = vmatmul.mubr.f32.gmra.mrb[0].mxu0 %v1691
        %v2182 = vpop.f32.mrb[0].mxu0
        %v2183 = vadd.f32 %v2025, %v2182
        %v2184 = vpop.f32.mrb[0].mxu0
        %v2185 = vadd.f32 %v2027, %v2184
        %2186 = vdwg.mxu0
        %2187 = vmatprep.subr.mxu0 %v1696
        %2188 = vmatpush1.msra.mxu0 %v1695
        %2189 = vmatprep.subr.mxu0 %v1700
        %2190 = vmatpush1.msra.mxu0 %v1699
        %2191 = vmatprep.subr.mxu0 %v1704
        %2192 = vmatpush1.msra.mxu0 %v1703
        %2193 = vmatprep.subr.mxu0 %v1708
        %2194 = vmatpush1.msra.mxu0 %v1707
        %2195 = vmatprep.subr.mxu0 %v1712
        %2196 = vmatpush1.msra.mxu0 %v1711
        %2197 = vmatprep.subr.mxu0 %v1716
        %2198 = vmatpush1.msra.mxu0 %v1715
        %2199 = vmatprep.subr.mxu0 %v1720
        %2200 = vmatpush1.msra.mxu0 %v1719
        %2201 = vmatprep.subr.mxu0 %v1724
        %2202 = vmatpush1.msra.mxu0 %v1723
        %2203 = vmatprep.subr.mxu0 %v1728
        %2204 = vmatpush1.msra.mxu0 %v1727
        %2205 = vmatprep.subr.mxu0 %v1732
        %2206 = vmatpush1.msra.mxu0 %v1731
        %2207 = vmatprep.subr.mxu0 %v1736
        %2208 = vmatpush1.msra.mxu0 %v1735
        %2209 = vmatprep.subr.mxu0 %v1740
        %2210 = vmatpush1.msra.mxu0 %v1739
        %2211 = vmatprep.subr.mxu0 %v1744
        %2212 = vmatpush1.msra.mxu0 %v1743
        %2213 = vmatprep.subr.mxu0 %v1748
        %2214 = vmatpush1.msra.mxu0 %v1747
        %2215 = vmatprep.subr.mxu0 %v1752
        %2216 = vmatpush1.msra.mxu0 %v1751
        %2217 = vmatprep.subr.mxu0 %v1756
        %2218 = vmatpush1.msra.mxu0 %v1755
        %2219 = vmatprep.subr.mxu0 %v1760
        %2220 = vmatpush1.msra.mxu0 %v1759
        %2221 = vmatprep.subr.mxu0 %v1764
        %2222 = vmatpush1.msra.mxu0 %v1763
        %2223 = vmatprep.subr.mxu0 %v1768
        %2224 = vmatpush1.msra.mxu0 %v1767
        %2225 = vmatprep.subr.mxu0 %v1772
        %2226 = vmatpush1.msra.mxu0 %v1771
        %2227 = vmatprep.subr.mxu0 %v1776
        %2228 = vmatpush1.msra.mxu0 %v1775
        %2229 = vmatprep.subr.mxu0 %v1780
        %2230 = vmatpush1.msra.mxu0 %v1779
        %2231 = vmatprep.subr.mxu0 %v1784
        %2232 = vmatpush1.msra.mxu0 %v1783
        %2233 = vmatprep.subr.mxu0 %v1788
        %2234 = vmatpush1.msra.mxu0 %v1787
        %2235 = vmatprep.subr.mxu0 %v1792
        %2236 = vmatpush1.msra.mxu0 %v1791
        %2237 = vmatprep.subr.mxu0 %v1796
        %2238 = vmatpush1.msra.mxu0 %v1795
        %2239 = vmatprep.subr.mxu0 %v1800
        %2240 = vmatpush1.msra.mxu0 %v1799
        %2241 = vmatprep.subr.mxu0 %v1804
        %2242 = vmatpush1.msra.mxu0 %v1803
        %2243 = vmatprep.subr.mxu0 %v1808
        %2244 = vmatpush1.msra.mxu0 %v1807
        %2245 = vmatprep.subr.mxu0 %v1812
        %2246 = vmatpush1.msra.mxu0 %v1811
        %2247 = vmatprep.subr.mxu0 0.0
        %2248 = vmatpush1.msra.mxu0 0.0
        %2249 = vmatprep.subr.mxu0 0.0
        %2250 = vmatpush1.msra.mxu0 0.0
        %2251 = vmatprep.mubr.f32.mxu0 %v2106
        %2252 = vmatmul.mubr.f32.gmra.mrb[0].mxu0 %v1689
        %v2253 = vpop.f32.mrb[0].mxu0
        %v2254 = vadd.f32 %v2096, %v2253
        %v2255 = vpop.f32.mrb[0].mxu0
        %v2256 = vadd.f32 %v2098, %v2255
        %2257 = vmatprep.mubr.f32.mxu0 %v2108
        %2258 = vmatmul.mubr.f32.gmra.mrb[0].mxu0 %v1691
        %v2259 = vpop.f32.mrb[0].mxu0
        %v2260 = vadd.f32 %v2102, %v2259
        %v2261 = vpop.f32.mrb[0].mxu0
        %v2262 = vadd.f32 %v2104, %v2261
        %2263 = vdwg.mxu0
        %s2264 = scalar_lea.vmem %s5, 1920
        %v2265 = vld [vmem:[%s2264] sm:$0xff]
        %v2266 = vld [vmem:[%s2264 + $0x8] sm:$0xff]
        %v2267 = vld [vmem:[%s2264 + $0x10] sm:$0xff]
        %v2268 = vld [vmem:[%s2264 + $0x18] sm:$0xff]
        %v2269 = vld [vmem:[%s2264 + $0x20] sm:$0xff]
        %v2270 = vld [vmem:[%s2264 + $0x28] sm:$0xff]
        %v2271 = vld [vmem:[%s2264 + $0x30] sm:$0xff]
        %v2272 = vld [vmem:[%s2264 + $0x38] sm:$0xff]
        %v2273 = vld [vmem:[%s2264 + $0x40] sm:$0xff]
        %v2274 = vld [vmem:[%s2264 + $0x48] sm:$0xff]
        %v2275 = vld [vmem:[%s2264 + $0x50] sm:$0xff]
        %v2276 = vld [vmem:[%s2264 + $0x58] sm:$0xff]
        %v2277 = vld [vmem:[%s2264 + $0x60] sm:$0xff]
        %v2278 = vld [vmem:[%s2264 + $0x68] sm:$0xff]
        %v2279 = vld [vmem:[%s2264 + $0x70] sm:$0xff]
        %v2280 = vld [vmem:[%s2264 + $0x78] sm:$0xff]
        %v2281 = vld [vmem:[%s2264 + $0x80] sm:$0xff]
        %v2282 = vld [vmem:[%s2264 + $0x88] sm:$0xff]
        %v2283 = vld [vmem:[%s2264 + $0x90] sm:$0xff]
        %v2284 = vld [vmem:[%s2264 + $0x98] sm:$0xff]
        %v2285 = vld [vmem:[%s2264 + $0xa0] sm:$0xff]
        %v2286 = vld [vmem:[%s2264 + $0xa8] sm:$0xff]
        %v2287 = vld [vmem:[%s2264 + $0xb0] sm:$0xff]
        %v2288 = vld [vmem:[%s2264 + $0xb8] sm:$0xff]
        %v2289 = vld [vmem:[%s2264 + $0xc0] sm:$0xff]
        %v2290 = vld [vmem:[%s2264 + $0xc8] sm:$0xff]
        %v2291 = vld [vmem:[%s2264 + $0xd0] sm:$0xff]
        %v2292 = vld [vmem:[%s2264 + $0xd8] sm:$0xff]
        %v2293 = vld [vmem:[%s2264 + $0xe0] sm:$0xff]
        %v2294 = vld [vmem:[%s2264 + $0xe8] sm:$0xff]
        %v2295 = vld [vmem:[%s2264 + $0xf0] sm:$0xff]
        %v2296 = vld [vmem:[%s2264 + $0xf8] sm:$0xff]
        %v2297 = vld [vmem:[%s2264 + $0x100] sm:$0xff]
        %v2298 = vld [vmem:[%s2264 + $0x108] sm:$0xff]
        %v2299 = vld [vmem:[%s2264 + $0x110] sm:$0xff]
        %v2300 = vld [vmem:[%s2264 + $0x118] sm:$0xff]
        %v2301 = vld [vmem:[%s2264 + $0x120] sm:$0xff]
        %v2302 = vld [vmem:[%s2264 + $0x128] sm:$0xff]
        %v2303 = vld [vmem:[%s2264 + $0x130] sm:$0xff]
        %v2304 = vld [vmem:[%s2264 + $0x138] sm:$0xff]
        %v2305 = vld [vmem:[%s2264 + $0x140] sm:$0xff]
        %v2306 = vld [vmem:[%s2264 + $0x148] sm:$0xff]
        %v2307 = vld [vmem:[%s2264 + $0x150] sm:$0xff]
        %v2308 = vld [vmem:[%s2264 + $0x158] sm:$0xff]
        %v2309 = vld [vmem:[%s2264 + $0x160] sm:$0xff]
        %v2310 = vld [vmem:[%s2264 + $0x168] sm:$0xff]
        %v2311 = vld [vmem:[%s2264 + $0x170] sm:$0xff]
        %v2312 = vld [vmem:[%s2264 + $0x178] sm:$0xff]
        %v2313 = vld [vmem:[%s2264 + $0x180] sm:$0xff]
        %v2314 = vld [vmem:[%s2264 + $0x188] sm:$0xff]
        %v2315 = vld [vmem:[%s2264 + $0x190] sm:$0xff]
        %v2316 = vld [vmem:[%s2264 + $0x198] sm:$0xff]
        %v2317 = vld [vmem:[%s2264 + $0x1a0] sm:$0xff]
        %v2318 = vld [vmem:[%s2264 + $0x1a8] sm:$0xff]
        %v2319 = vld [vmem:[%s2264 + $0x1b0] sm:$0xff]
        %v2320 = vld [vmem:[%s2264 + $0x1b8] sm:$0xff]
        %v2321 = vld [vmem:[%s2264 + $0x1c0] sm:$0xff]
        %v2322 = vld [vmem:[%s2264 + $0x1c8] sm:$0xff]
        %v2323 = vld [vmem:[%s2264 + $0x1d0] sm:$0xff]
        %v2324 = vld [vmem:[%s2264 + $0x1d8] sm:$0xff]
        %v2325 = vld [vmem:[%s2264 + $0x1e0] sm:$0xff]
        %v2326 = vld [vmem:[%s2264 + $0x1e8] sm:$0xff]
        %v2327 = vld [vmem:[%s2264 + $0x1f0] sm:$0xff]
        %v2328 = vld [vmem:[%s2264 + $0x1f8] sm:$0xff]
        %v2329 = vld [vmem:[%s2264 + $0x200] sm:$0xff]
        %v2330 = vld [vmem:[%s2264 + $0x208] sm:$0xff]
        %v2331 = vld [vmem:[%s2264 + $0x210] sm:$0xff]
        %v2332 = vld [vmem:[%s2264 + $0x218] sm:$0xff]
        %v2333 = vld [vmem:[%s2264 + $0x220] sm:$0xff]
        %v2334 = vld [vmem:[%s2264 + $0x228] sm:$0xff]
        %v2335 = vld [vmem:[%s2264 + $0x230] sm:$0xff]
        %v2336 = vld [vmem:[%s2264 + $0x238] sm:$0xff]
        %v2337 = vld [vmem:[%s2264 + $0x240] sm:$0xff]
        %v2338 = vld [vmem:[%s2264 + $0x248] sm:$0xff]
        %v2339 = vld [vmem:[%s2264 + $0x250] sm:$0xff]
        %v2340 = vld [vmem:[%s2264 + $0x258] sm:$0xff]
        %v2341 = vld [vmem:[%s2264 + $0x260] sm:$0xff]
        %v2342 = vld [vmem:[%s2264 + $0x268] sm:$0xff]
        %v2343 = vld [vmem:[%s2264 + $0x270] sm:$0xff]
        %v2344 = vld [vmem:[%s2264 + $0x278] sm:$0xff]
        %v2345 = vld [vmem:[%s2264 + $0x280] sm:$0xff]
        %v2346 = vld [vmem:[%s2264 + $0x288] sm:$0xff]
        %v2347 = vld [vmem:[%s2264 + $0x290] sm:$0xff]
        %v2348 = vld [vmem:[%s2264 + $0x298] sm:$0xff]
        %v2349 = vld [vmem:[%s2264 + $0x2a0] sm:$0xff]
        %v2350 = vld [vmem:[%s2264 + $0x2a8] sm:$0xff]
        %v2351 = vld [vmem:[%s2264 + $0x2b0] sm:$0xff]
        %v2352 = vld [vmem:[%s2264 + $0x2b8] sm:$0xff]
        %v2353 = vld [vmem:[%s2264 + $0x2c0] sm:$0xff]
        %v2354 = vld [vmem:[%s2264 + $0x2c8] sm:$0xff]
        %v2355 = vld [vmem:[%s2264 + $0x2d0] sm:$0xff]
        %v2356 = vld [vmem:[%s2264 + $0x2d8] sm:$0xff]
        %v2357 = vld [vmem:[%s2264 + $0x2e0] sm:$0xff]
        %v2358 = vld [vmem:[%s2264 + $0x2e8] sm:$0xff]
        %v2359 = vld [vmem:[%s2264 + $0x2f0] sm:$0xff]
        %v2360 = vld [vmem:[%s2264 + $0x2f8] sm:$0xff]
        %v2361 = vld [vmem:[%s2264 + $0x300] sm:$0xff]
        %v2362 = vld [vmem:[%s2264 + $0x308] sm:$0xff]
        %v2363 = vld [vmem:[%s2264 + $0x310] sm:$0xff]
        %v2364 = vld [vmem:[%s2264 + $0x318] sm:$0xff]
        %v2365 = vld [vmem:[%s2264 + $0x320] sm:$0xff]
        %v2366 = vld [vmem:[%s2264 + $0x328] sm:$0xff]
        %v2367 = vld [vmem:[%s2264 + $0x330] sm:$0xff]
        %v2368 = vld [vmem:[%s2264 + $0x338] sm:$0xff]
        %v2369 = vld [vmem:[%s2264 + $0x340] sm:$0xff]
        %v2370 = vld [vmem:[%s2264 + $0x348] sm:$0xff]
        %v2371 = vld [vmem:[%s2264 + $0x350] sm:$0xff]
        %v2372 = vld [vmem:[%s2264 + $0x358] sm:$0xff]
        %v2373 = vld [vmem:[%s2264 + $0x360] sm:$0xff]
        %v2374 = vld [vmem:[%s2264 + $0x368] sm:$0xff]
        %v2375 = vld [vmem:[%s2264 + $0x370] sm:$0xff]
        %v2376 = vld [vmem:[%s2264 + $0x378] sm:$0xff]
        %v2377 = vld [vmem:[%s2264 + $0x380] sm:$0xff]
        %v2378 = vld [vmem:[%s2264 + $0x388] sm:$0xff]
        %v2379 = vld [vmem:[%s2264 + $0x390] sm:$0xff]
        %v2380 = vld [vmem:[%s2264 + $0x398] sm:$0xff]
        %v2381 = vld [vmem:[%s2264 + $0x3a0] sm:$0xff]
        %v2382 = vld [vmem:[%s2264 + $0x3a8] sm:$0xff]
        %v2383 = vld [vmem:[%s2264 + $0x3b0] sm:$0xff]
        %v2384 = vld [vmem:[%s2264 + $0x3b8] sm:$0xff]
        %v2385 = vrot.slane %v1689, 2
        %v2386 = vrot.slane %v1691, 2
        %v2387 = vsel %vm795, %v2385, %v2386
        %v2388 = vrot.slane %v1690, 2
        %v2389 = vrot.slane %v1692, 2
        %v2390 = vsel %vm795, %v2388, %v2389
        %v2393 = vsel %vm1947, %v2390, 0
        %v2395 = vsel %vm1947, %v2389, 0
        %2397 = vmatprep.subr.mxu0 %v2266
        %2398 = vmatpush1.msra.mxu0 %v2265
        %2399 = vmatprep.subr.mxu0 %v2270
        %2400 = vmatpush1.msra.mxu0 %v2269
        %2401 = vmatprep.subr.mxu0 %v2274
        %2402 = vmatpush1.msra.mxu0 %v2273
        %2403 = vmatprep.subr.mxu0 %v2278
        %2404 = vmatpush1.msra.mxu0 %v2277
        %2405 = vmatprep.subr.mxu0 %v2282
        %2406 = vmatpush1.msra.mxu0 %v2281
        %2407 = vmatprep.subr.mxu0 %v2286
        %2408 = vmatpush1.msra.mxu0 %v2285
        %2409 = vmatprep.subr.mxu0 %v2290
        %2410 = vmatpush1.msra.mxu0 %v2289
        %2411 = vmatprep.subr.mxu0 %v2294
        %2412 = vmatpush1.msra.mxu0 %v2293
        %2413 = vmatprep.subr.mxu0 %v2298
        %2414 = vmatpush1.msra.mxu0 %v2297
        %2415 = vmatprep.subr.mxu0 %v2302
        %2416 = vmatpush1.msra.mxu0 %v2301
        %2417 = vmatprep.subr.mxu0 %v2306
        %2418 = vmatpush1.msra.mxu0 %v2305
        %2419 = vmatprep.subr.mxu0 %v2310
        %2420 = vmatpush1.msra.mxu0 %v2309
        %2421 = vmatprep.subr.mxu0 %v2314
        %2422 = vmatpush1.msra.mxu0 %v2313
        %2423 = vmatprep.subr.mxu0 %v2318
        %2424 = vmatpush1.msra.mxu0 %v2317
        %2425 = vmatprep.subr.mxu0 %v2322
        %2426 = vmatpush1.msra.mxu0 %v2321
        %2427 = vmatprep.subr.mxu0 %v2326
        %2428 = vmatpush1.msra.mxu0 %v2325
        %2429 = vmatprep.subr.mxu0 %v2330
        %2430 = vmatpush1.msra.mxu0 %v2329
        %2431 = vmatprep.subr.mxu0 %v2334
        %2432 = vmatpush1.msra.mxu0 %v2333
        %2433 = vmatprep.subr.mxu0 %v2338
        %2434 = vmatpush1.msra.mxu0 %v2337
        %2435 = vmatprep.subr.mxu0 %v2342
        %2436 = vmatpush1.msra.mxu0 %v2341
        %2437 = vmatprep.subr.mxu0 %v2346
        %2438 = vmatpush1.msra.mxu0 %v2345
        %2439 = vmatprep.subr.mxu0 %v2350
        %2440 = vmatpush1.msra.mxu0 %v2349
        %2441 = vmatprep.subr.mxu0 %v2354
        %2442 = vmatpush1.msra.mxu0 %v2353
        %2443 = vmatprep.subr.mxu0 %v2358
        %2444 = vmatpush1.msra.mxu0 %v2357
        %2445 = vmatprep.subr.mxu0 %v2362
        %2446 = vmatpush1.msra.mxu0 %v2361
        %2447 = vmatprep.subr.mxu0 %v2366
        %2448 = vmatpush1.msra.mxu0 %v2365
        %2449 = vmatprep.subr.mxu0 %v2370
        %2450 = vmatpush1.msra.mxu0 %v2369
        %2451 = vmatprep.subr.mxu0 %v2374
        %2452 = vmatpush1.msra.mxu0 %v2373
        %2453 = vmatprep.subr.mxu0 %v2378
        %2454 = vmatpush1.msra.mxu0 %v2377
        %2455 = vmatprep.subr.mxu0 %v2382
        %2456 = vmatpush1.msra.mxu0 %v2381
        %2457 = vmatprep.subr.mxu0 0.0
        %2458 = vmatpush1.msra.mxu0 0.0
        %2459 = vmatprep.subr.mxu0 0.0
        %2460 = vmatpush1.msra.mxu0 0.0
        %2461 = vmatprep.mubr.f32.mxu0 %v2393
        %2462 = vmatmul.mubr.f32.gmra.mrb[0].mxu0 %v2387
        %v2463 = vpop.f32.mrb[0].mxu0
        %v2464 = vadd.f32 0.0, %v2463
        %v2465 = vpop.f32.mrb[0].mxu0
        %v2466 = vadd.f32 0.0, %v2465
        %2467 = vmatprep.mubr.f32.mxu0 %v2395
        %2468 = vmatmul.mubr.f32.gmra.mrb[0].mxu0 %v2386
        %v2469 = vpop.f32.mrb[0].mxu0
        %v2470 = vadd.f32 0.0, %v2469
        %v2471 = vpop.f32.mrb[0].mxu0
        %v2472 = vadd.f32 0.0, %v2471
        %2473 = vdwg.mxu0
        %2474 = vmatprep.subr.mxu0 %v2268
        %2475 = vmatpush1.msra.mxu0 %v2267
        %2476 = vmatprep.subr.mxu0 %v2272
        %2477 = vmatpush1.msra.mxu0 %v2271
        %2478 = vmatprep.subr.mxu0 %v2276
        %2479 = vmatpush1.msra.mxu0 %v2275
        %2480 = vmatprep.subr.mxu0 %v2280
        %2481 = vmatpush1.msra.mxu0 %v2279
        %2482 = vmatprep.subr.mxu0 %v2284
        %2483 = vmatpush1.msra.mxu0 %v2283
        %2484 = vmatprep.subr.mxu0 %v2288
        %2485 = vmatpush1.msra.mxu0 %v2287
        %2486 = vmatprep.subr.mxu0 %v2292
        %2487 = vmatpush1.msra.mxu0 %v2291
        %2488 = vmatprep.subr.mxu0 %v2296
        %2489 = vmatpush1.msra.mxu0 %v2295
        %2490 = vmatprep.subr.mxu0 %v2300
        %2491 = vmatpush1.msra.mxu0 %v2299
        %2492 = vmatprep.subr.mxu0 %v2304
        %2493 = vmatpush1.msra.mxu0 %v2303
        %2494 = vmatprep.subr.mxu0 %v2308
        %2495 = vmatpush1.msra.mxu0 %v2307
        %2496 = vmatprep.subr.mxu0 %v2312
        %2497 = vmatpush1.msra.mxu0 %v2311
        %2498 = vmatprep.subr.mxu0 %v2316
        %2499 = vmatpush1.msra.mxu0 %v2315
        %2500 = vmatprep.subr.mxu0 %v2320
        %2501 = vmatpush1.msra.mxu0 %v2319
        %2502 = vmatprep.subr.mxu0 %v2324
        %2503 = vmatpush1.msra.mxu0 %v2323
        %2504 = vmatprep.subr.mxu0 %v2328
        %2505 = vmatpush1.msra.mxu0 %v2327
        %2506 = vmatprep.subr.mxu0 %v2332
        %2507 = vmatpush1.msra.mxu0 %v2331
        %2508 = vmatprep.subr.mxu0 %v2336
        %2509 = vmatpush1.msra.mxu0 %v2335
        %2510 = vmatprep.subr.mxu0 %v2340
        %2511 = vmatpush1.msra.mxu0 %v2339
        %2512 = vmatprep.subr.mxu0 %v2344
        %2513 = vmatpush1.msra.mxu0 %v2343
        %2514 = vmatprep.subr.mxu0 %v2348
        %2515 = vmatpush1.msra.mxu0 %v2347
        %2516 = vmatprep.subr.mxu0 %v2352
        %2517 = vmatpush1.msra.mxu0 %v2351
        %2518 = vmatprep.subr.mxu0 %v2356
        %2519 = vmatpush1.msra.mxu0 %v2355
        %2520 = vmatprep.subr.mxu0 %v2360
        %2521 = vmatpush1.msra.mxu0 %v2359
        %2522 = vmatprep.subr.mxu0 %v2364
        %2523 = vmatpush1.msra.mxu0 %v2363
        %2524 = vmatprep.subr.mxu0 %v2368
        %2525 = vmatpush1.msra.mxu0 %v2367
        %2526 = vmatprep.subr.mxu0 %v2372
        %2527 = vmatpush1.msra.mxu0 %v2371
        %2528 = vmatprep.subr.mxu0 %v2376
        %2529 = vmatpush1.msra.mxu0 %v2375
        %2530 = vmatprep.subr.mxu0 %v2380
        %2531 = vmatpush1.msra.mxu0 %v2379
        %2532 = vmatprep.subr.mxu0 %v2384
        %2533 = vmatpush1.msra.mxu0 %v2383
        %2534 = vmatprep.subr.mxu0 0.0
        %2535 = vmatpush1.msra.mxu0 0.0
        %2536 = vmatprep.subr.mxu0 0.0
        %2537 = vmatpush1.msra.mxu0 0.0
        %2538 = vmatprep.mubr.f32.mxu0 %v2393
        %2539 = vmatmul.mubr.f32.gmra.mrb[0].mxu0 %v2387
        %v2540 = vpop.f32.mrb[0].mxu0
        %v2541 = vadd.f32 0.0, %v2540
        %v2542 = vpop.f32.mrb[0].mxu0
        %v2543 = vadd.f32 0.0, %v2542
        %2544 = vmatprep.mubr.f32.mxu0 %v2395
        %2545 = vmatmul.mubr.f32.gmra.mrb[0].mxu0 %v2386
        %v2546 = vpop.f32.mrb[0].mxu0
        %v2547 = vadd.f32 0.0, %v2546
        %v2548 = vpop.f32.mrb[0].mxu0
        %v2549 = vadd.f32 0.0, %v2548
        %2550 = vdwg.mxu0
        %v2551 = vadd.f32 %v2177, %v2464
        %v2552 = vadd.f32 %v2179, %v2466
        %v2553 = vadd.f32 %v2254, %v2541
        %v2554 = vadd.f32 %v2256, %v2543
        %v2555 = vadd.f32 %v2183, %v2470
        %v2556 = vadd.f32 %v2185, %v2472
        %v2557 = vadd.f32 %v2260, %v2547
        %v2558 = vadd.f32 %v2262, %v2549
        %v2559 = vld [vmem:[%s6] sm:$0xf]
        %v2561 = vlaneseq
        %v2562 = vshrl.u32 %v2561, 7
        %v2563 = vsub.s32 0, %v2562
        %v2564 = vrot.slane %v2559, %v2563
        %v2565 = vlaneseq
        %v2566 = vshrl.u32 %v2565, 7
        %v2567 = vsub.s32 1, %v2566
        %v2568 = vrot.slane %v2559, %v2567
        %v2569 = vlaneseq
        %v2570 = vshrl.u32 %v2569, 7
        %v2571 = vsub.s32 2, %v2570
        %v2572 = vrot.slane %v2559, %v2571
        %v2573 = vlaneseq
        %v2574 = vshrl.u32 %v2573, 7
        %v2575 = vsub.s32 3, %v2574
        %v2576 = vrot.slane %v2559, %v2575
        %v2581 = vadd.f32 %v2551, %v2564
        %v2582 = vadd.f32 %v2552, %v2568
        %v2583 = vadd.f32 %v2553, %v2572
        %v2584 = vadd.f32 %v2554, %v2576
        %v2585 = vadd.f32 %v2555, %v2564
        %v2586 = vadd.f32 %v2556, %v2568
        %v2587 = vadd.f32 %v2557, %v2572
        %v2588 = vadd.f32 %v2558, %v2576
        %v2589 = vmax.f32 %v2581, 0.0
        %v2590 = vmax.f32 %v2582, 0.0
        %v2591 = vmax.f32 %v2583, 0.0
        %v2592 = vmax.f32 %v2584, 0.0
        %v2593 = vmax.f32 %v2585, 0.0
        %v2594 = vmax.f32 %v2586, 0.0
        %v2595 = vmax.f32 %v2587, 0.0
        %v2596 = vmax.f32 %v2588, 0.0
        %v2597 = vld [vmem:[%s7] sm:$0x3f]
        %vm2598 = vcmask 105472
        %v2600 = vsel %vm2598, %v2597, 0
        %vm2602 = vcmask 1044480
        %v2604 = vsel %vm2602, %v2593, 0
        %v2607 = vsel %vm2602, %v2594, 0
        %v2610 = vsel %vm2602, %v2595, 0
        %v2613 = vsel %vm2602, %v2596, 0
        %2615 = vmatprep.subr.mxu0 %v2590
        %2616 = vmatpush1.msra.mxu0 %v2589
        %2617 = vmatprep.subr.mxu0 %v2607
        %2618 = vmatpush1.msra.mxu0 %v2604
        %2619 = vmatprep.subr.mxu0 0.0
        %2620 = vmatpush1.msra.mxu0 0.0
        %2621 = vmatprep.subr.mxu0 0.0
        %2622 = vmatpush1.msra.mxu0 0.0
        %2623 = vmatprep.subr.mxu0 0.0
        %2624 = vmatpush1.msra.mxu0 0.0
        %2625 = vmatprep.subr.mxu0 0.0
        %2626 = vmatpush1.msra.mxu0 0.0
        %2627 = vmatprep.subr.mxu0 0.0
        %2628 = vmatpush1.msra.mxu0 0.0
        %2629 = vmatprep.subr.mxu0 0.0
        %2630 = vmatpush1.msra.mxu0 0.0
        %2631 = vmatprep.subr.mxu0 0.0
        %2632 = vmatpush1.msra.mxu0 0.0
        %2633 = vmatprep.subr.mxu0 0.0
        %2634 = vmatpush1.msra.mxu0 0.0
        %2635 = vmatprep.subr.mxu0 0.0
        %2636 = vmatpush1.msra.mxu0 0.0
        %2637 = vmatprep.subr.mxu0 0.0
        %2638 = vmatpush1.msra.mxu0 0.0
        %2639 = vmatprep.subr.mxu0 0.0
        %2640 = vmatpush1.msra.mxu0 0.0
        %2641 = vmatprep.subr.mxu0 0.0
        %2642 = vmatpush1.msra.mxu0 0.0
        %2643 = vmatprep.subr.mxu0 0.0
        %2644 = vmatpush1.msra.mxu0 0.0
        %2645 = vmatprep.subr.mxu0 0.0
        %2646 = vmatpush1.msra.mxu0 0.0
        %2647 = vmatprep.subr.mxu0 0.0
        %2648 = vmatpush1.msra.mxu0 0.0
        %2649 = vmatprep.subr.mxu0 0.0
        %2650 = vmatpush1.msra.mxu0 0.0
        %2651 = vmatprep.subr.mxu0 0.0
        %2652 = vmatpush1.msra.mxu0 0.0
        %2653 = vmatprep.subr.mxu0 0.0
        %2654 = vmatpush1.msra.mxu0 0.0
        %2655 = vmatprep.subr.mxu0 0.0
        %2656 = vmatpush1.msra.mxu0 0.0
        %2657 = vmatprep.subr.mxu0 0.0
        %2658 = vmatpush1.msra.mxu0 0.0
        %2659 = vmatprep.subr.mxu0 0.0
        %2660 = vmatpush1.msra.mxu0 0.0
        %2661 = vmatprep.subr.mxu0 0.0
        %2662 = vmatpush1.msra.mxu0 0.0
        %2663 = vmatprep.subr.mxu0 0.0
        %2664 = vmatpush1.msra.mxu0 0.0
        %2665 = vmatprep.subr.mxu0 0.0
        %2666 = vmatpush1.msra.mxu0 0.0
        %2667 = vmatprep.subr.mxu0 0.0
        %2668 = vmatpush1.msra.mxu0 0.0
        %2669 = vmatprep.subr.mxu0 0.0
        %2670 = vmatpush1.msra.mxu0 0.0
        %2671 = vmatprep.subr.mxu0 0.0
        %2672 = vmatpush1.msra.mxu0 0.0
        %2673 = vmatprep.subr.mxu0 0.0
        %2674 = vmatpush1.msra.mxu0 0.0
        %2675 = vmatprep.subr.mxu0 0.0
        %2676 = vmatpush1.msra.mxu0 0.0
        %2677 = vmatprep.subr.mxu0 0.0
        %2678 = vmatpush1.msra.mxu0 0.0
        %2679 = vmatprep.mubr.f32.mxu0 0.0
        %2680 = vmatmul.mubr.f32.gmra.mrb[0].mxu0 %v2600
        %v2681 = vpop.f32.mrb[0].mxu0
        %v2682 = vadd.f32 0.0, %v2681
        %v2683 = vpop.f32.mrb[0].mxu0
        %v2684 = vadd.f32 0.0, %v2683
        %2685 = vdwg.mxu0
        %2686 = vmatprep.subr.mxu0 %v2592
        %2687 = vmatpush1.msra.mxu0 %v2591
        %2688 = vmatprep.subr.mxu0 %v2613
        %2689 = vmatpush1.msra.mxu0 %v2610
        %2690 = vmatprep.subr.mxu0 0.0
        %2691 = vmatpush1.msra.mxu0 0.0
        %2692 = vmatprep.subr.mxu0 0.0
        %2693 = vmatpush1.msra.mxu0 0.0
        %2694 = vmatprep.subr.mxu0 0.0
        %2695 = vmatpush1.msra.mxu0 0.0
        %2696 = vmatprep.subr.mxu0 0.0
        %2697 = vmatpush1.msra.mxu0 0.0
        %2698 = vmatprep.subr.mxu0 0.0
        %2699 = vmatpush1.msra.mxu0 0.0
        %2700 = vmatprep.subr.mxu0 0.0
        %2701 = vmatpush1.msra.mxu0 0.0
        %2702 = vmatprep.subr.mxu0 0.0
        %2703 = vmatpush1.msra.mxu0 0.0
        %2704 = vmatprep.subr.mxu0 0.0
        %2705 = vmatpush1.msra.mxu0 0.0
        %2706 = vmatprep.subr.mxu0 0.0
        %2707 = vmatpush1.msra.mxu0 0.0
        %2708 = vmatprep.subr.mxu0 0.0
        %2709 = vmatpush1.msra.mxu0 0.0
        %2710 = vmatprep.subr.mxu0 0.0
        %2711 = vmatpush1.msra.mxu0 0.0
        %2712 = vmatprep.subr.mxu0 0.0
        %2713 = vmatpush1.msra.mxu0 0.0
        %2714 = vmatprep.subr.mxu0 0.0
        %2715 = vmatpush1.msra.mxu0 0.0
        %2716 = vmatprep.subr.mxu0 0.0
        %2717 = vmatpush1.msra.mxu0 0.0
        %2718 = vmatprep.subr.mxu0 0.0
        %2719 = vmatpush1.msra.mxu0 0.0
        %2720 = vmatprep.subr.mxu0 0.0
        %2721 = vmatpush1.msra.mxu0 0.0
        %2722 = vmatprep.subr.mxu0 0.0
        %2723 = vmatpush1.msra.mxu0 0.0
        %2724 = vmatprep.subr.mxu0 0.0
        %2725 = vmatpush1.msra.mxu0 0.0
        %2726 = vmatprep.subr.mxu0 0.0
        %2727 = vmatpush1.msra.mxu0 0.0
        %2728 = vmatprep.subr.mxu0 0.0
        %2729 = vmatpush1.msra.mxu0 0.0
        %2730 = vmatprep.subr.mxu0 0.0
        %2731 = vmatpush1.msra.mxu0 0.0
        %2732 = vmatprep.subr.mxu0 0.0
        %2733 = vmatpush1.msra.mxu0 0.0
        %2734 = vmatprep.subr.mxu0 0.0
        %2735 = vmatpush1.msra.mxu0 0.0
        %2736 = vmatprep.subr.mxu0 0.0
        %2737 = vmatpush1.msra.mxu0 0.0
        %2738 = vmatprep.subr.mxu0 0.0
        %2739 = vmatpush1.msra.mxu0 0.0
        %2740 = vmatprep.subr.mxu0 0.0
        %2741 = vmatpush1.msra.mxu0 0.0
        %2742 = vmatprep.subr.mxu0 0.0
        %2743 = vmatpush1.msra.mxu0 0.0
        %2744 = vmatprep.subr.mxu0 0.0
        %2745 = vmatpush1.msra.mxu0 0.0
        %2746 = vmatprep.subr.mxu0 0.0
        %2747 = vmatpush1.msra.mxu0 0.0
        %2748 = vmatprep.subr.mxu0 0.0
        %2749 = vmatpush1.msra.mxu0 0.0
        %2750 = vmatprep.mubr.f32.mxu0 0.0
        %2751 = vmatmul.mubr.f32.gmra.mrb[0].mxu0 %v2600
        %v2752 = vpop.f32.mrb[0].mxu0
        %v2753 = vadd.f32 0.0, %v2752
        %v2754 = vpop.f32.mrb[0].mxu0
        %v2755 = vadd.f32 0.0, %v2754
        %2756 = vdwg.mxu0
        %s2757 = scalar_lea.vmem %s7, 8
        %v2758 = vld [vmem:[%s2757] sm:$0x3f]
        %v2760 = vsel %vm2598, %v2758, 0
        %2762 = vmatprep.subr.mxu0 %v2590
        %2763 = vmatpush1.msra.mxu0 %v2589
        %2764 = vmatprep.subr.mxu0 %v2607
        %2765 = vmatpush1.msra.mxu0 %v2604
        %2766 = vmatprep.subr.mxu0 0.0
        %2767 = vmatpush1.msra.mxu0 0.0
        %2768 = vmatprep.subr.mxu0 0.0
        %2769 = vmatpush1.msra.mxu0 0.0
        %2770 = vmatprep.subr.mxu0 0.0
        %2771 = vmatpush1.msra.mxu0 0.0
        %2772 = vmatprep.subr.mxu0 0.0
        %2773 = vmatpush1.msra.mxu0 0.0
        %2774 = vmatprep.subr.mxu0 0.0
        %2775 = vmatpush1.msra.mxu0 0.0
        %2776 = vmatprep.subr.mxu0 0.0
        %2777 = vmatpush1.msra.mxu0 0.0
        %2778 = vmatprep.subr.mxu0 0.0
        %2779 = vmatpush1.msra.mxu0 0.0
        %2780 = vmatprep.subr.mxu0 0.0
        %2781 = vmatpush1.msra.mxu0 0.0
        %2782 = vmatprep.subr.mxu0 0.0
        %2783 = vmatpush1.msra.mxu0 0.0
        %2784 = vmatprep.subr.mxu0 0.0
        %2785 = vmatpush1.msra.mxu0 0.0
        %2786 = vmatprep.subr.mxu0 0.0
        %2787 = vmatpush1.msra.mxu0 0.0
        %2788 = vmatprep.subr.mxu0 0.0
        %2789 = vmatpush1.msra.mxu0 0.0
        %2790 = vmatprep.subr.mxu0 0.0
        %2791 = vmatpush1.msra.mxu0 0.0
        %2792 = vmatprep.subr.mxu0 0.0
        %2793 = vmatpush1.msra.mxu0 0.0
        %2794 = vmatprep.subr.mxu0 0.0
        %2795 = vmatpush1.msra.mxu0 0.0
        %2796 = vmatprep.subr.mxu0 0.0
        %2797 = vmatpush1.msra.mxu0 0.0
        %2798 = vmatprep.subr.mxu0 0.0
        %2799 = vmatpush1.msra.mxu0 0.0
        %2800 = vmatprep.subr.mxu0 0.0
        %2801 = vmatpush1.msra.mxu0 0.0
        %2802 = vmatprep.subr.mxu0 0.0
        %2803 = vmatpush1.msra.mxu0 0.0
        %2804 = vmatprep.subr.mxu0 0.0
        %2805 = vmatpush1.msra.mxu0 0.0
        %2806 = vmatprep.subr.mxu0 0.0
        %2807 = vmatpush1.msra.mxu0 0.0
        %2808 = vmatprep.subr.mxu0 0.0
        %2809 = vmatpush1.msra.mxu0 0.0
        %2810 = vmatprep.subr.mxu0 0.0
        %2811 = vmatpush1.msra.mxu0 0.0
        %2812 = vmatprep.subr.mxu0 0.0
        %2813 = vmatpush1.msra.mxu0 0.0
        %2814 = vmatprep.subr.mxu0 0.0
        %2815 = vmatpush1.msra.mxu0 0.0
        %2816 = vmatprep.subr.mxu0 0.0
        %2817 = vmatpush1.msra.mxu0 0.0
        %2818 = vmatprep.subr.mxu0 0.0
        %2819 = vmatpush1.msra.mxu0 0.0
        %2820 = vmatprep.subr.mxu0 0.0
        %2821 = vmatpush1.msra.mxu0 0.0
        %2822 = vmatprep.subr.mxu0 0.0
        %2823 = vmatpush1.msra.mxu0 0.0
        %2824 = vmatprep.subr.mxu0 0.0
        %2825 = vmatpush1.msra.mxu0 0.0
        %2826 = vmatprep.mubr.f32.mxu0 0.0
        %2827 = vmatmul.mubr.f32.gmra.mrb[0].mxu0 %v2760
        %v2828 = vpop.f32.mrb[0].mxu0
        %v2829 = vadd.f32 0.0, %v2828
        %v2830 = vpop.f32.mrb[0].mxu0
        %v2831 = vadd.f32 0.0, %v2830
        %2832 = vdwg.mxu0
        %2833 = vmatprep.subr.mxu0 %v2592
        %2834 = vmatpush1.msra.mxu0 %v2591
        %2835 = vmatprep.subr.mxu0 %v2613
        %2836 = vmatpush1.msra.mxu0 %v2610
        %2837 = vmatprep.subr.mxu0 0.0
        %2838 = vmatpush1.msra.mxu0 0.0
        %2839 = vmatprep.subr.mxu0 0.0
        %2840 = vmatpush1.msra.mxu0 0.0
        %2841 = vmatprep.subr.mxu0 0.0
        %2842 = vmatpush1.msra.mxu0 0.0
        %2843 = vmatprep.subr.mxu0 0.0
        %2844 = vmatpush1.msra.mxu0 0.0
        %2845 = vmatprep.subr.mxu0 0.0
        %2846 = vmatpush1.msra.mxu0 0.0
        %2847 = vmatprep.subr.mxu0 0.0
        %2848 = vmatpush1.msra.mxu0 0.0
        %2849 = vmatprep.subr.mxu0 0.0
        %2850 = vmatpush1.msra.mxu0 0.0
        %2851 = vmatprep.subr.mxu0 0.0
        %2852 = vmatpush1.msra.mxu0 0.0
        %2853 = vmatprep.subr.mxu0 0.0
        %2854 = vmatpush1.msra.mxu0 0.0
        %2855 = vmatprep.subr.mxu0 0.0
        %2856 = vmatpush1.msra.mxu0 0.0
        %2857 = vmatprep.subr.mxu0 0.0
        %2858 = vmatpush1.msra.mxu0 0.0
        %2859 = vmatprep.subr.mxu0 0.0
        %2860 = vmatpush1.msra.mxu0 0.0
        %2861 = vmatprep.subr.mxu0 0.0
        %2862 = vmatpush1.msra.mxu0 0.0
        %2863 = vmatprep.subr.mxu0 0.0
        %2864 = vmatpush1.msra.mxu0 0.0
        %2865 = vmatprep.subr.mxu0 0.0
        %2866 = vmatpush1.msra.mxu0 0.0
        %2867 = vmatprep.subr.mxu0 0.0
        %2868 = vmatpush1.msra.mxu0 0.0
        %2869 = vmatprep.subr.mxu0 0.0
        %2870 = vmatpush1.msra.mxu0 0.0
        %2871 = vmatprep.subr.mxu0 0.0
        %2872 = vmatpush1.msra.mxu0 0.0
        %2873 = vmatprep.subr.mxu0 0.0
        %2874 = vmatpush1.msra.mxu0 0.0
        %2875 = vmatprep.subr.mxu0 0.0
        %2876 = vmatpush1.msra.mxu0 0.0
        %2877 = vmatprep.subr.mxu0 0.0
        %2878 = vmatpush1.msra.mxu0 0.0
        %2879 = vmatprep.subr.mxu0 0.0
        %2880 = vmatpush1.msra.mxu0 0.0
        %2881 = vmatprep.subr.mxu0 0.0
        %2882 = vmatpush1.msra.mxu0 0.0
        %2883 = vmatprep.subr.mxu0 0.0
        %2884 = vmatpush1.msra.mxu0 0.0
        %2885 = vmatprep.subr.mxu0 0.0
        %2886 = vmatpush1.msra.mxu0 0.0
        %2887 = vmatprep.subr.mxu0 0.0
        %2888 = vmatpush1.msra.mxu0 0.0
        %2889 = vmatprep.subr.mxu0 0.0
        %2890 = vmatpush1.msra.mxu0 0.0
        %2891 = vmatprep.subr.mxu0 0.0
        %2892 = vmatpush1.msra.mxu0 0.0
        %2893 = vmatprep.subr.mxu0 0.0
        %2894 = vmatpush1.msra.mxu0 0.0
        %2895 = vmatprep.subr.mxu0 0.0
        %2896 = vmatpush1.msra.mxu0 0.0
        %2897 = vmatprep.mubr.f32.mxu0 0.0
        %2898 = vmatmul.mubr.f32.gmra.mrb[0].mxu0 %v2760
        %v2899 = vpop.f32.mrb[0].mxu0
        %v2900 = vadd.f32 0.0, %v2899
        %v2901 = vpop.f32.mrb[0].mxu0
        %v2902 = vadd.f32 0.0, %v2901
        %2903 = vdwg.mxu0
        %v2904 = vmax.f32 %v2682, %v2829
        %v2905 = vmax.f32 %v2684, %v2831
        %v2906 = vmax.f32 %v2753, %v2900
        %v2907 = vmax.f32 %v2755, %v2902
        %v2908 = vld [vmem:[%s8] sm:$0xff]
        %v2909 = vld [vmem:[%s8 + $0x8] sm:$0xff]
        %v2910 = vld [vmem:[%s8 + $0x10] sm:$0xff]
        %v2911 = vld [vmem:[%s8 + $0x18] sm:$0xff]
        %v2912 = vld [vmem:[%s8 + $0x20] sm:$0xff]
        %v2913 = vld [vmem:[%s8 + $0x28] sm:$0xff]
        %v2914 = vld [vmem:[%s8 + $0x30] sm:$0xff]
        %v2915 = vld [vmem:[%s8 + $0x38] sm:$0xff]
        %v2916 = vld [vmem:[%s8 + $0x40] sm:$0xff]
        %v2917 = vld [vmem:[%s8 + $0x48] sm:$0xff]
        %v2918 = vld [vmem:[%s8 + $0x50] sm:$0xff]
        %v2919 = vld [vmem:[%s8 + $0x58] sm:$0xff]
        %v2920 = vld [vmem:[%s8 + $0x60] sm:$0xff]
        %v2921 = vld [vmem:[%s8 + $0x68] sm:$0xff]
        %v2922 = vld [vmem:[%s8 + $0x70] sm:$0xff]
        %v2923 = vld [vmem:[%s8 + $0x78] sm:$0xff]
        %v2924 = vld [vmem:[%s8 + $0x80] sm:$0xff]
        %v2925 = vld [vmem:[%s8 + $0x88] sm:$0xff]
        %v2926 = vld [vmem:[%s8 + $0x90] sm:$0xff]
        %v2927 = vld [vmem:[%s8 + $0x98] sm:$0xff]
        %v2928 = vld [vmem:[%s8 + $0xa0] sm:$0xff]
        %v2929 = vld [vmem:[%s8 + $0xa8] sm:$0xff]
        %v2930 = vld [vmem:[%s8 + $0xb0] sm:$0xff]
        %v2931 = vld [vmem:[%s8 + $0xb8] sm:$0xff]
        %v2932 = vld [vmem:[%s8 + $0xc0] sm:$0xff]
        %v2933 = vld [vmem:[%s8 + $0xc8] sm:$0xff]
        %v2934 = vld [vmem:[%s8 + $0xd0] sm:$0xff]
        %v2935 = vld [vmem:[%s8 + $0xd8] sm:$0xff]
        %v2936 = vld [vmem:[%s8 + $0xe0] sm:$0xff]
        %v2937 = vld [vmem:[%s8 + $0xe8] sm:$0xff]
        %v2938 = vld [vmem:[%s8 + $0xf0] sm:$0xff]
        %v2939 = vld [vmem:[%s8 + $0xf8] sm:$0xff]
        %v2940 = vld [vmem:[%s8 + $0x100] sm:$0xff]
        %v2941 = vld [vmem:[%s8 + $0x108] sm:$0xff]
        %v2942 = vld [vmem:[%s8 + $0x110] sm:$0xff]
        %v2943 = vld [vmem:[%s8 + $0x118] sm:$0xff]
        %v2944 = vld [vmem:[%s8 + $0x120] sm:$0xff]
        %v2945 = vld [vmem:[%s8 + $0x128] sm:$0xff]
        %v2946 = vld [vmem:[%s8 + $0x130] sm:$0xff]
        %v2947 = vld [vmem:[%s8 + $0x138] sm:$0xff]
        %v2948 = vld [vmem:[%s8 + $0x140] sm:$0xff]
        %v2949 = vld [vmem:[%s8 + $0x148] sm:$0xff]
        %v2950 = vld [vmem:[%s8 + $0x150] sm:$0xff]
        %v2951 = vld [vmem:[%s8 + $0x158] sm:$0xff]
        %v2952 = vld [vmem:[%s8 + $0x160] sm:$0xff]
        %v2953 = vld [vmem:[%s8 + $0x168] sm:$0xff]
        %v2954 = vld [vmem:[%s8 + $0x170] sm:$0xff]
        %v2955 = vld [vmem:[%s8 + $0x178] sm:$0xff]
        %v2956 = vld [vmem:[%s8 + $0x180] sm:$0xff]
        %v2957 = vld [vmem:[%s8 + $0x188] sm:$0xff]
        %v2958 = vld [vmem:[%s8 + $0x190] sm:$0xff]
        %v2959 = vld [vmem:[%s8 + $0x198] sm:$0xff]
        %v2960 = vld [vmem:[%s8 + $0x1a0] sm:$0xff]
        %v2961 = vld [vmem:[%s8 + $0x1a8] sm:$0xff]
        %v2962 = vld [vmem:[%s8 + $0x1b0] sm:$0xff]
        %v2963 = vld [vmem:[%s8 + $0x1b8] sm:$0xff]
        %v2964 = vld [vmem:[%s8 + $0x1c0] sm:$0xff]
        %v2965 = vld [vmem:[%s8 + $0x1c8] sm:$0xff]
        %v2966 = vld [vmem:[%s8 + $0x1d0] sm:$0xff]
        %v2967 = vld [vmem:[%s8 + $0x1d8] sm:$0xff]
        %v2968 = vld [vmem:[%s8 + $0x1e0] sm:$0xff]
        %v2969 = vld [vmem:[%s8 + $0x1e8] sm:$0xff]
        %v2970 = vld [vmem:[%s8 + $0x1f0] sm:$0xff]
        %v2971 = vld [vmem:[%s8 + $0x1f8] sm:$0xff]
        %v2972 = vld [vmem:[%s8 + $0x200] sm:$0xff]
        %v2973 = vld [vmem:[%s8 + $0x208] sm:$0xff]
        %v2974 = vld [vmem:[%s8 + $0x210] sm:$0xff]
        %v2975 = vld [vmem:[%s8 + $0x218] sm:$0xff]
        %v2976 = vld [vmem:[%s8 + $0x220] sm:$0xff]
        %v2977 = vld [vmem:[%s8 + $0x228] sm:$0xff]
        %v2978 = vld [vmem:[%s8 + $0x230] sm:$0xff]
        %v2979 = vld [vmem:[%s8 + $0x238] sm:$0xff]
        %v2980 = vld [vmem:[%s8 + $0x240] sm:$0xff]
        %v2981 = vld [vmem:[%s8 + $0x248] sm:$0xff]
        %v2982 = vld [vmem:[%s8 + $0x250] sm:$0xff]
        %v2983 = vld [vmem:[%s8 + $0x258] sm:$0xff]
        %v2984 = vld [vmem:[%s8 + $0x260] sm:$0xff]
        %v2985 = vld [vmem:[%s8 + $0x268] sm:$0xff]
        %v2986 = vld [vmem:[%s8 + $0x270] sm:$0xff]
        %v2987 = vld [vmem:[%s8 + $0x278] sm:$0xff]
        %v2988 = vld [vmem:[%s8 + $0x280] sm:$0xff]
        %v2989 = vld [vmem:[%s8 + $0x288] sm:$0xff]
        %v2990 = vld [vmem:[%s8 + $0x290] sm:$0xff]
        %v2991 = vld [vmem:[%s8 + $0x298] sm:$0xff]
        %v2992 = vld [vmem:[%s8 + $0x2a0] sm:$0xff]
        %v2993 = vld [vmem:[%s8 + $0x2a8] sm:$0xff]
        %v2994 = vld [vmem:[%s8 + $0x2b0] sm:$0xff]
        %v2995 = vld [vmem:[%s8 + $0x2b8] sm:$0xff]
        %v2996 = vld [vmem:[%s8 + $0x2c0] sm:$0xff]
        %v2997 = vld [vmem:[%s8 + $0x2c8] sm:$0xff]
        %v2998 = vld [vmem:[%s8 + $0x2d0] sm:$0xff]
        %v2999 = vld [vmem:[%s8 + $0x2d8] sm:$0xff]
        %v3000 = vld [vmem:[%s8 + $0x2e0] sm:$0xff]
        %v3001 = vld [vmem:[%s8 + $0x2e8] sm:$0xff]
        %v3002 = vld [vmem:[%s8 + $0x2f0] sm:$0xff]
        %v3003 = vld [vmem:[%s8 + $0x2f8] sm:$0xff]
        %v3004 = vld [vmem:[%s8 + $0x300] sm:$0xff]
        %v3005 = vld [vmem:[%s8 + $0x308] sm:$0xff]
        %v3006 = vld [vmem:[%s8 + $0x310] sm:$0xff]
        %v3007 = vld [vmem:[%s8 + $0x318] sm:$0xff]
        %v3008 = vld [vmem:[%s8 + $0x320] sm:$0xff]
        %v3009 = vld [vmem:[%s8 + $0x328] sm:$0xff]
        %v3010 = vld [vmem:[%s8 + $0x330] sm:$0xff]
        %v3011 = vld [vmem:[%s8 + $0x338] sm:$0xff]
        %vm3012 = vcmask 261120
        %v3014 = vsel %vm3012, %v2907, 0
        %3016 = vmatprep.subr.mxu0 %v2909
        %3017 = vmatpush1.msra.mxu0 %v2908
        %3018 = vmatprep.subr.mxu0 %v2911
        %3019 = vmatpush1.msra.mxu0 %v2910
        %3020 = vmatprep.subr.mxu0 %v2913
        %3021 = vmatpush1.msra.mxu0 %v2912
        %3022 = vmatprep.subr.mxu0 %v2915
        %3023 = vmatpush1.msra.mxu0 %v2914
        %3024 = vmatprep.subr.mxu0 %v2917
        %3025 = vmatpush1.msra.mxu0 %v2916
        %3026 = vmatprep.subr.mxu0 %v2919
        %3027 = vmatpush1.msra.mxu0 %v2918
        %3028 = vmatprep.subr.mxu0 %v2921
        %3029 = vmatpush1.msra.mxu0 %v2920
        %3030 = vmatprep.subr.mxu0 %v2923
        %3031 = vmatpush1.msra.mxu0 %v2922
        %3032 = vmatprep.subr.mxu0 %v2925
        %3033 = vmatpush1.msra.mxu0 %v2924
        %3034 = vmatprep.subr.mxu0 %v2927
        %3035 = vmatpush1.msra.mxu0 %v2926
        %3036 = vmatprep.subr.mxu0 %v2929
        %3037 = vmatpush1.msra.mxu0 %v2928
        %3038 = vmatprep.subr.mxu0 %v2931
        %3039 = vmatpush1.msra.mxu0 %v2930
        %3040 = vmatprep.subr.mxu0 %v2933
        %3041 = vmatpush1.msra.mxu0 %v2932
        %3042 = vmatprep.subr.mxu0 %v2935
        %3043 = vmatpush1.msra.mxu0 %v2934
        %3044 = vmatprep.subr.mxu0 %v2937
        %3045 = vmatpush1.msra.mxu0 %v2936
        %3046 = vmatprep.subr.mxu0 %v2939
        %3047 = vmatpush1.msra.mxu0 %v2938
        %3048 = vmatprep.subr.mxu0 %v2941
        %3049 = vmatpush1.msra.mxu0 %v2940
        %3050 = vmatprep.subr.mxu0 %v2943
        %3051 = vmatpush1.msra.mxu0 %v2942
        %3052 = vmatprep.subr.mxu0 %v2945
        %3053 = vmatpush1.msra.mxu0 %v2944
        %3054 = vmatprep.subr.mxu0 %v2947
        %3055 = vmatpush1.msra.mxu0 %v2946
        %3056 = vmatprep.subr.mxu0 %v2949
        %3057 = vmatpush1.msra.mxu0 %v2948
        %3058 = vmatprep.subr.mxu0 %v2951
        %3059 = vmatpush1.msra.mxu0 %v2950
        %3060 = vmatprep.subr.mxu0 %v2953
        %3061 = vmatpush1.msra.mxu0 %v2952
        %3062 = vmatprep.subr.mxu0 %v2955
        %3063 = vmatpush1.msra.mxu0 %v2954
        %3064 = vmatprep.subr.mxu0 %v2957
        %3065 = vmatpush1.msra.mxu0 %v2956
        %3066 = vmatprep.subr.mxu0 %v2959
        %3067 = vmatpush1.msra.mxu0 %v2958
        %3068 = vmatprep.subr.mxu0 %v2961
        %3069 = vmatpush1.msra.mxu0 %v2960
        %3070 = vmatprep.subr.mxu0 %v2963
        %3071 = vmatpush1.msra.mxu0 %v2962
        %3072 = vmatprep.subr.mxu0 %v2965
        %3073 = vmatpush1.msra.mxu0 %v2964
        %3074 = vmatprep.subr.mxu0 %v2967
        %3075 = vmatpush1.msra.mxu0 %v2966
        %3076 = vmatprep.subr.mxu0 %v2969
        %3077 = vmatpush1.msra.mxu0 %v2968
        %3078 = vmatprep.subr.mxu0 %v2971
        %3079 = vmatpush1.msra.mxu0 %v2970
        %3080 = vmatprep.mubr.f32.mxu0 %v2905
        %3081 = vmatmul.mubr.f32.gmra.mrb[0].mxu0 %v2904
        %v3082 = vpop.f32.mrb[0].mxu0
        %v3083 = vadd.f32 0.0, %v3082
        %v3084 = vpop.f32.mrb[0].mxu0
        %v3085 = vadd.f32 0.0, %v3084
        %3086 = vdwg.mxu0
        %3087 = vmatprep.subr.mxu0 %v2973
        %3088 = vmatpush1.msra.mxu0 %v2972
        %3089 = vmatprep.subr.mxu0 %v2975
        %3090 = vmatpush1.msra.mxu0 %v2974
        %3091 = vmatprep.subr.mxu0 %v2977
        %3092 = vmatpush1.msra.mxu0 %v2976
        %3093 = vmatprep.subr.mxu0 %v2979
        %3094 = vmatpush1.msra.mxu0 %v2978
        %3095 = vmatprep.subr.mxu0 %v2981
        %3096 = vmatpush1.msra.mxu0 %v2980
        %3097 = vmatprep.subr.mxu0 %v2983
        %3098 = vmatpush1.msra.mxu0 %v2982
        %3099 = vmatprep.subr.mxu0 %v2985
        %3100 = vmatpush1.msra.mxu0 %v2984
        %3101 = vmatprep.subr.mxu0 %v2987
        %3102 = vmatpush1.msra.mxu0 %v2986
        %3103 = vmatprep.subr.mxu0 %v2989
        %3104 = vmatpush1.msra.mxu0 %v2988
        %3105 = vmatprep.subr.mxu0 %v2991
        %3106 = vmatpush1.msra.mxu0 %v2990
        %3107 = vmatprep.subr.mxu0 %v2993
        %3108 = vmatpush1.msra.mxu0 %v2992
        %3109 = vmatprep.subr.mxu0 %v2995
        %3110 = vmatpush1.msra.mxu0 %v2994
        %3111 = vmatprep.subr.mxu0 %v2997
        %3112 = vmatpush1.msra.mxu0 %v2996
        %3113 = vmatprep.subr.mxu0 %v2999
        %3114 = vmatpush1.msra.mxu0 %v2998
        %3115 = vmatprep.subr.mxu0 %v3001
        %3116 = vmatpush1.msra.mxu0 %v3000
        %3117 = vmatprep.subr.mxu0 %v3003
        %3118 = vmatpush1.msra.mxu0 %v3002
        %3119 = vmatprep.subr.mxu0 %v3005
        %3120 = vmatpush1.msra.mxu0 %v3004
        %3121 = vmatprep.subr.mxu0 %v3007
        %3122 = vmatpush1.msra.mxu0 %v3006
        %3123 = vmatprep.subr.mxu0 %v3009
        %3124 = vmatpush1.msra.mxu0 %v3008
        %3125 = vmatprep.subr.mxu0 %v3011
        %3126 = vmatpush1.msra.mxu0 %v3010
        %3127 = vmatprep.subr.mxu0 0.0
        %3128 = vmatpush1.msra.mxu0 0.0
        %3129 = vmatprep.subr.mxu0 0.0
        %3130 = vmatpush1.msra.mxu0 0.0
        %3131 = vmatprep.subr.mxu0 0.0
        %3132 = vmatpush1.msra.mxu0 0.0
        %3133 = vmatprep.subr.mxu0 0.0
        %3134 = vmatpush1.msra.mxu0 0.0
        %3135 = vmatprep.subr.mxu0 0.0
        %3136 = vmatpush1.msra.mxu0 0.0
        %3137 = vmatprep.subr.mxu0 0.0
        %3138 = vmatpush1.msra.mxu0 0.0
        %3139 = vmatprep.subr.mxu0 0.0
        %3140 = vmatpush1.msra.mxu0 0.0
        %3141 = vmatprep.subr.mxu0 0.0
        %3142 = vmatpush1.msra.mxu0 0.0
        %3143 = vmatprep.subr.mxu0 0.0
        %3144 = vmatpush1.msra.mxu0 0.0
        %3145 = vmatprep.subr.mxu0 0.0
        %3146 = vmatpush1.msra.mxu0 0.0
        %3147 = vmatprep.subr.mxu0 0.0
        %3148 = vmatpush1.msra.mxu0 0.0
        %3149 = vmatprep.subr.mxu0 0.0
        %3150 = vmatpush1.msra.mxu0 0.0
        %3151 = vmatprep.mubr.f32.mxu0 %v3014
        %3152 = vmatmul.mubr.f32.gmra.mrb[0].mxu0 %v2906
        %v3153 = vpop.f32.mrb[0].mxu0
        %v3154 = vadd.f32 %v3083, %v3153
        %v3155 = vpop.f32.mrb[0].mxu0
        %v3156 = vadd.f32 %v3085, %v3155
        %3157 = vdwg.mxu0
        %s3158 = scalar_lea.vmem %s8, 832
        %v3159 = vld [vmem:[%s3158] sm:$0xff]
        %v3160 = vld [vmem:[%s3158 + $0x8] sm:$0xff]
        %v3161 = vld [vmem:[%s3158 + $0x10] sm:$0xff]
        %v3162 = vld [vmem:[%s3158 + $0x18] sm:$0xff]
        %v3163 = vld [vmem:[%s3158 + $0x20] sm:$0xff]
        %v3164 = vld [vmem:[%s3158 + $0x28] sm:$0xff]
        %v3165 = vld [vmem:[%s3158 + $0x30] sm:$0xff]
        %v3166 = vld [vmem:[%s3158 + $0x38] sm:$0xff]
        %v3167 = vld [vmem:[%s3158 + $0x40] sm:$0xff]
        %v3168 = vld [vmem:[%s3158 + $0x48] sm:$0xff]
        %v3169 = vld [vmem:[%s3158 + $0x50] sm:$0xff]
        %v3170 = vld [vmem:[%s3158 + $0x58] sm:$0xff]
        %v3171 = vld [vmem:[%s3158 + $0x60] sm:$0xff]
        %v3172 = vld [vmem:[%s3158 + $0x68] sm:$0xff]
        %v3173 = vld [vmem:[%s3158 + $0x70] sm:$0xff]
        %v3174 = vld [vmem:[%s3158 + $0x78] sm:$0xff]
        %v3175 = vld [vmem:[%s3158 + $0x80] sm:$0xff]
        %v3176 = vld [vmem:[%s3158 + $0x88] sm:$0xff]
        %v3177 = vld [vmem:[%s3158 + $0x90] sm:$0xff]
        %v3178 = vld [vmem:[%s3158 + $0x98] sm:$0xff]
        %v3179 = vld [vmem:[%s3158 + $0xa0] sm:$0xff]
        %v3180 = vld [vmem:[%s3158 + $0xa8] sm:$0xff]
        %v3181 = vld [vmem:[%s3158 + $0xb0] sm:$0xff]
        %v3182 = vld [vmem:[%s3158 + $0xb8] sm:$0xff]
        %v3183 = vld [vmem:[%s3158 + $0xc0] sm:$0xff]
        %v3184 = vld [vmem:[%s3158 + $0xc8] sm:$0xff]
        %v3185 = vld [vmem:[%s3158 + $0xd0] sm:$0xff]
        %v3186 = vld [vmem:[%s3158 + $0xd8] sm:$0xff]
        %v3187 = vld [vmem:[%s3158 + $0xe0] sm:$0xff]
        %v3188 = vld [vmem:[%s3158 + $0xe8] sm:$0xff]
        %v3189 = vld [vmem:[%s3158 + $0xf0] sm:$0xff]
        %v3190 = vld [vmem:[%s3158 + $0xf8] sm:$0xff]
        %v3191 = vld [vmem:[%s3158 + $0x100] sm:$0xff]
        %v3192 = vld [vmem:[%s3158 + $0x108] sm:$0xff]
        %v3193 = vld [vmem:[%s3158 + $0x110] sm:$0xff]
        %v3194 = vld [vmem:[%s3158 + $0x118] sm:$0xff]
        %v3195 = vld [vmem:[%s3158 + $0x120] sm:$0xff]
        %v3196 = vld [vmem:[%s3158 + $0x128] sm:$0xff]
        %v3197 = vld [vmem:[%s3158 + $0x130] sm:$0xff]
        %v3198 = vld [vmem:[%s3158 + $0x138] sm:$0xff]
        %v3199 = vld [vmem:[%s3158 + $0x140] sm:$0xff]
        %v3200 = vld [vmem:[%s3158 + $0x148] sm:$0xff]
        %v3201 = vld [vmem:[%s3158 + $0x150] sm:$0xff]
        %v3202 = vld [vmem:[%s3158 + $0x158] sm:$0xff]
        %v3203 = vld [vmem:[%s3158 + $0x160] sm:$0xff]
        %v3204 = vld [vmem:[%s3158 + $0x168] sm:$0xff]
        %v3205 = vld [vmem:[%s3158 + $0x170] sm:$0xff]
        %v3206 = vld [vmem:[%s3158 + $0x178] sm:$0xff]
        %v3207 = vld [vmem:[%s3158 + $0x180] sm:$0xff]
        %v3208 = vld [vmem:[%s3158 + $0x188] sm:$0xff]
        %v3209 = vld [vmem:[%s3158 + $0x190] sm:$0xff]
        %v3210 = vld [vmem:[%s3158 + $0x198] sm:$0xff]
        %v3211 = vld [vmem:[%s3158 + $0x1a0] sm:$0xff]
        %v3212 = vld [vmem:[%s3158 + $0x1a8] sm:$0xff]
        %v3213 = vld [vmem:[%s3158 + $0x1b0] sm:$0xff]
        %v3214 = vld [vmem:[%s3158 + $0x1b8] sm:$0xff]
        %v3215 = vld [vmem:[%s3158 + $0x1c0] sm:$0xff]
        %v3216 = vld [vmem:[%s3158 + $0x1c8] sm:$0xff]
        %v3217 = vld [vmem:[%s3158 + $0x1d0] sm:$0xff]
        %v3218 = vld [vmem:[%s3158 + $0x1d8] sm:$0xff]
        %v3219 = vld [vmem:[%s3158 + $0x1e0] sm:$0xff]
        %v3220 = vld [vmem:[%s3158 + $0x1e8] sm:$0xff]
        %v3221 = vld [vmem:[%s3158 + $0x1f0] sm:$0xff]
        %v3222 = vld [vmem:[%s3158 + $0x1f8] sm:$0xff]
        %v3223 = vld [vmem:[%s3158 + $0x200] sm:$0xff]
        %v3224 = vld [vmem:[%s3158 + $0x208] sm:$0xff]
        %v3225 = vld [vmem:[%s3158 + $0x210] sm:$0xff]
        %v3226 = vld [vmem:[%s3158 + $0x218] sm:$0xff]
        %v3227 = vld [vmem:[%s3158 + $0x220] sm:$0xff]
        %v3228 = vld [vmem:[%s3158 + $0x228] sm:$0xff]
        %v3229 = vld [vmem:[%s3158 + $0x230] sm:$0xff]
        %v3230 = vld [vmem:[%s3158 + $0x238] sm:$0xff]
        %v3231 = vld [vmem:[%s3158 + $0x240] sm:$0xff]
        %v3232 = vld [vmem:[%s3158 + $0x248] sm:$0xff]
        %v3233 = vld [vmem:[%s3158 + $0x250] sm:$0xff]
        %v3234 = vld [vmem:[%s3158 + $0x258] sm:$0xff]
        %v3235 = vld [vmem:[%s3158 + $0x260] sm:$0xff]
        %v3236 = vld [vmem:[%s3158 + $0x268] sm:$0xff]
        %v3237 = vld [vmem:[%s3158 + $0x270] sm:$0xff]
        %v3238 = vld [vmem:[%s3158 + $0x278] sm:$0xff]
        %v3239 = vld [vmem:[%s3158 + $0x280] sm:$0xff]
        %v3240 = vld [vmem:[%s3158 + $0x288] sm:$0xff]
        %v3241 = vld [vmem:[%s3158 + $0x290] sm:$0xff]
        %v3242 = vld [vmem:[%s3158 + $0x298] sm:$0xff]
        %v3243 = vld [vmem:[%s3158 + $0x2a0] sm:$0xff]
        %v3244 = vld [vmem:[%s3158 + $0x2a8] sm:$0xff]
        %v3245 = vld [vmem:[%s3158 + $0x2b0] sm:$0xff]
        %v3246 = vld [vmem:[%s3158 + $0x2b8] sm:$0xff]
        %v3247 = vld [vmem:[%s3158 + $0x2c0] sm:$0xff]
        %v3248 = vld [vmem:[%s3158 + $0x2c8] sm:$0xff]
        %v3249 = vld [vmem:[%s3158 + $0x2d0] sm:$0xff]
        %v3250 = vld [vmem:[%s3158 + $0x2d8] sm:$0xff]
        %v3251 = vld [vmem:[%s3158 + $0x2e0] sm:$0xff]
        %v3252 = vld [vmem:[%s3158 + $0x2e8] sm:$0xff]
        %v3253 = vld [vmem:[%s3158 + $0x2f0] sm:$0xff]
        %v3254 = vld [vmem:[%s3158 + $0x2f8] sm:$0xff]
        %v3255 = vld [vmem:[%s3158 + $0x300] sm:$0xff]
        %v3256 = vld [vmem:[%s3158 + $0x308] sm:$0xff]
        %v3257 = vld [vmem:[%s3158 + $0x310] sm:$0xff]
        %v3258 = vld [vmem:[%s3158 + $0x318] sm:$0xff]
        %v3259 = vld [vmem:[%s3158 + $0x320] sm:$0xff]
        %v3260 = vld [vmem:[%s3158 + $0x328] sm:$0xff]
        %v3261 = vld [vmem:[%s3158 + $0x330] sm:$0xff]
        %v3262 = vld [vmem:[%s3158 + $0x338] sm:$0xff]
        %3263 = vmatprep.subr.mxu0 %v3160
        %3264 = vmatpush1.msra.mxu0 %v3159
        %3265 = vmatprep.subr.mxu0 %v3162
        %3266 = vmatpush1.msra.mxu0 %v3161
        %3267 = vmatprep.subr.mxu0 %v3164
        %3268 = vmatpush1.msra.mxu0 %v3163
        %3269 = vmatprep.subr.mxu0 %v3166
        %3270 = vmatpush1.msra.mxu0 %v3165
        %3271 = vmatprep.subr.mxu0 %v3168
        %3272 = vmatpush1.msra.mxu0 %v3167
        %3273 = vmatprep.subr.mxu0 %v3170
        %3274 = vmatpush1.msra.mxu0 %v3169
        %3275 = vmatprep.subr.mxu0 %v3172
        %3276 = vmatpush1.msra.mxu0 %v3171
        %3277 = vmatprep.subr.mxu0 %v3174
        %3278 = vmatpush1.msra.mxu0 %v3173
        %3279 = vmatprep.subr.mxu0 %v3176
        %3280 = vmatpush1.msra.mxu0 %v3175
        %3281 = vmatprep.subr.mxu0 %v3178
        %3282 = vmatpush1.msra.mxu0 %v3177
        %3283 = vmatprep.subr.mxu0 %v3180
        %3284 = vmatpush1.msra.mxu0 %v3179
        %3285 = vmatprep.subr.mxu0 %v3182
        %3286 = vmatpush1.msra.mxu0 %v3181
        %3287 = vmatprep.subr.mxu0 %v3184
        %3288 = vmatpush1.msra.mxu0 %v3183
        %3289 = vmatprep.subr.mxu0 %v3186
        %3290 = vmatpush1.msra.mxu0 %v3185
        %3291 = vmatprep.subr.mxu0 %v3188
        %3292 = vmatpush1.msra.mxu0 %v3187
        %3293 = vmatprep.subr.mxu0 %v3190
        %3294 = vmatpush1.msra.mxu0 %v3189
        %3295 = vmatprep.subr.mxu0 %v3192
        %3296 = vmatpush1.msra.mxu0 %v3191
        %3297 = vmatprep.subr.mxu0 %v3194
        %3298 = vmatpush1.msra.mxu0 %v3193
        %3299 = vmatprep.subr.mxu0 %v3196
        %3300 = vmatpush1.msra.mxu0 %v3195
        %3301 = vmatprep.subr.mxu0 %v3198
        %3302 = vmatpush1.msra.mxu0 %v3197
        %3303 = vmatprep.subr.mxu0 %v3200
        %3304 = vmatpush1.msra.mxu0 %v3199
        %3305 = vmatprep.subr.mxu0 %v3202
        %3306 = vmatpush1.msra.mxu0 %v3201
        %3307 = vmatprep.subr.mxu0 %v3204
        %3308 = vmatpush1.msra.mxu0 %v3203
        %3309 = vmatprep.subr.mxu0 %v3206
        %3310 = vmatpush1.msra.mxu0 %v3205
        %3311 = vmatprep.subr.mxu0 %v3208
        %3312 = vmatpush1.msra.mxu0 %v3207
        %3313 = vmatprep.subr.mxu0 %v3210
        %3314 = vmatpush1.msra.mxu0 %v3209
        %3315 = vmatprep.subr.mxu0 %v3212
        %3316 = vmatpush1.msra.mxu0 %v3211
        %3317 = vmatprep.subr.mxu0 %v3214
        %3318 = vmatpush1.msra.mxu0 %v3213
        %3319 = vmatprep.subr.mxu0 %v3216
        %3320 = vmatpush1.msra.mxu0 %v3215
        %3321 = vmatprep.subr.mxu0 %v3218
        %3322 = vmatpush1.msra.mxu0 %v3217
        %3323 = vmatprep.subr.mxu0 %v3220
        %3324 = vmatpush1.msra.mxu0 %v3219
        %3325 = vmatprep.subr.mxu0 %v3222
        %3326 = vmatpush1.msra.mxu0 %v3221
        %3327 = vmatprep.mubr.f32.mxu0 %v2905
        %3328 = vmatmul.mubr.f32.gmra.mrb[0].mxu0 %v2904
        %v3329 = vpop.f32.mrb[0].mxu0
        %v3330 = vadd.f32 0.0, %v3329
        %v3331 = vpop.f32.mrb[0].mxu0
        %v3332 = vadd.f32 0.0, %v3331
        %3333 = vdwg.mxu0
        %3334 = vmatprep.subr.mxu0 %v3224
        %3335 = vmatpush1.msra.mxu0 %v3223
        %3336 = vmatprep.subr.mxu0 %v3226
        %3337 = vmatpush1.msra.mxu0 %v3225
        %3338 = vmatprep.subr.mxu0 %v3228
        %3339 = vmatpush1.msra.mxu0 %v3227
        %3340 = vmatprep.subr.mxu0 %v3230
        %3341 = vmatpush1.msra.mxu0 %v3229
        %3342 = vmatprep.subr.mxu0 %v3232
        %3343 = vmatpush1.msra.mxu0 %v3231
        %3344 = vmatprep.subr.mxu0 %v3234
        %3345 = vmatpush1.msra.mxu0 %v3233
        %3346 = vmatprep.subr.mxu0 %v3236
        %3347 = vmatpush1.msra.mxu0 %v3235
        %3348 = vmatprep.subr.mxu0 %v3238
        %3349 = vmatpush1.msra.mxu0 %v3237
        %3350 = vmatprep.subr.mxu0 %v3240
        %3351 = vmatpush1.msra.mxu0 %v3239
        %3352 = vmatprep.subr.mxu0 %v3242
        %3353 = vmatpush1.msra.mxu0 %v3241
        %3354 = vmatprep.subr.mxu0 %v3244
        %3355 = vmatpush1.msra.mxu0 %v3243
        %3356 = vmatprep.subr.mxu0 %v3246
        %3357 = vmatpush1.msra.mxu0 %v3245
        %3358 = vmatprep.subr.mxu0 %v3248
        %3359 = vmatpush1.msra.mxu0 %v3247
        %3360 = vmatprep.subr.mxu0 %v3250
        %3361 = vmatpush1.msra.mxu0 %v3249
        %3362 = vmatprep.subr.mxu0 %v3252
        %3363 = vmatpush1.msra.mxu0 %v3251
        %3364 = vmatprep.subr.mxu0 %v3254
        %3365 = vmatpush1.msra.mxu0 %v3253
        %3366 = vmatprep.subr.mxu0 %v3256
        %3367 = vmatpush1.msra.mxu0 %v3255
        %3368 = vmatprep.subr.mxu0 %v3258
        %3369 = vmatpush1.msra.mxu0 %v3257
        %3370 = vmatprep.subr.mxu0 %v3260
        %3371 = vmatpush1.msra.mxu0 %v3259
        %3372 = vmatprep.subr.mxu0 %v3262
        %3373 = vmatpush1.msra.mxu0 %v3261
        %3374 = vmatprep.subr.mxu0 0.0
        %3375 = vmatpush1.msra.mxu0 0.0
        %3376 = vmatprep.subr.mxu0 0.0
        %3377 = vmatpush1.msra.mxu0 0.0
        %3378 = vmatprep.subr.mxu0 0.0
        %3379 = vmatpush1.msra.mxu0 0.0
        %3380 = vmatprep.subr.mxu0 0.0
        %3381 = vmatpush1.msra.mxu0 0.0
        %3382 = vmatprep.subr.mxu0 0.0
        %3383 = vmatpush1.msra.mxu0 0.0
        %3384 = vmatprep.subr.mxu0 0.0
        %3385 = vmatpush1.msra.mxu0 0.0
        %3386 = vmatprep.subr.mxu0 0.0
        %3387 = vmatpush1.msra.mxu0 0.0
        %3388 = vmatprep.subr.mxu0 0.0
        %3389 = vmatpush1.msra.mxu0 0.0
        %3390 = vmatprep.subr.mxu0 0.0
        %3391 = vmatpush1.msra.mxu0 0.0
        %3392 = vmatprep.subr.mxu0 0.0
        %3393 = vmatpush1.msra.mxu0 0.0
        %3394 = vmatprep.subr.mxu0 0.0
        %3395 = vmatpush1.msra.mxu0 0.0
        %3396 = vmatprep.subr.mxu0 0.0
        %3397 = vmatpush1.msra.mxu0 0.0
        %3398 = vmatprep.mubr.f32.mxu0 %v3014
        %3399 = vmatmul.mubr.f32.gmra.mrb[0].mxu0 %v2906
        %v3400 = vpop.f32.mrb[0].mxu0
        %v3401 = vadd.f32 %v3330, %v3400
        %v3402 = vpop.f32.mrb[0].mxu0
        %v3403 = vadd.f32 %v3332, %v3402
        %3404 = vdwg.mxu0
        %v3405 = vmax.f32 %v3154, %v3401
        %v3406 = vmax.f32 %v3156, %v3403
        %v3407 = vld [vmem:[%s9] sm:$0xff]
        %v3408 = vld [vmem:[%s9 + $0x8] sm:$0xff]
        %v3409 = vld [vmem:[%s9 + $0x10] sm:$0xff]
        %v3410 = vld [vmem:[%s9 + $0x18] sm:$0xff]
        %v3411 = vld [vmem:[%s9 + $0x20] sm:$0xff]
        %v3412 = vld [vmem:[%s9 + $0x28] sm:$0xff]
        %v3413 = vld [vmem:[%s9 + $0x30] sm:$0xff]
        %v3414 = vld [vmem:[%s9 + $0x38] sm:$0xff]
        %v3415 = vld [vmem:[%s9 + $0x40] sm:$0xff]
        %v3416 = vld [vmem:[%s9 + $0x48] sm:$0xff]
        %v3417 = vld [vmem:[%s9 + $0x50] sm:$0xff]
        %v3418 = vld [vmem:[%s9 + $0x58] sm:$0xff]
        %v3419 = vld [vmem:[%s9 + $0x60] sm:$0xff]
        %v3420 = vld [vmem:[%s9 + $0x68] sm:$0xff]
        %v3421 = vld [vmem:[%s9 + $0x70] sm:$0xff]
        %v3422 = vld [vmem:[%s9 + $0x78] sm:$0xff]
        %v3423 = vld [vmem:[%s9 + $0x80] sm:$0xff]
        %v3424 = vld [vmem:[%s9 + $0x88] sm:$0xff]
        %v3425 = vld [vmem:[%s9 + $0x90] sm:$0xff]
        %v3426 = vld [vmem:[%s9 + $0x98] sm:$0xff]
        %v3427 = vld [vmem:[%s9 + $0xa0] sm:$0xff]
        %v3428 = vld [vmem:[%s9 + $0xa8] sm:$0xff]
        %v3429 = vld [vmem:[%s9 + $0xb0] sm:$0xff]
        %v3430 = vld [vmem:[%s9 + $0xb8] sm:$0xff]
        %v3431 = vld [vmem:[%s9 + $0xc0] sm:$0xff]
        %v3432 = vld [vmem:[%s9 + $0xc8] sm:$0xff]
        %v3433 = vld [vmem:[%s9 + $0xd0] sm:$0xff]
        %v3434 = vld [vmem:[%s9 + $0xd8] sm:$0xff]
        %v3435 = vld [vmem:[%s9 + $0xe0] sm:$0xff]
        %v3436 = vld [vmem:[%s9 + $0xe8] sm:$0xff]
        %v3437 = vld [vmem:[%s9 + $0xf0] sm:$0xff]
        %v3438 = vld [vmem:[%s9 + $0xf8] sm:$0xff]
        %v3439 = vld [vmem:[%s9 + $0x100] sm:$0xff]
        %v3440 = vld [vmem:[%s9 + $0x108] sm:$0xff]
        %v3441 = vld [vmem:[%s9 + $0x110] sm:$0xff]
        %v3442 = vld [vmem:[%s9 + $0x118] sm:$0xff]
        %v3443 = vld [vmem:[%s9 + $0x120] sm:$0xff]
        %v3444 = vld [vmem:[%s9 + $0x128] sm:$0xff]
        %v3445 = vld [vmem:[%s9 + $0x130] sm:$0xff]
        %v3446 = vld [vmem:[%s9 + $0x138] sm:$0xff]
        %v3447 = vld [vmem:[%s9 + $0x140] sm:$0xff]
        %v3448 = vld [vmem:[%s9 + $0x148] sm:$0xff]
        %v3449 = vld [vmem:[%s9 + $0x150] sm:$0xff]
        %v3450 = vld [vmem:[%s9 + $0x158] sm:$0xff]
        %v3451 = vld [vmem:[%s9 + $0x160] sm:$0xff]
        %v3452 = vld [vmem:[%s9 + $0x168] sm:$0xff]
        %v3453 = vld [vmem:[%s9 + $0x170] sm:$0xff]
        %v3454 = vld [vmem:[%s9 + $0x178] sm:$0xff]
        %v3455 = vld [vmem:[%s9 + $0x180] sm:$0xff]
        %v3456 = vld [vmem:[%s9 + $0x188] sm:$0xff]
        %v3457 = vld [vmem:[%s9 + $0x190] sm:$0xff]
        %v3458 = vld [vmem:[%s9 + $0x198] sm:$0xff]
        %v3459 = vld [vmem:[%s9 + $0x1a0] sm:$0xff]
        %v3460 = vld [vmem:[%s9 + $0x1a8] sm:$0xff]
        %v3461 = vld [vmem:[%s9 + $0x1b0] sm:$0xff]
        %v3462 = vld [vmem:[%s9 + $0x1b8] sm:$0xff]
        %v3463 = vld [vmem:[%s9 + $0x1c0] sm:$0xff]
        %v3464 = vld [vmem:[%s9 + $0x1c8] sm:$0xff]
        %v3465 = vld [vmem:[%s9 + $0x1d0] sm:$0xff]
        %v3466 = vld [vmem:[%s9 + $0x1d8] sm:$0xff]
        %v3467 = vld [vmem:[%s9 + $0x1e0] sm:$0xff]
        %v3468 = vld [vmem:[%s9 + $0x1e8] sm:$0xff]
        %v3469 = vld [vmem:[%s9 + $0x1f0] sm:$0xff]
        %v3470 = vld [vmem:[%s9 + $0x1f8] sm:$0xff]
        %v3471 = vld [vmem:[%s9 + $0x200] sm:$0xff]
        %v3472 = vld [vmem:[%s9 + $0x208] sm:$0xff]
        %v3473 = vld [vmem:[%s9 + $0x210] sm:$0xff]
        %v3474 = vld [vmem:[%s9 + $0x218] sm:$0xff]
        %v3475 = vld [vmem:[%s9 + $0x220] sm:$0xff]
        %v3476 = vld [vmem:[%s9 + $0x228] sm:$0xff]
        %v3477 = vld [vmem:[%s9 + $0x230] sm:$0xff]
        %v3478 = vld [vmem:[%s9 + $0x238] sm:$0xff]
        %v3479 = vld [vmem:[%s10] sm:$0x7]
        %v3481 = vlaneseq
        %v3482 = vshrl.u32 %v3481, 7
        %v3483 = vsub.s32 0, %v3482
        %v3484 = vrot.slane %v3479, %v3483
        %v3485 = vlaneseq
        %v3486 = vshrl.u32 %v3485, 7
        %v3487 = vsub.s32 1, %v3486
        %v3488 = vrot.slane %v3479, %v3487
        %v3489 = vlaneseq
        %v3490 = vshrl.u32 %v3489, 7
        %v3491 = vsub.s32 2, %v3490
        %v3492 = vrot.slane %v3479, %v3491
        %vm3496 = vcmask 523264
        %v3498 = vsel %vm3496, %v3406, 0
        %3500 = vmatprep.subr.mxu0 %v3408
        %3501 = vmatpush1.msra.mxu0 %v3407
        %3502 = vmatprep.subr.mxu0 %v3411
        %3503 = vmatpush1.msra.mxu0 %v3410
        %3504 = vmatprep.subr.mxu0 %v3414
        %3505 = vmatpush1.msra.mxu0 %v3413
        %3506 = vmatprep.subr.mxu0 %v3417
        %3507 = vmatpush1.msra.mxu0 %v3416
        %3508 = vmatprep.subr.mxu0 %v3420
        %3509 = vmatpush1.msra.mxu0 %v3419
        %3510 = vmatprep.subr.mxu0 %v3423
        %3511 = vmatpush1.msra.mxu0 %v3422
        %3512 = vmatprep.subr.mxu0 %v3426
        %3513 = vmatpush1.msra.mxu0 %v3425
        %3514 = vmatprep.subr.mxu0 %v3429
        %3515 = vmatpush1.msra.mxu0 %v3428
        %3516 = vmatprep.subr.mxu0 %v3432
        %3517 = vmatpush1.msra.mxu0 %v3431
        %3518 = vmatprep.subr.mxu0 %v3435
        %3519 = vmatpush1.msra.mxu0 %v3434
        %3520 = vmatprep.subr.mxu0 %v3438
        %3521 = vmatpush1.msra.mxu0 %v3437
        %3522 = vmatprep.subr.mxu0 %v3441
        %3523 = vmatpush1.msra.mxu0 %v3440
        %3524 = vmatprep.subr.mxu0 %v3444
        %3525 = vmatpush1.msra.mxu0 %v3443
        %3526 = vmatprep.subr.mxu0 %v3447
        %3527 = vmatpush1.msra.mxu0 %v3446
        %3528 = vmatprep.subr.mxu0 %v3450
        %3529 = vmatpush1.msra.mxu0 %v3449
        %3530 = vmatprep.subr.mxu0 %v3453
        %3531 = vmatpush1.msra.mxu0 %v3452
        %3532 = vmatprep.subr.mxu0 %v3456
        %3533 = vmatpush1.msra.mxu0 %v3455
        %3534 = vmatprep.subr.mxu0 %v3459
        %3535 = vmatpush1.msra.mxu0 %v3458
        %3536 = vmatprep.subr.mxu0 %v3462
        %3537 = vmatpush1.msra.mxu0 %v3461
        %3538 = vmatprep.subr.mxu0 %v3465
        %3539 = vmatpush1.msra.mxu0 %v3464
        %3540 = vmatprep.subr.mxu0 %v3468
        %3541 = vmatpush1.msra.mxu0 %v3467
        %3542 = vmatprep.subr.mxu0 %v3471
        %3543 = vmatpush1.msra.mxu0 %v3470
        %3544 = vmatprep.subr.mxu0 %v3474
        %3545 = vmatpush1.msra.mxu0 %v3473
        %3546 = vmatprep.subr.mxu0 %v3477
        %3547 = vmatpush1.msra.mxu0 %v3476
        %3548 = vmatprep.subr.mxu0 0.0
        %3549 = vmatpush1.msra.mxu0 0.0
        %3550 = vmatprep.subr.mxu0 0.0
        %3551 = vmatpush1.msra.mxu0 0.0
        %3552 = vmatprep.subr.mxu0 0.0
        %3553 = vmatpush1.msra.mxu0 0.0
        %3554 = vmatprep.subr.mxu0 0.0
        %3555 = vmatpush1.msra.mxu0 0.0
        %3556 = vmatprep.subr.mxu0 0.0
        %3557 = vmatpush1.msra.mxu0 0.0
        %3558 = vmatprep.subr.mxu0 0.0
        %3559 = vmatpush1.msra.mxu0 0.0
        %3560 = vmatprep.subr.mxu0 0.0
        %3561 = vmatpush1.msra.mxu0 0.0
        %3562 = vmatprep.subr.mxu0 0.0
        %3563 = vmatpush1.msra.mxu0 0.0
        %3564 = vmatprep.mubr.f32.mxu0 %v3498
        %3565 = vmatmul.mubr.f32.gmra.mrb[0].mxu0 %v3405
        %v3566 = vpop.f32.mrb[0].mxu0
        %v3567 = vadd.f32 %v3484, %v3566
        %v3568 = vpop.f32.mrb[0].mxu0
        %v3569 = vadd.f32 %v3488, %v3568
        %3570 = vdwg.mxu0
        %3571 = vmatprep.subr.mxu0 0.0
        %3572 = vmatpush1.msra.mxu0 %v3409
        %3573 = vmatprep.subr.mxu0 0.0
        %3574 = vmatpush1.msra.mxu0 %v3412
        %3575 = vmatprep.subr.mxu0 0.0
        %3576 = vmatpush1.msra.mxu0 %v3415
        %3577 = vmatprep.subr.mxu0 0.0
        %3578 = vmatpush1.msra.mxu0 %v3418
        %3579 = vmatprep.subr.mxu0 0.0
        %3580 = vmatpush1.msra.mxu0 %v3421
        %3581 = vmatprep.subr.mxu0 0.0
        %3582 = vmatpush1.msra.mxu0 %v3424
        %3583 = vmatprep.subr.mxu0 0.0
        %3584 = vmatpush1.msra.mxu0 %v3427
        %3585 = vmatprep.subr.mxu0 0.0
        %3586 = vmatpush1.msra.mxu0 %v3430
        %3587 = vmatprep.subr.mxu0 0.0
        %3588 = vmatpush1.msra.mxu0 %v3433
        %3589 = vmatprep.subr.mxu0 0.0
        %3590 = vmatpush1.msra.mxu0 %v3436
        %3591 = vmatprep.subr.mxu0 0.0
        %3592 = vmatpush1.msra.mxu0 %v3439
        %3593 = vmatprep.subr.mxu0 0.0
        %3594 = vmatpush1.msra.mxu0 %v3442
        %3595 = vmatprep.subr.mxu0 0.0
        %3596 = vmatpush1.msra.mxu0 %v3445
        %3597 = vmatprep.subr.mxu0 0.0
        %3598 = vmatpush1.msra.mxu0 %v3448
        %3599 = vmatprep.subr.mxu0 0.0
        %3600 = vmatpush1.msra.mxu0 %v3451
        %3601 = vmatprep.subr.mxu0 0.0
        %3602 = vmatpush1.msra.mxu0 %v3454
        %3603 = vmatprep.subr.mxu0 0.0
        %3604 = vmatpush1.msra.mxu0 %v3457
        %3605 = vmatprep.subr.mxu0 0.0
        %3606 = vmatpush1.msra.mxu0 %v3460
        %3607 = vmatprep.subr.mxu0 0.0
        %3608 = vmatpush1.msra.mxu0 %v3463
        %3609 = vmatprep.subr.mxu0 0.0
        %3610 = vmatpush1.msra.mxu0 %v3466
        %3611 = vmatprep.subr.mxu0 0.0
        %3612 = vmatpush1.msra.mxu0 %v3469
        %3613 = vmatprep.subr.mxu0 0.0
        %3614 = vmatpush1.msra.mxu0 %v3472
        %3615 = vmatprep.subr.mxu0 0.0
        %3616 = vmatpush1.msra.mxu0 %v3475
        %3617 = vmatprep.subr.mxu0 0.0
        %3618 = vmatpush1.msra.mxu0 %v3478
        %3619 = vmatprep.subr.mxu0 0.0
        %3620 = vmatpush1.msra.mxu0 0.0
        %3621 = vmatprep.subr.mxu0 0.0
        %3622 = vmatpush1.msra.mxu0 0.0
        %3623 = vmatprep.subr.mxu0 0.0
        %3624 = vmatpush1.msra.mxu0 0.0
        %3625 = vmatprep.subr.mxu0 0.0
        %3626 = vmatpush1.msra.mxu0 0.0
        %3627 = vmatprep.subr.mxu0 0.0
        %3628 = vmatpush1.msra.mxu0 0.0
        %3629 = vmatprep.subr.mxu0 0.0
        %3630 = vmatpush1.msra.mxu0 0.0
        %3631 = vmatprep.subr.mxu0 0.0
        %3632 = vmatpush1.msra.mxu0 0.0
        %3633 = vmatprep.subr.mxu0 0.0
        %3634 = vmatpush1.msra.mxu0 0.0
        %3635 = vmatprep.mubr.f32.mxu0 %v3498
        %3636 = vmatmul.mubr.f32.gmra.mrb[0].mxu0 %v3405
        %v3637 = vpop.f32.mrb[0].mxu0
        %v3638 = vadd.f32 %v3492, %v3637
        %v3639 = vpop.f32.mrb[0].mxu0
        %3640 = vdwg.mxu0
        %v3641 = vmax.f32 %v3567, 0.0
        %v3642 = vmax.f32 %v3569, 0.0
        %v3643 = vmax.f32 %v3638, 0.0
        %v3644 = vld [vmem:[%s11] sm:$0xff]
        %v3645 = vld [vmem:[%s11 + $0x8] sm:$0xff]
        %v3646 = vld [vmem:[%s11 + $0x10] sm:$0xff]
        %v3647 = vld [vmem:[%s11 + $0x18] sm:$0xff]
        %v3648 = vld [vmem:[%s11 + $0x20] sm:$0xff]
        %v3649 = vld [vmem:[%s11 + $0x28] sm:$0xff]
        %v3650 = vld [vmem:[%s11 + $0x30] sm:$0xff]
        %v3651 = vld [vmem:[%s11 + $0x38] sm:$0xff]
        %v3652 = vld [vmem:[%s11 + $0x40] sm:$0xff]
        %v3653 = vld [vmem:[%s11 + $0x48] sm:$0xff]
        %v3654 = vld [vmem:[%s11 + $0x50] sm:$0xff]
        %v3655 = vld [vmem:[%s11 + $0x58] sm:$0xff]
        %v3656 = vld [vmem:[%s11 + $0x60] sm:$0xff]
        %v3657 = vld [vmem:[%s11 + $0x68] sm:$0xff]
        %v3658 = vld [vmem:[%s11 + $0x70] sm:$0xff]
        %v3659 = vld [vmem:[%s11 + $0x78] sm:$0xff]
        %v3660 = vld [vmem:[%s11 + $0x80] sm:$0xff]
        %v3661 = vld [vmem:[%s11 + $0x88] sm:$0xff]
        %v3662 = vld [vmem:[%s11 + $0x90] sm:$0xff]
        %v3663 = vld [vmem:[%s11 + $0x98] sm:$0xff]
        %v3664 = vld [vmem:[%s11 + $0xa0] sm:$0xff]
        %v3665 = vld [vmem:[%s11 + $0xa8] sm:$0xff]
        %v3666 = vld [vmem:[%s11 + $0xb0] sm:$0xff]
        %v3667 = vld [vmem:[%s11 + $0xb8] sm:$0xff]
        %v3668 = vld [vmem:[%s11 + $0xc0] sm:$0xff]
        %v3669 = vld [vmem:[%s11 + $0xc8] sm:$0xff]
        %v3670 = vld [vmem:[%s11 + $0xd0] sm:$0xff]
        %v3671 = vld [vmem:[%s11 + $0xd8] sm:$0xff]
        %v3672 = vld [vmem:[%s11 + $0xe0] sm:$0xff]
        %v3673 = vld [vmem:[%s11 + $0xe8] sm:$0xff]
        %v3674 = vld [vmem:[%s11 + $0xf0] sm:$0xff]
        %v3675 = vld [vmem:[%s11 + $0xf8] sm:$0xff]
        %v3676 = vld [vmem:[%s11 + $0x100] sm:$0xff]
        %v3677 = vld [vmem:[%s11 + $0x108] sm:$0xff]
        %v3678 = vld [vmem:[%s11 + $0x110] sm:$0xff]
        %v3679 = vld [vmem:[%s11 + $0x118] sm:$0xff]
        %v3680 = vld [vmem:[%s11 + $0x120] sm:$0xff]
        %v3681 = vld [vmem:[%s11 + $0x128] sm:$0xff]
        %v3682 = vld [vmem:[%s11 + $0x130] sm:$0xff]
        %v3683 = vld [vmem:[%s11 + $0x138] sm:$0xff]
        %v3684 = vld [vmem:[%s11 + $0x140] sm:$0xff]
        %v3685 = vld [vmem:[%s11 + $0x148] sm:$0xff]
        %v3686 = vld [vmem:[%s11 + $0x150] sm:$0xff]
        %v3687 = vld [vmem:[%s11 + $0x158] sm:$0xff]
        %v3688 = vld [vmem:[%s11 + $0x160] sm:$0xff]
        %v3689 = vld [vmem:[%s11 + $0x168] sm:$0xff]
        %v3690 = vld [vmem:[%s11 + $0x170] sm:$0xff]
        %v3691 = vld [vmem:[%s11 + $0x178] sm:$0xff]
        %s3692 = scalar_lea.vmem %s11, 384
        %v3693 = vld [vmem:[%s3692] sm:$0xff]
        %v3694 = vld [vmem:[%s3692 + $0x8] sm:$0xff]
        %v3695 = vld [vmem:[%s3692 + $0x10] sm:$0xff]
        %v3696 = vld [vmem:[%s3692 + $0x18] sm:$0xff]
        %v3697 = vld [vmem:[%s3692 + $0x20] sm:$0xff]
        %v3698 = vld [vmem:[%s3692 + $0x28] sm:$0xff]
        %v3699 = vld [vmem:[%s3692 + $0x30] sm:$0xff]
        %v3700 = vld [vmem:[%s3692 + $0x38] sm:$0xff]
        %v3701 = vld [vmem:[%s3692 + $0x40] sm:$0xff]
        %v3702 = vld [vmem:[%s3692 + $0x48] sm:$0xff]
        %v3703 = vld [vmem:[%s3692 + $0x50] sm:$0xff]
        %v3704 = vld [vmem:[%s3692 + $0x58] sm:$0xff]
        %v3705 = vld [vmem:[%s3692 + $0x60] sm:$0xff]
        %v3706 = vld [vmem:[%s3692 + $0x68] sm:$0xff]
        %v3707 = vld [vmem:[%s3692 + $0x70] sm:$0xff]
        %v3708 = vld [vmem:[%s3692 + $0x78] sm:$0xff]
        %v3709 = vld [vmem:[%s3692 + $0x80] sm:$0xff]
        %v3710 = vld [vmem:[%s3692 + $0x88] sm:$0xff]
        %v3711 = vld [vmem:[%s3692 + $0x90] sm:$0xff]
        %v3712 = vld [vmem:[%s3692 + $0x98] sm:$0xff]
        %v3713 = vld [vmem:[%s3692 + $0xa0] sm:$0xff]
        %v3714 = vld [vmem:[%s3692 + $0xa8] sm:$0xff]
        %v3715 = vld [vmem:[%s3692 + $0xb0] sm:$0xff]
        %v3716 = vld [vmem:[%s3692 + $0xb8] sm:$0xff]
        %v3717 = vld [vmem:[%s3692 + $0xc0] sm:$0xff]
        %v3718 = vld [vmem:[%s3692 + $0xc8] sm:$0xff]
        %v3719 = vld [vmem:[%s3692 + $0xd0] sm:$0xff]
        %v3720 = vld [vmem:[%s3692 + $0xd8] sm:$0xff]
        %v3721 = vld [vmem:[%s3692 + $0xe0] sm:$0xff]
        %v3722 = vld [vmem:[%s3692 + $0xe8] sm:$0xff]
        %v3723 = vld [vmem:[%s3692 + $0xf0] sm:$0xff]
        %v3724 = vld [vmem:[%s3692 + $0xf8] sm:$0xff]
        %v3725 = vld [vmem:[%s3692 + $0x100] sm:$0xff]
        %v3726 = vld [vmem:[%s3692 + $0x108] sm:$0xff]
        %v3727 = vld [vmem:[%s3692 + $0x110] sm:$0xff]
        %v3728 = vld [vmem:[%s3692 + $0x118] sm:$0xff]
        %v3729 = vld [vmem:[%s3692 + $0x120] sm:$0xff]
        %v3730 = vld [vmem:[%s3692 + $0x128] sm:$0xff]
        %v3731 = vld [vmem:[%s3692 + $0x130] sm:$0xff]
        %v3732 = vld [vmem:[%s3692 + $0x138] sm:$0xff]
        %v3733 = vld [vmem:[%s3692 + $0x140] sm:$0xff]
        %v3734 = vld [vmem:[%s3692 + $0x148] sm:$0xff]
        %v3735 = vld [vmem:[%s3692 + $0x150] sm:$0xff]
        %v3736 = vld [vmem:[%s3692 + $0x158] sm:$0xff]
        %v3737 = vld [vmem:[%s3692 + $0x160] sm:$0xff]
        %v3738 = vld [vmem:[%s3692 + $0x168] sm:$0xff]
        %v3739 = vld [vmem:[%s3692 + $0x170] sm:$0xff]
        %v3740 = vld [vmem:[%s3692 + $0x178] sm:$0xff]
        %v3744 = vrot.slane %v3641, 1
        %v3745 = vrot.slane %v3642, 1
        %v3746 = vrot.slane %v3643, 1
        %3750 = vmatprep.subr.mxu0 0.0
        %3751 = vmatpush1.msra.mxu0 %v3693
        %3752 = vmatprep.subr.mxu0 0.0
        %3753 = vmatpush1.msra.mxu0 %v3694
        %3754 = vmatprep.subr.mxu0 0.0
        %3755 = vmatpush1.msra.mxu0 %v3695
        %3756 = vmatprep.subr.mxu0 0.0
        %3757 = vmatpush1.msra.mxu0 %v3696
        %3758 = vmatprep.subr.mxu0 0.0
        %3759 = vmatpush1.msra.mxu0 %v3697
        %3760 = vmatprep.subr.mxu0 0.0
        %3761 = vmatpush1.msra.mxu0 %v3698
        %3762 = vmatprep.subr.mxu0 0.0
        %3763 = vmatpush1.msra.mxu0 %v3699
        %3764 = vmatprep.subr.mxu0 0.0
        %3765 = vmatpush1.msra.mxu0 %v3700
        %3766 = vmatprep.subr.mxu0 0.0
        %3767 = vmatpush1.msra.mxu0 %v3701
        %3768 = vmatprep.subr.mxu0 0.0
        %3769 = vmatpush1.msra.mxu0 %v3702
        %3770 = vmatprep.subr.mxu0 0.0
        %3771 = vmatpush1.msra.mxu0 %v3703
        %3772 = vmatprep.subr.mxu0 0.0
        %3773 = vmatpush1.msra.mxu0 %v3704
        %3774 = vmatprep.subr.mxu0 0.0
        %3775 = vmatpush1.msra.mxu0 %v3705
        %3776 = vmatprep.subr.mxu0 0.0
        %3777 = vmatpush1.msra.mxu0 %v3706
        %3778 = vmatprep.subr.mxu0 0.0
        %3779 = vmatpush1.msra.mxu0 %v3707
        %3780 = vmatprep.subr.mxu0 0.0
        %3781 = vmatpush1.msra.mxu0 %v3708
        %3782 = vmatprep.subr.mxu0 0.0
        %3783 = vmatpush1.msra.mxu0 %v3709
        %3784 = vmatprep.subr.mxu0 0.0
        %3785 = vmatpush1.msra.mxu0 %v3710
        %3786 = vmatprep.subr.mxu0 0.0
        %3787 = vmatpush1.msra.mxu0 %v3711
        %3788 = vmatprep.subr.mxu0 0.0
        %3789 = vmatpush1.msra.mxu0 %v3712
        %3790 = vmatprep.subr.mxu0 0.0
        %3791 = vmatpush1.msra.mxu0 %v3713
        %3792 = vmatprep.subr.mxu0 0.0
        %3793 = vmatpush1.msra.mxu0 %v3714
        %3794 = vmatprep.subr.mxu0 0.0
        %3795 = vmatpush1.msra.mxu0 %v3715
        %3796 = vmatprep.subr.mxu0 0.0
        %3797 = vmatpush1.msra.mxu0 %v3716
        %3798 = vmatprep.subr.mxu0 0.0
        %3799 = vmatpush1.msra.mxu0 %v3717
        %3800 = vmatprep.subr.mxu0 0.0
        %3801 = vmatpush1.msra.mxu0 %v3718
        %3802 = vmatprep.subr.mxu0 0.0
        %3803 = vmatpush1.msra.mxu0 %v3719
        %3804 = vmatprep.subr.mxu0 0.0
        %3805 = vmatpush1.msra.mxu0 %v3720
        %3806 = vmatprep.subr.mxu0 0.0
        %3807 = vmatpush1.msra.mxu0 %v3721
        %3808 = vmatprep.subr.mxu0 0.0
        %3809 = vmatpush1.msra.mxu0 %v3722
        %3810 = vmatprep.subr.mxu0 0.0
        %3811 = vmatpush1.msra.mxu0 %v3723
        %3812 = vmatprep.subr.mxu0 0.0
        %3813 = vmatpush1.msra.mxu0 %v3724
        %3814 = vmatprep.mubr.f32.mxu0 %v3745
        %3815 = vmatmul.mubr.f32.gmra.mrb[0].mxu0 %v3744
        %v3816 = vpop.f32.mrb[0].mxu0
        %v3817 = vadd.f32 0.0, %v3816
        %v3818 = vpop.f32.mrb[0].mxu0
        %3819 = vdwg.mxu0
        %3820 = vmatprep.subr.mxu0 0.0
        %3821 = vmatpush1.msra.mxu0 %v3725
        %3822 = vmatprep.subr.mxu0 0.0
        %3823 = vmatpush1.msra.mxu0 %v3726
        %3824 = vmatprep.subr.mxu0 0.0
        %3825 = vmatpush1.msra.mxu0 %v3727
        %3826 = vmatprep.subr.mxu0 0.0
        %3827 = vmatpush1.msra.mxu0 %v3728
        %3828 = vmatprep.subr.mxu0 0.0
        %3829 = vmatpush1.msra.mxu0 %v3729
        %3830 = vmatprep.subr.mxu0 0.0
        %3831 = vmatpush1.msra.mxu0 %v3730
        %3832 = vmatprep.subr.mxu0 0.0
        %3833 = vmatpush1.msra.mxu0 %v3731
        %3834 = vmatprep.subr.mxu0 0.0
        %3835 = vmatpush1.msra.mxu0 %v3732
        %3836 = vmatprep.subr.mxu0 0.0
        %3837 = vmatpush1.msra.mxu0 %v3733
        %3838 = vmatprep.subr.mxu0 0.0
        %3839 = vmatpush1.msra.mxu0 %v3734
        %3840 = vmatprep.subr.mxu0 0.0
        %3841 = vmatpush1.msra.mxu0 %v3735
        %3842 = vmatprep.subr.mxu0 0.0
        %3843 = vmatpush1.msra.mxu0 %v3736
        %3844 = vmatprep.subr.mxu0 0.0
        %3845 = vmatpush1.msra.mxu0 %v3737
        %3846 = vmatprep.subr.mxu0 0.0
        %3847 = vmatpush1.msra.mxu0 %v3738
        %3848 = vmatprep.subr.mxu0 0.0
        %3849 = vmatpush1.msra.mxu0 %v3739
        %3850 = vmatprep.subr.mxu0 0.0
        %3851 = vmatpush1.msra.mxu0 %v3740
        %3852 = vmatprep.subr.mxu0 0.0
        %3853 = vmatpush1.msra.mxu0 0.0
        %3854 = vmatprep.subr.mxu0 0.0
        %3855 = vmatpush1.msra.mxu0 0.0
        %3856 = vmatprep.subr.mxu0 0.0
        %3857 = vmatpush1.msra.mxu0 0.0
        %3858 = vmatprep.subr.mxu0 0.0
        %3859 = vmatpush1.msra.mxu0 0.0
        %3860 = vmatprep.subr.mxu0 0.0
        %3861 = vmatpush1.msra.mxu0 0.0
        %3862 = vmatprep.subr.mxu0 0.0
        %3863 = vmatpush1.msra.mxu0 0.0
        %3864 = vmatprep.subr.mxu0 0.0
        %3865 = vmatpush1.msra.mxu0 0.0
        %3866 = vmatprep.subr.mxu0 0.0
        %3867 = vmatpush1.msra.mxu0 0.0
        %3868 = vmatprep.subr.mxu0 0.0
        %3869 = vmatpush1.msra.mxu0 0.0
        %3870 = vmatprep.subr.mxu0 0.0
        %3871 = vmatpush1.msra.mxu0 0.0
        %3872 = vmatprep.subr.mxu0 0.0
        %3873 = vmatpush1.msra.mxu0 0.0
        %3874 = vmatprep.subr.mxu0 0.0
        %3875 = vmatpush1.msra.mxu0 0.0
        %3876 = vmatprep.subr.mxu0 0.0
        %3877 = vmatpush1.msra.mxu0 0.0
        %3878 = vmatprep.subr.mxu0 0.0
        %3879 = vmatpush1.msra.mxu0 0.0
        %3880 = vmatprep.subr.mxu0 0.0
        %3881 = vmatpush1.msra.mxu0 0.0
        %3882 = vmatprep.subr.mxu0 0.0
        %3883 = vmatpush1.msra.mxu0 0.0
        %3884 = vmatprep.mubr.f32.mxu0 0.0
        %3885 = vmatmul.mubr.f32.gmra.mrb[0].mxu0 %v3746
        %v3886 = vpop.f32.mrb[0].mxu0
        %v3887 = vadd.f32 %v3817, %v3886
        %v3888 = vpop.f32.mrb[0].mxu0
        %3889 = vdwg.mxu0
        %3890 = vmatprep.subr.mxu0 0.0
        %3891 = vmatpush1.msra.mxu0 %v3644
        %3892 = vmatprep.subr.mxu0 0.0
        %3893 = vmatpush1.msra.mxu0 %v3645
        %3894 = vmatprep.subr.mxu0 0.0
        %3895 = vmatpush1.msra.mxu0 %v3646
        %3896 = vmatprep.subr.mxu0 0.0
        %3897 = vmatpush1.msra.mxu0 %v3647
        %3898 = vmatprep.subr.mxu0 0.0
        %3899 = vmatpush1.msra.mxu0 %v3648
        %3900 = vmatprep.subr.mxu0 0.0
        %3901 = vmatpush1.msra.mxu0 %v3649
        %3902 = vmatprep.subr.mxu0 0.0
        %3903 = vmatpush1.msra.mxu0 %v3650
        %3904 = vmatprep.subr.mxu0 0.0
        %3905 = vmatpush1.msra.mxu0 %v3651
        %3906 = vmatprep.subr.mxu0 0.0
        %3907 = vmatpush1.msra.mxu0 %v3652
        %3908 = vmatprep.subr.mxu0 0.0
        %3909 = vmatpush1.msra.mxu0 %v3653
        %3910 = vmatprep.subr.mxu0 0.0
        %3911 = vmatpush1.msra.mxu0 %v3654
        %3912 = vmatprep.subr.mxu0 0.0
        %3913 = vmatpush1.msra.mxu0 %v3655
        %3914 = vmatprep.subr.mxu0 0.0
        %3915 = vmatpush1.msra.mxu0 %v3656
        %3916 = vmatprep.subr.mxu0 0.0
        %3917 = vmatpush1.msra.mxu0 %v3657
        %3918 = vmatprep.subr.mxu0 0.0
        %3919 = vmatpush1.msra.mxu0 %v3658
        %3920 = vmatprep.subr.mxu0 0.0
        %3921 = vmatpush1.msra.mxu0 %v3659
        %3922 = vmatprep.subr.mxu0 0.0
        %3923 = vmatpush1.msra.mxu0 %v3660
        %3924 = vmatprep.subr.mxu0 0.0
        %3925 = vmatpush1.msra.mxu0 %v3661
        %3926 = vmatprep.subr.mxu0 0.0
        %3927 = vmatpush1.msra.mxu0 %v3662
        %3928 = vmatprep.subr.mxu0 0.0
        %3929 = vmatpush1.msra.mxu0 %v3663
        %3930 = vmatprep.subr.mxu0 0.0
        %3931 = vmatpush1.msra.mxu0 %v3664
        %3932 = vmatprep.subr.mxu0 0.0
        %3933 = vmatpush1.msra.mxu0 %v3665
        %3934 = vmatprep.subr.mxu0 0.0
        %3935 = vmatpush1.msra.mxu0 %v3666
        %3936 = vmatprep.subr.mxu0 0.0
        %3937 = vmatpush1.msra.mxu0 %v3667
        %3938 = vmatprep.subr.mxu0 0.0
        %3939 = vmatpush1.msra.mxu0 %v3668
        %3940 = vmatprep.subr.mxu0 0.0
        %3941 = vmatpush1.msra.mxu0 %v3669
        %3942 = vmatprep.subr.mxu0 0.0
        %3943 = vmatpush1.msra.mxu0 %v3670
        %3944 = vmatprep.subr.mxu0 0.0
        %3945 = vmatpush1.msra.mxu0 %v3671
        %3946 = vmatprep.subr.mxu0 0.0
        %3947 = vmatpush1.msra.mxu0 %v3672
        %3948 = vmatprep.subr.mxu0 0.0
        %3949 = vmatpush1.msra.mxu0 %v3673
        %3950 = vmatprep.subr.mxu0 0.0
        %3951 = vmatpush1.msra.mxu0 %v3674
        %3952 = vmatprep.subr.mxu0 0.0
        %3953 = vmatpush1.msra.mxu0 %v3675
        %3954 = vmatprep.mubr.f32.mxu0 %v3642
        %3955 = vmatmul.mubr.f32.gmra.mrb[0].mxu0 %v3641
        %v3956 = vpop.f32.mrb[0].mxu0
        %v3957 = vadd.f32 %v3887, %v3956
        %v3958 = vpop.f32.mrb[0].mxu0
        %3959 = vdwg.mxu0
        %3960 = vmatprep.subr.mxu0 0.0
        %3961 = vmatpush1.msra.mxu0 %v3676
        %3962 = vmatprep.subr.mxu0 0.0
        %3963 = vmatpush1.msra.mxu0 %v3677
        %3964 = vmatprep.subr.mxu0 0.0
        %3965 = vmatpush1.msra.mxu0 %v3678
        %3966 = vmatprep.subr.mxu0 0.0
        %3967 = vmatpush1.msra.mxu0 %v3679
        %3968 = vmatprep.subr.mxu0 0.0
        %3969 = vmatpush1.msra.mxu0 %v3680
        %3970 = vmatprep.subr.mxu0 0.0
        %3971 = vmatpush1.msra.mxu0 %v3681
        %3972 = vmatprep.subr.mxu0 0.0
        %3973 = vmatpush1.msra.mxu0 %v3682
        %3974 = vmatprep.subr.mxu0 0.0
        %3975 = vmatpush1.msra.mxu0 %v3683
        %3976 = vmatprep.subr.mxu0 0.0
        %3977 = vmatpush1.msra.mxu0 %v3684
        %3978 = vmatprep.subr.mxu0 0.0
        %3979 = vmatpush1.msra.mxu0 %v3685
        %3980 = vmatprep.subr.mxu0 0.0
        %3981 = vmatpush1.msra.mxu0 %v3686
        %3982 = vmatprep.subr.mxu0 0.0
        %3983 = vmatpush1.msra.mxu0 %v3687
        %3984 = vmatprep.subr.mxu0 0.0
        %3985 = vmatpush1.msra.mxu0 %v3688
        %3986 = vmatprep.subr.mxu0 0.0
        %3987 = vmatpush1.msra.mxu0 %v3689
        %3988 = vmatprep.subr.mxu0 0.0
        %3989 = vmatpush1.msra.mxu0 %v3690
        %3990 = vmatprep.subr.mxu0 0.0
        %3991 = vmatpush1.msra.mxu0 %v3691
        %3992 = vmatprep.subr.mxu0 0.0
        %3993 = vmatpush1.msra.mxu0 0.0
        %3994 = vmatprep.subr.mxu0 0.0
        %3995 = vmatpush1.msra.mxu0 0.0
        %3996 = vmatprep.subr.mxu0 0.0
        %3997 = vmatpush1.msra.mxu0 0.0
        %3998 = vmatprep.subr.mxu0 0.0
        %3999 = vmatpush1.msra.mxu0 0.0
        %4000 = vmatprep.subr.mxu0 0.0
        %4001 = vmatpush1.msra.mxu0 0.0
        %4002 = vmatprep.subr.mxu0 0.0
        %4003 = vmatpush1.msra.mxu0 0.0
        %4004 = vmatprep.subr.mxu0 0.0
        %4005 = vmatpush1.msra.mxu0 0.0
        %4006 = vmatprep.subr.mxu0 0.0
        %4007 = vmatpush1.msra.mxu0 0.0
        %4008 = vmatprep.subr.mxu0 0.0
        %4009 = vmatpush1.msra.mxu0 0.0
        %4010 = vmatprep.subr.mxu0 0.0
        %4011 = vmatpush1.msra.mxu0 0.0
        %4012 = vmatprep.subr.mxu0 0.0
        %4013 = vmatpush1.msra.mxu0 0.0
        %4014 = vmatprep.subr.mxu0 0.0
        %4015 = vmatpush1.msra.mxu0 0.0
        %4016 = vmatprep.subr.mxu0 0.0
        %4017 = vmatpush1.msra.mxu0 0.0
        %4018 = vmatprep.subr.mxu0 0.0
        %4019 = vmatpush1.msra.mxu0 0.0
        %4020 = vmatprep.subr.mxu0 0.0
        %4021 = vmatpush1.msra.mxu0 0.0
        %4022 = vmatprep.subr.mxu0 0.0
        %4023 = vmatpush1.msra.mxu0 0.0
        %4024 = vmatprep.mubr.f32.mxu0 0.0
        %4025 = vmatmul.mubr.f32.gmra.mrb[0].mxu0 %v3643
        %v4026 = vpop.f32.mrb[0].mxu0
        %v4027 = vadd.f32 %v3957, %v4026
        %v4028 = vpop.f32.mrb[0].mxu0
        %4029 = vdwg.mxu0
        %s4030 = scalar_lea.vmem %s11, 768
        %v4031 = vld [vmem:[%s4030] sm:$0xff]
        %v4032 = vld [vmem:[%s4030 + $0x8] sm:$0xff]
        %v4033 = vld [vmem:[%s4030 + $0x10] sm:$0xff]
        %v4034 = vld [vmem:[%s4030 + $0x18] sm:$0xff]
        %v4035 = vld [vmem:[%s4030 + $0x20] sm:$0xff]
        %v4036 = vld [vmem:[%s4030 + $0x28] sm:$0xff]
        %v4037 = vld [vmem:[%s4030 + $0x30] sm:$0xff]
        %v4038 = vld [vmem:[%s4030 + $0x38] sm:$0xff]
        %v4039 = vld [vmem:[%s4030 + $0x40] sm:$0xff]
        %v4040 = vld [vmem:[%s4030 + $0x48] sm:$0xff]
        %v4041 = vld [vmem:[%s4030 + $0x50] sm:$0xff]
        %v4042 = vld [vmem:[%s4030 + $0x58] sm:$0xff]
        %v4043 = vld [vmem:[%s4030 + $0x60] sm:$0xff]
        %v4044 = vld [vmem:[%s4030 + $0x68] sm:$0xff]
        %v4045 = vld [vmem:[%s4030 + $0x70] sm:$0xff]
        %v4046 = vld [vmem:[%s4030 + $0x78] sm:$0xff]
        %v4047 = vld [vmem:[%s4030 + $0x80] sm:$0xff]
        %v4048 = vld [vmem:[%s4030 + $0x88] sm:$0xff]
        %v4049 = vld [vmem:[%s4030 + $0x90] sm:$0xff]
        %v4050 = vld [vmem:[%s4030 + $0x98] sm:$0xff]
        %v4051 = vld [vmem:[%s4030 + $0xa0] sm:$0xff]
        %v4052 = vld [vmem:[%s4030 + $0xa8] sm:$0xff]
        %v4053 = vld [vmem:[%s4030 + $0xb0] sm:$0xff]
        %v4054 = vld [vmem:[%s4030 + $0xb8] sm:$0xff]
        %v4055 = vld [vmem:[%s4030 + $0xc0] sm:$0xff]
        %v4056 = vld [vmem:[%s4030 + $0xc8] sm:$0xff]
        %v4057 = vld [vmem:[%s4030 + $0xd0] sm:$0xff]
        %v4058 = vld [vmem:[%s4030 + $0xd8] sm:$0xff]
        %v4059 = vld [vmem:[%s4030 + $0xe0] sm:$0xff]
        %v4060 = vld [vmem:[%s4030 + $0xe8] sm:$0xff]
        %v4061 = vld [vmem:[%s4030 + $0xf0] sm:$0xff]
        %v4062 = vld [vmem:[%s4030 + $0xf8] sm:$0xff]
        %v4063 = vld [vmem:[%s4030 + $0x100] sm:$0xff]
        %v4064 = vld [vmem:[%s4030 + $0x108] sm:$0xff]
        %v4065 = vld [vmem:[%s4030 + $0x110] sm:$0xff]
        %v4066 = vld [vmem:[%s4030 + $0x118] sm:$0xff]
        %v4067 = vld [vmem:[%s4030 + $0x120] sm:$0xff]
        %v4068 = vld [vmem:[%s4030 + $0x128] sm:$0xff]
        %v4069 = vld [vmem:[%s4030 + $0x130] sm:$0xff]
        %v4070 = vld [vmem:[%s4030 + $0x138] sm:$0xff]
        %v4071 = vld [vmem:[%s4030 + $0x140] sm:$0xff]
        %v4072 = vld [vmem:[%s4030 + $0x148] sm:$0xff]
        %v4073 = vld [vmem:[%s4030 + $0x150] sm:$0xff]
        %v4074 = vld [vmem:[%s4030 + $0x158] sm:$0xff]
        %v4075 = vld [vmem:[%s4030 + $0x160] sm:$0xff]
        %v4076 = vld [vmem:[%s4030 + $0x168] sm:$0xff]
        %v4077 = vld [vmem:[%s4030 + $0x170] sm:$0xff]
        %v4078 = vld [vmem:[%s4030 + $0x178] sm:$0xff]
        %v4079 = vrot.slane %v3641, 2
        %v4080 = vrot.slane %v3642, 2
        %v4081 = vrot.slane %v3643, 2
        %4085 = vmatprep.subr.mxu0 0.0
        %4086 = vmatpush1.msra.mxu0 %v4031
        %4087 = vmatprep.subr.mxu0 0.0
        %4088 = vmatpush1.msra.mxu0 %v4032
        %4089 = vmatprep.subr.mxu0 0.0
        %4090 = vmatpush1.msra.mxu0 %v4033
        %4091 = vmatprep.subr.mxu0 0.0
        %4092 = vmatpush1.msra.mxu0 %v4034
        %4093 = vmatprep.subr.mxu0 0.0
        %4094 = vmatpush1.msra.mxu0 %v4035
        %4095 = vmatprep.subr.mxu0 0.0
        %4096 = vmatpush1.msra.mxu0 %v4036
        %4097 = vmatprep.subr.mxu0 0.0
        %4098 = vmatpush1.msra.mxu0 %v4037
        %4099 = vmatprep.subr.mxu0 0.0
        %4100 = vmatpush1.msra.mxu0 %v4038
        %4101 = vmatprep.subr.mxu0 0.0
        %4102 = vmatpush1.msra.mxu0 %v4039
        %4103 = vmatprep.subr.mxu0 0.0
        %4104 = vmatpush1.msra.mxu0 %v4040
        %4105 = vmatprep.subr.mxu0 0.0
        %4106 = vmatpush1.msra.mxu0 %v4041
        %4107 = vmatprep.subr.mxu0 0.0
        %4108 = vmatpush1.msra.mxu0 %v4042
        %4109 = vmatprep.subr.mxu0 0.0
        %4110 = vmatpush1.msra.mxu0 %v4043
        %4111 = vmatprep.subr.mxu0 0.0
        %4112 = vmatpush1.msra.mxu0 %v4044
        %4113 = vmatprep.subr.mxu0 0.0
        %4114 = vmatpush1.msra.mxu0 %v4045
        %4115 = vmatprep.subr.mxu0 0.0
        %4116 = vmatpush1.msra.mxu0 %v4046
        %4117 = vmatprep.subr.mxu0 0.0
        %4118 = vmatpush1.msra.mxu0 %v4047
        %4119 = vmatprep.subr.mxu0 0.0
        %4120 = vmatpush1.msra.mxu0 %v4048
        %4121 = vmatprep.subr.mxu0 0.0
        %4122 = vmatpush1.msra.mxu0 %v4049
        %4123 = vmatprep.subr.mxu0 0.0
        %4124 = vmatpush1.msra.mxu0 %v4050
        %4125 = vmatprep.subr.mxu0 0.0
        %4126 = vmatpush1.msra.mxu0 %v4051
        %4127 = vmatprep.subr.mxu0 0.0
        %4128 = vmatpush1.msra.mxu0 %v4052
        %4129 = vmatprep.subr.mxu0 0.0
        %4130 = vmatpush1.msra.mxu0 %v4053
        %4131 = vmatprep.subr.mxu0 0.0
        %4132 = vmatpush1.msra.mxu0 %v4054
        %4133 = vmatprep.subr.mxu0 0.0
        %4134 = vmatpush1.msra.mxu0 %v4055
        %4135 = vmatprep.subr.mxu0 0.0
        %4136 = vmatpush1.msra.mxu0 %v4056
        %4137 = vmatprep.subr.mxu0 0.0
        %4138 = vmatpush1.msra.mxu0 %v4057
        %4139 = vmatprep.subr.mxu0 0.0
        %4140 = vmatpush1.msra.mxu0 %v4058
        %4141 = vmatprep.subr.mxu0 0.0
        %4142 = vmatpush1.msra.mxu0 %v4059
        %4143 = vmatprep.subr.mxu0 0.0
        %4144 = vmatpush1.msra.mxu0 %v4060
        %4145 = vmatprep.subr.mxu0 0.0
        %4146 = vmatpush1.msra.mxu0 %v4061
        %4147 = vmatprep.subr.mxu0 0.0
        %4148 = vmatpush1.msra.mxu0 %v4062
        %4149 = vmatprep.mubr.f32.mxu0 %v4080
        %4150 = vmatmul.mubr.f32.gmra.mrb[0].mxu0 %v4079
        %v4151 = vpop.f32.mrb[0].mxu0
        %v4152 = vadd.f32 0.0, %v4151
        %v4153 = vpop.f32.mrb[0].mxu0
        %4154 = vdwg.mxu0
        %4155 = vmatprep.subr.mxu0 0.0
        %4156 = vmatpush1.msra.mxu0 %v4063
        %4157 = vmatprep.subr.mxu0 0.0
        %4158 = vmatpush1.msra.mxu0 %v4064
        %4159 = vmatprep.subr.mxu0 0.0
        %4160 = vmatpush1.msra.mxu0 %v4065
        %4161 = vmatprep.subr.mxu0 0.0
        %4162 = vmatpush1.msra.mxu0 %v4066
        %4163 = vmatprep.subr.mxu0 0.0
        %4164 = vmatpush1.msra.mxu0 %v4067
        %4165 = vmatprep.subr.mxu0 0.0
        %4166 = vmatpush1.msra.mxu0 %v4068
        %4167 = vmatprep.subr.mxu0 0.0
        %4168 = vmatpush1.msra.mxu0 %v4069
        %4169 = vmatprep.subr.mxu0 0.0
        %4170 = vmatpush1.msra.mxu0 %v4070
        %4171 = vmatprep.subr.mxu0 0.0
        %4172 = vmatpush1.msra.mxu0 %v4071
        %4173 = vmatprep.subr.mxu0 0.0
        %4174 = vmatpush1.msra.mxu0 %v4072
        %4175 = vmatprep.subr.mxu0 0.0
        %4176 = vmatpush1.msra.mxu0 %v4073
        %4177 = vmatprep.subr.mxu0 0.0
        %4178 = vmatpush1.msra.mxu0 %v4074
        %4179 = vmatprep.subr.mxu0 0.0
        %4180 = vmatpush1.msra.mxu0 %v4075
        %4181 = vmatprep.subr.mxu0 0.0
        %4182 = vmatpush1.msra.mxu0 %v4076
        %4183 = vmatprep.subr.mxu0 0.0
        %4184 = vmatpush1.msra.mxu0 %v4077
        %4185 = vmatprep.subr.mxu0 0.0
        %4186 = vmatpush1.msra.mxu0 %v4078
        %4187 = vmatprep.subr.mxu0 0.0
        %4188 = vmatpush1.msra.mxu0 0.0
        %4189 = vmatprep.subr.mxu0 0.0
        %4190 = vmatpush1.msra.mxu0 0.0
        %4191 = vmatprep.subr.mxu0 0.0
        %4192 = vmatpush1.msra.mxu0 0.0
        %4193 = vmatprep.subr.mxu0 0.0
        %4194 = vmatpush1.msra.mxu0 0.0
        %4195 = vmatprep.subr.mxu0 0.0
        %4196 = vmatpush1.msra.mxu0 0.0
        %4197 = vmatprep.subr.mxu0 0.0
        %4198 = vmatpush1.msra.mxu0 0.0
        %4199 = vmatprep.subr.mxu0 0.0
        %4200 = vmatpush1.msra.mxu0 0.0
        %4201 = vmatprep.subr.mxu0 0.0
        %4202 = vmatpush1.msra.mxu0 0.0
        %4203 = vmatprep.subr.mxu0 0.0
        %4204 = vmatpush1.msra.mxu0 0.0
        %4205 = vmatprep.subr.mxu0 0.0
        %4206 = vmatpush1.msra.mxu0 0.0
        %4207 = vmatprep.subr.mxu0 0.0
        %4208 = vmatpush1.msra.mxu0 0.0
        %4209 = vmatprep.subr.mxu0 0.0
        %4210 = vmatpush1.msra.mxu0 0.0
        %4211 = vmatprep.subr.mxu0 0.0
        %4212 = vmatpush1.msra.mxu0 0.0
        %4213 = vmatprep.subr.mxu0 0.0
        %4214 = vmatpush1.msra.mxu0 0.0
        %4215 = vmatprep.subr.mxu0 0.0
        %4216 = vmatpush1.msra.mxu0 0.0
        %4217 = vmatprep.subr.mxu0 0.0
        %4218 = vmatpush1.msra.mxu0 0.0
        %4219 = vmatprep.mubr.f32.mxu0 0.0
        %4220 = vmatmul.mubr.f32.gmra.mrb[0].mxu0 %v4081
        %v4221 = vpop.f32.mrb[0].mxu0
        %v4222 = vadd.f32 %v4152, %v4221
        %v4223 = vpop.f32.mrb[0].mxu0
        %4224 = vdwg.mxu0
        %v4225 = vadd.f32 %v4027, %v4222
        %s4226 = scalar_lea.vmem %s11, 1152
        %v4227 = vld [vmem:[%s4226] sm:$0xff]
        %v4228 = vld [vmem:[%s4226 + $0x8] sm:$0xff]
        %v4229 = vld [vmem:[%s4226 + $0x10] sm:$0xff]
        %v4230 = vld [vmem:[%s4226 + $0x18] sm:$0xff]
        %v4231 = vld [vmem:[%s4226 + $0x20] sm:$0xff]
        %v4232 = vld [vmem:[%s4226 + $0x28] sm:$0xff]
        %v4233 = vld [vmem:[%s4226 + $0x30] sm:$0xff]
        %v4234 = vld [vmem:[%s4226 + $0x38] sm:$0xff]
        %v4235 = vld [vmem:[%s4226 + $0x40] sm:$0xff]
        %v4236 = vld [vmem:[%s4226 + $0x48] sm:$0xff]
        %v4237 = vld [vmem:[%s4226 + $0x50] sm:$0xff]
        %v4238 = vld [vmem:[%s4226 + $0x58] sm:$0xff]
        %v4239 = vld [vmem:[%s4226 + $0x60] sm:$0xff]
        %v4240 = vld [vmem:[%s4226 + $0x68] sm:$0xff]
        %v4241 = vld [vmem:[%s4226 + $0x70] sm:$0xff]
        %v4242 = vld [vmem:[%s4226 + $0x78] sm:$0xff]
        %v4243 = vld [vmem:[%s4226 + $0x80] sm:$0xff]
        %v4244 = vld [vmem:[%s4226 + $0x88] sm:$0xff]
        %v4245 = vld [vmem:[%s4226 + $0x90] sm:$0xff]
        %v4246 = vld [vmem:[%s4226 + $0x98] sm:$0xff]
        %v4247 = vld [vmem:[%s4226 + $0xa0] sm:$0xff]
        %v4248 = vld [vmem:[%s4226 + $0xa8] sm:$0xff]
        %v4249 = vld [vmem:[%s4226 + $0xb0] sm:$0xff]
        %v4250 = vld [vmem:[%s4226 + $0xb8] sm:$0xff]
        %v4251 = vld [vmem:[%s4226 + $0xc0] sm:$0xff]
        %v4252 = vld [vmem:[%s4226 + $0xc8] sm:$0xff]
        %v4253 = vld [vmem:[%s4226 + $0xd0] sm:$0xff]
        %v4254 = vld [vmem:[%s4226 + $0xd8] sm:$0xff]
        %v4255 = vld [vmem:[%s4226 + $0xe0] sm:$0xff]
        %v4256 = vld [vmem:[%s4226 + $0xe8] sm:$0xff]
        %v4257 = vld [vmem:[%s4226 + $0xf0] sm:$0xff]
        %v4258 = vld [vmem:[%s4226 + $0xf8] sm:$0xff]
        %v4259 = vld [vmem:[%s4226 + $0x100] sm:$0xff]
        %v4260 = vld [vmem:[%s4226 + $0x108] sm:$0xff]
        %v4261 = vld [vmem:[%s4226 + $0x110] sm:$0xff]
        %v4262 = vld [vmem:[%s4226 + $0x118] sm:$0xff]
        %v4263 = vld [vmem:[%s4226 + $0x120] sm:$0xff]
        %v4264 = vld [vmem:[%s4226 + $0x128] sm:$0xff]
        %v4265 = vld [vmem:[%s4226 + $0x130] sm:$0xff]
        %v4266 = vld [vmem:[%s4226 + $0x138] sm:$0xff]
        %v4267 = vld [vmem:[%s4226 + $0x140] sm:$0xff]
        %v4268 = vld [vmem:[%s4226 + $0x148] sm:$0xff]
        %v4269 = vld [vmem:[%s4226 + $0x150] sm:$0xff]
        %v4270 = vld [vmem:[%s4226 + $0x158] sm:$0xff]
        %v4271 = vld [vmem:[%s4226 + $0x160] sm:$0xff]
        %v4272 = vld [vmem:[%s4226 + $0x168] sm:$0xff]
        %v4273 = vld [vmem:[%s4226 + $0x170] sm:$0xff]
        %v4274 = vld [vmem:[%s4226 + $0x178] sm:$0xff]
        %v4275 = vrot.slane %v3641, 3
        %v4276 = vrot.slane %v3642, 3
        %v4277 = vrot.slane %v3643, 3
        %4281 = vmatprep.subr.mxu0 0.0
        %4282 = vmatpush1.msra.mxu0 %v4227
        %4283 = vmatprep.subr.mxu0 0.0
        %4284 = vmatpush1.msra.mxu0 %v4228
        %4285 = vmatprep.subr.mxu0 0.0
        %4286 = vmatpush1.msra.mxu0 %v4229
        %4287 = vmatprep.subr.mxu0 0.0
        %4288 = vmatpush1.msra.mxu0 %v4230
        %4289 = vmatprep.subr.mxu0 0.0
        %4290 = vmatpush1.msra.mxu0 %v4231
        %4291 = vmatprep.subr.mxu0 0.0
        %4292 = vmatpush1.msra.mxu0 %v4232
        %4293 = vmatprep.subr.mxu0 0.0
        %4294 = vmatpush1.msra.mxu0 %v4233
        %4295 = vmatprep.subr.mxu0 0.0
        %4296 = vmatpush1.msra.mxu0 %v4234
        %4297 = vmatprep.subr.mxu0 0.0
        %4298 = vmatpush1.msra.mxu0 %v4235
        %4299 = vmatprep.subr.mxu0 0.0
        %4300 = vmatpush1.msra.mxu0 %v4236
        %4301 = vmatprep.subr.mxu0 0.0
        %4302 = vmatpush1.msra.mxu0 %v4237
        %4303 = vmatprep.subr.mxu0 0.0
        %4304 = vmatpush1.msra.mxu0 %v4238
        %4305 = vmatprep.subr.mxu0 0.0
        %4306 = vmatpush1.msra.mxu0 %v4239
        %4307 = vmatprep.subr.mxu0 0.0
        %4308 = vmatpush1.msra.mxu0 %v4240
        %4309 = vmatprep.subr.mxu0 0.0
        %4310 = vmatpush1.msra.mxu0 %v4241
        %4311 = vmatprep.subr.mxu0 0.0
        %4312 = vmatpush1.msra.mxu0 %v4242
        %4313 = vmatprep.subr.mxu0 0.0
        %4314 = vmatpush1.msra.mxu0 %v4243
        %4315 = vmatprep.subr.mxu0 0.0
        %4316 = vmatpush1.msra.mxu0 %v4244
        %4317 = vmatprep.subr.mxu0 0.0
        %4318 = vmatpush1.msra.mxu0 %v4245
        %4319 = vmatprep.subr.mxu0 0.0
        %4320 = vmatpush1.msra.mxu0 %v4246
        %4321 = vmatprep.subr.mxu0 0.0
        %4322 = vmatpush1.msra.mxu0 %v4247
        %4323 = vmatprep.subr.mxu0 0.0
        %4324 = vmatpush1.msra.mxu0 %v4248
        %4325 = vmatprep.subr.mxu0 0.0
        %4326 = vmatpush1.msra.mxu0 %v4249
        %4327 = vmatprep.subr.mxu0 0.0
        %4328 = vmatpush1.msra.mxu0 %v4250
        %4329 = vmatprep.subr.mxu0 0.0
        %4330 = vmatpush1.msra.mxu0 %v4251
        %4331 = vmatprep.subr.mxu0 0.0
        %4332 = vmatpush1.msra.mxu0 %v4252
        %4333 = vmatprep.subr.mxu0 0.0
        %4334 = vmatpush1.msra.mxu0 %v4253
        %4335 = vmatprep.subr.mxu0 0.0
        %4336 = vmatpush1.msra.mxu0 %v4254
        %4337 = vmatprep.subr.mxu0 0.0
        %4338 = vmatpush1.msra.mxu0 %v4255
        %4339 = vmatprep.subr.mxu0 0.0
        %4340 = vmatpush1.msra.mxu0 %v4256
        %4341 = vmatprep.subr.mxu0 0.0
        %4342 = vmatpush1.msra.mxu0 %v4257
        %4343 = vmatprep.subr.mxu0 0.0
        %4344 = vmatpush1.msra.mxu0 %v4258
        %4345 = vmatprep.mubr.f32.mxu0 %v4276
        %4346 = vmatmul.mubr.f32.gmra.mrb[0].mxu0 %v4275
        %v4347 = vpop.f32.mrb[0].mxu0
        %v4348 = vadd.f32 0.0, %v4347
        %v4349 = vpop.f32.mrb[0].mxu0
        %4350 = vdwg.mxu0
        %4351 = vmatprep.subr.mxu0 0.0
        %4352 = vmatpush1.msra.mxu0 %v4259
        %4353 = vmatprep.subr.mxu0 0.0
        %4354 = vmatpush1.msra.mxu0 %v4260
        %4355 = vmatprep.subr.mxu0 0.0
        %4356 = vmatpush1.msra.mxu0 %v4261
        %4357 = vmatprep.subr.mxu0 0.0
        %4358 = vmatpush1.msra.mxu0 %v4262
        %4359 = vmatprep.subr.mxu0 0.0
        %4360 = vmatpush1.msra.mxu0 %v4263
        %4361 = vmatprep.subr.mxu0 0.0
        %4362 = vmatpush1.msra.mxu0 %v4264
        %4363 = vmatprep.subr.mxu0 0.0
        %4364 = vmatpush1.msra.mxu0 %v4265
        %4365 = vmatprep.subr.mxu0 0.0
        %4366 = vmatpush1.msra.mxu0 %v4266
        %4367 = vmatprep.subr.mxu0 0.0
        %4368 = vmatpush1.msra.mxu0 %v4267
        %4369 = vmatprep.subr.mxu0 0.0
        %4370 = vmatpush1.msra.mxu0 %v4268
        %4371 = vmatprep.subr.mxu0 0.0
        %4372 = vmatpush1.msra.mxu0 %v4269
        %4373 = vmatprep.subr.mxu0 0.0
        %4374 = vmatpush1.msra.mxu0 %v4270
        %4375 = vmatprep.subr.mxu0 0.0
        %4376 = vmatpush1.msra.mxu0 %v4271
        %4377 = vmatprep.subr.mxu0 0.0
        %4378 = vmatpush1.msra.mxu0 %v4272
        %4379 = vmatprep.subr.mxu0 0.0
        %4380 = vmatpush1.msra.mxu0 %v4273
        %4381 = vmatprep.subr.mxu0 0.0
        %4382 = vmatpush1.msra.mxu0 %v4274
        %4383 = vmatprep.subr.mxu0 0.0
        %4384 = vmatpush1.msra.mxu0 0.0
        %4385 = vmatprep.subr.mxu0 0.0
        %4386 = vmatpush1.msra.mxu0 0.0
        %4387 = vmatprep.subr.mxu0 0.0
        %4388 = vmatpush1.msra.mxu0 0.0
        %4389 = vmatprep.subr.mxu0 0.0
        %4390 = vmatpush1.msra.mxu0 0.0
        %4391 = vmatprep.subr.mxu0 0.0
        %4392 = vmatpush1.msra.mxu0 0.0
        %4393 = vmatprep.subr.mxu0 0.0
        %4394 = vmatpush1.msra.mxu0 0.0
        %4395 = vmatprep.subr.mxu0 0.0
        %4396 = vmatpush1.msra.mxu0 0.0
        %4397 = vmatprep.subr.mxu0 0.0
        %4398 = vmatpush1.msra.mxu0 0.0
        %4399 = vmatprep.subr.mxu0 0.0
        %4400 = vmatpush1.msra.mxu0 0.0
        %4401 = vmatprep.subr.mxu0 0.0
        %4402 = vmatpush1.msra.mxu0 0.0
        %4403 = vmatprep.subr.mxu0 0.0
        %4404 = vmatpush1.msra.mxu0 0.0
        %4405 = vmatprep.subr.mxu0 0.0
        %4406 = vmatpush1.msra.mxu0 0.0
        %4407 = vmatprep.subr.mxu0 0.0
        %4408 = vmatpush1.msra.mxu0 0.0
        %4409 = vmatprep.subr.mxu0 0.0
        %4410 = vmatpush1.msra.mxu0 0.0
        %4411 = vmatprep.subr.mxu0 0.0
        %4412 = vmatpush1.msra.mxu0 0.0
        %4413 = vmatprep.subr.mxu0 0.0
        %4414 = vmatpush1.msra.mxu0 0.0
        %4415 = vmatprep.mubr.f32.mxu0 0.0
        %4416 = vmatmul.mubr.f32.gmra.mrb[0].mxu0 %v4277
        %v4417 = vpop.f32.mrb[0].mxu0
        %v4418 = vadd.f32 %v4348, %v4417
        %v4419 = vpop.f32.mrb[0].mxu0
        %4420 = vdwg.mxu0
        %v4421 = vadd.f32 %v4225, %v4418
        %s4422 = scalar_lea.vmem %s11, 1536
        %v4423 = vld [vmem:[%s4422] sm:$0xff]
        %v4424 = vld [vmem:[%s4422 + $0x8] sm:$0xff]
        %v4425 = vld [vmem:[%s4422 + $0x10] sm:$0xff]
        %v4426 = vld [vmem:[%s4422 + $0x18] sm:$0xff]
        %v4427 = vld [vmem:[%s4422 + $0x20] sm:$0xff]
        %v4428 = vld [vmem:[%s4422 + $0x28] sm:$0xff]
        %v4429 = vld [vmem:[%s4422 + $0x30] sm:$0xff]
        %v4430 = vld [vmem:[%s4422 + $0x38] sm:$0xff]
        %v4431 = vld [vmem:[%s4422 + $0x40] sm:$0xff]
        %v4432 = vld [vmem:[%s4422 + $0x48] sm:$0xff]
        %v4433 = vld [vmem:[%s4422 + $0x50] sm:$0xff]
        %v4434 = vld [vmem:[%s4422 + $0x58] sm:$0xff]
        %v4435 = vld [vmem:[%s4422 + $0x60] sm:$0xff]
        %v4436 = vld [vmem:[%s4422 + $0x68] sm:$0xff]
        %v4437 = vld [vmem:[%s4422 + $0x70] sm:$0xff]
        %v4438 = vld [vmem:[%s4422 + $0x78] sm:$0xff]
        %v4439 = vld [vmem:[%s4422 + $0x80] sm:$0xff]
        %v4440 = vld [vmem:[%s4422 + $0x88] sm:$0xff]
        %v4441 = vld [vmem:[%s4422 + $0x90] sm:$0xff]
        %v4442 = vld [vmem:[%s4422 + $0x98] sm:$0xff]
        %v4443 = vld [vmem:[%s4422 + $0xa0] sm:$0xff]
        %v4444 = vld [vmem:[%s4422 + $0xa8] sm:$0xff]
        %v4445 = vld [vmem:[%s4422 + $0xb0] sm:$0xff]
        %v4446 = vld [vmem:[%s4422 + $0xb8] sm:$0xff]
        %v4447 = vld [vmem:[%s4422 + $0xc0] sm:$0xff]
        %v4448 = vld [vmem:[%s4422 + $0xc8] sm:$0xff]
        %v4449 = vld [vmem:[%s4422 + $0xd0] sm:$0xff]
        %v4450 = vld [vmem:[%s4422 + $0xd8] sm:$0xff]
        %v4451 = vld [vmem:[%s4422 + $0xe0] sm:$0xff]
        %v4452 = vld [vmem:[%s4422 + $0xe8] sm:$0xff]
        %v4453 = vld [vmem:[%s4422 + $0xf0] sm:$0xff]
        %v4454 = vld [vmem:[%s4422 + $0xf8] sm:$0xff]
        %v4455 = vld [vmem:[%s4422 + $0x100] sm:$0xff]
        %v4456 = vld [vmem:[%s4422 + $0x108] sm:$0xff]
        %v4457 = vld [vmem:[%s4422 + $0x110] sm:$0xff]
        %v4458 = vld [vmem:[%s4422 + $0x118] sm:$0xff]
        %v4459 = vld [vmem:[%s4422 + $0x120] sm:$0xff]
        %v4460 = vld [vmem:[%s4422 + $0x128] sm:$0xff]
        %v4461 = vld [vmem:[%s4422 + $0x130] sm:$0xff]
        %v4462 = vld [vmem:[%s4422 + $0x138] sm:$0xff]
        %v4463 = vld [vmem:[%s4422 + $0x140] sm:$0xff]
        %v4464 = vld [vmem:[%s4422 + $0x148] sm:$0xff]
        %v4465 = vld [vmem:[%s4422 + $0x150] sm:$0xff]
        %v4466 = vld [vmem:[%s4422 + $0x158] sm:$0xff]
        %v4467 = vld [vmem:[%s4422 + $0x160] sm:$0xff]
        %v4468 = vld [vmem:[%s4422 + $0x168] sm:$0xff]
        %v4469 = vld [vmem:[%s4422 + $0x170] sm:$0xff]
        %v4470 = vld [vmem:[%s4422 + $0x178] sm:$0xff]
        %v4471 = vrot.slane %v3641, 4
        %v4472 = vrot.slane %v3642, 4
        %v4473 = vrot.slane %v3643, 4
        %4477 = vmatprep.subr.mxu0 0.0
        %4478 = vmatpush1.msra.mxu0 %v4423
        %4479 = vmatprep.subr.mxu0 0.0
        %4480 = vmatpush1.msra.mxu0 %v4424
        %4481 = vmatprep.subr.mxu0 0.0
        %4482 = vmatpush1.msra.mxu0 %v4425
        %4483 = vmatprep.subr.mxu0 0.0
        %4484 = vmatpush1.msra.mxu0 %v4426
        %4485 = vmatprep.subr.mxu0 0.0
        %4486 = vmatpush1.msra.mxu0 %v4427
        %4487 = vmatprep.subr.mxu0 0.0
        %4488 = vmatpush1.msra.mxu0 %v4428
        %4489 = vmatprep.subr.mxu0 0.0
        %4490 = vmatpush1.msra.mxu0 %v4429
        %4491 = vmatprep.subr.mxu0 0.0
        %4492 = vmatpush1.msra.mxu0 %v4430
        %4493 = vmatprep.subr.mxu0 0.0
        %4494 = vmatpush1.msra.mxu0 %v4431
        %4495 = vmatprep.subr.mxu0 0.0
        %4496 = vmatpush1.msra.mxu0 %v4432
        %4497 = vmatprep.subr.mxu0 0.0
        %4498 = vmatpush1.msra.mxu0 %v4433
        %4499 = vmatprep.subr.mxu0 0.0
        %4500 = vmatpush1.msra.mxu0 %v4434
        %4501 = vmatprep.subr.mxu0 0.0
        %4502 = vmatpush1.msra.mxu0 %v4435
        %4503 = vmatprep.subr.mxu0 0.0
        %4504 = vmatpush1.msra.mxu0 %v4436
        %4505 = vmatprep.subr.mxu0 0.0
        %4506 = vmatpush1.msra.mxu0 %v4437
        %4507 = vmatprep.subr.mxu0 0.0
        %4508 = vmatpush1.msra.mxu0 %v4438
        %4509 = vmatprep.subr.mxu0 0.0
        %4510 = vmatpush1.msra.mxu0 %v4439
        %4511 = vmatprep.subr.mxu0 0.0
        %4512 = vmatpush1.msra.mxu0 %v4440
        %4513 = vmatprep.subr.mxu0 0.0
        %4514 = vmatpush1.msra.mxu0 %v4441
        %4515 = vmatprep.subr.mxu0 0.0
        %4516 = vmatpush1.msra.mxu0 %v4442
        %4517 = vmatprep.subr.mxu0 0.0
        %4518 = vmatpush1.msra.mxu0 %v4443
        %4519 = vmatprep.subr.mxu0 0.0
        %4520 = vmatpush1.msra.mxu0 %v4444
        %4521 = vmatprep.subr.mxu0 0.0
        %4522 = vmatpush1.msra.mxu0 %v4445
        %4523 = vmatprep.subr.mxu0 0.0
        %4524 = vmatpush1.msra.mxu0 %v4446
        %4525 = vmatprep.subr.mxu0 0.0
        %4526 = vmatpush1.msra.mxu0 %v4447
        %4527 = vmatprep.subr.mxu0 0.0
        %4528 = vmatpush1.msra.mxu0 %v4448
        %4529 = vmatprep.subr.mxu0 0.0
        %4530 = vmatpush1.msra.mxu0 %v4449
        %4531 = vmatprep.subr.mxu0 0.0
        %4532 = vmatpush1.msra.mxu0 %v4450
        %4533 = vmatprep.subr.mxu0 0.0
        %4534 = vmatpush1.msra.mxu0 %v4451
        %4535 = vmatprep.subr.mxu0 0.0
        %4536 = vmatpush1.msra.mxu0 %v4452
        %4537 = vmatprep.subr.mxu0 0.0
        %4538 = vmatpush1.msra.mxu0 %v4453
        %4539 = vmatprep.subr.mxu0 0.0
        %4540 = vmatpush1.msra.mxu0 %v4454
        %4541 = vmatprep.mubr.f32.mxu0 %v4472
        %4542 = vmatmul.mubr.f32.gmra.mrb[0].mxu0 %v4471
        %v4543 = vpop.f32.mrb[0].mxu0
        %v4544 = vadd.f32 0.0, %v4543
        %v4545 = vpop.f32.mrb[0].mxu0
        %4546 = vdwg.mxu0
        %4547 = vmatprep.subr.mxu0 0.0
        %4548 = vmatpush1.msra.mxu0 %v4455
        %4549 = vmatprep.subr.mxu0 0.0
        %4550 = vmatpush1.msra.mxu0 %v4456
        %4551 = vmatprep.subr.mxu0 0.0
        %4552 = vmatpush1.msra.mxu0 %v4457
        %4553 = vmatprep.subr.mxu0 0.0
        %4554 = vmatpush1.msra.mxu0 %v4458
        %4555 = vmatprep.subr.mxu0 0.0
        %4556 = vmatpush1.msra.mxu0 %v4459
        %4557 = vmatprep.subr.mxu0 0.0
        %4558 = vmatpush1.msra.mxu0 %v4460
        %4559 = vmatprep.subr.mxu0 0.0
        %4560 = vmatpush1.msra.mxu0 %v4461
        %4561 = vmatprep.subr.mxu0 0.0
        %4562 = vmatpush1.msra.mxu0 %v4462
        %4563 = vmatprep.subr.mxu0 0.0
        %4564 = vmatpush1.msra.mxu0 %v4463
        %4565 = vmatprep.subr.mxu0 0.0
        %4566 = vmatpush1.msra.mxu0 %v4464
        %4567 = vmatprep.subr.mxu0 0.0
        %4568 = vmatpush1.msra.mxu0 %v4465
        %4569 = vmatprep.subr.mxu0 0.0
        %4570 = vmatpush1.msra.mxu0 %v4466
        %4571 = vmatprep.subr.mxu0 0.0
        %4572 = vmatpush1.msra.mxu0 %v4467
        %4573 = vmatprep.subr.mxu0 0.0
        %4574 = vmatpush1.msra.mxu0 %v4468
        %4575 = vmatprep.subr.mxu0 0.0
        %4576 = vmatpush1.msra.mxu0 %v4469
        %4577 = vmatprep.subr.mxu0 0.0
        %4578 = vmatpush1.msra.mxu0 %v4470
        %4579 = vmatprep.subr.mxu0 0.0
        %4580 = vmatpush1.msra.mxu0 0.0
        %4581 = vmatprep.subr.mxu0 0.0
        %4582 = vmatpush1.msra.mxu0 0.0
        %4583 = vmatprep.subr.mxu0 0.0
        %4584 = vmatpush1.msra.mxu0 0.0
        %4585 = vmatprep.subr.mxu0 0.0
        %4586 = vmatpush1.msra.mxu0 0.0
        %4587 = vmatprep.subr.mxu0 0.0
        %4588 = vmatpush1.msra.mxu0 0.0
        %4589 = vmatprep.subr.mxu0 0.0
        %4590 = vmatpush1.msra.mxu0 0.0
        %4591 = vmatprep.subr.mxu0 0.0
        %4592 = vmatpush1.msra.mxu0 0.0
        %4593 = vmatprep.subr.mxu0 0.0
        %4594 = vmatpush1.msra.mxu0 0.0
        %4595 = vmatprep.subr.mxu0 0.0
        %4596 = vmatpush1.msra.mxu0 0.0
        %4597 = vmatprep.subr.mxu0 0.0
        %4598 = vmatpush1.msra.mxu0 0.0
        %4599 = vmatprep.subr.mxu0 0.0
        %4600 = vmatpush1.msra.mxu0 0.0
        %4601 = vmatprep.subr.mxu0 0.0
        %4602 = vmatpush1.msra.mxu0 0.0
        %4603 = vmatprep.subr.mxu0 0.0
        %4604 = vmatpush1.msra.mxu0 0.0
        %4605 = vmatprep.subr.mxu0 0.0
        %4606 = vmatpush1.msra.mxu0 0.0
        %4607 = vmatprep.subr.mxu0 0.0
        %4608 = vmatpush1.msra.mxu0 0.0
        %4609 = vmatprep.subr.mxu0 0.0
        %4610 = vmatpush1.msra.mxu0 0.0
        %4611 = vmatprep.mubr.f32.mxu0 0.0
        %4612 = vmatmul.mubr.f32.gmra.mrb[0].mxu0 %v4473
        %v4613 = vpop.f32.mrb[0].mxu0
        %v4614 = vadd.f32 %v4544, %v4613
        %v4615 = vpop.f32.mrb[0].mxu0
        %4616 = vdwg.mxu0
        %v4617 = vadd.f32 %v4421, %v4614
        %s4618 = scalar_lea.vmem %s11, 1920
        %v4619 = vld [vmem:[%s4618] sm:$0xff]
        %v4620 = vld [vmem:[%s4618 + $0x8] sm:$0xff]
        %v4621 = vld [vmem:[%s4618 + $0x10] sm:$0xff]
        %v4622 = vld [vmem:[%s4618 + $0x18] sm:$0xff]
        %v4623 = vld [vmem:[%s4618 + $0x20] sm:$0xff]
        %v4624 = vld [vmem:[%s4618 + $0x28] sm:$0xff]
        %v4625 = vld [vmem:[%s4618 + $0x30] sm:$0xff]
        %v4626 = vld [vmem:[%s4618 + $0x38] sm:$0xff]
        %v4627 = vld [vmem:[%s4618 + $0x40] sm:$0xff]
        %v4628 = vld [vmem:[%s4618 + $0x48] sm:$0xff]
        %v4629 = vld [vmem:[%s4618 + $0x50] sm:$0xff]
        %v4630 = vld [vmem:[%s4618 + $0x58] sm:$0xff]
        %v4631 = vld [vmem:[%s4618 + $0x60] sm:$0xff]
        %v4632 = vld [vmem:[%s4618 + $0x68] sm:$0xff]
        %v4633 = vld [vmem:[%s4618 + $0x70] sm:$0xff]
        %v4634 = vld [vmem:[%s4618 + $0x78] sm:$0xff]
        %v4635 = vld [vmem:[%s4618 + $0x80] sm:$0xff]
        %v4636 = vld [vmem:[%s4618 + $0x88] sm:$0xff]
        %v4637 = vld [vmem:[%s4618 + $0x90] sm:$0xff]
        %v4638 = vld [vmem:[%s4618 + $0x98] sm:$0xff]
        %v4639 = vld [vmem:[%s4618 + $0xa0] sm:$0xff]
        %v4640 = vld [vmem:[%s4618 + $0xa8] sm:$0xff]
        %v4641 = vld [vmem:[%s4618 + $0xb0] sm:$0xff]
        %v4642 = vld [vmem:[%s4618 + $0xb8] sm:$0xff]
        %v4643 = vld [vmem:[%s4618 + $0xc0] sm:$0xff]
        %v4644 = vld [vmem:[%s4618 + $0xc8] sm:$0xff]
        %v4645 = vld [vmem:[%s4618 + $0xd0] sm:$0xff]
        %v4646 = vld [vmem:[%s4618 + $0xd8] sm:$0xff]
        %v4647 = vld [vmem:[%s4618 + $0xe0] sm:$0xff]
        %v4648 = vld [vmem:[%s4618 + $0xe8] sm:$0xff]
        %v4649 = vld [vmem:[%s4618 + $0xf0] sm:$0xff]
        %v4650 = vld [vmem:[%s4618 + $0xf8] sm:$0xff]
        %v4651 = vld [vmem:[%s4618 + $0x100] sm:$0xff]
        %v4652 = vld [vmem:[%s4618 + $0x108] sm:$0xff]
        %v4653 = vld [vmem:[%s4618 + $0x110] sm:$0xff]
        %v4654 = vld [vmem:[%s4618 + $0x118] sm:$0xff]
        %v4655 = vld [vmem:[%s4618 + $0x120] sm:$0xff]
        %v4656 = vld [vmem:[%s4618 + $0x128] sm:$0xff]
        %v4657 = vld [vmem:[%s4618 + $0x130] sm:$0xff]
        %v4658 = vld [vmem:[%s4618 + $0x138] sm:$0xff]
        %v4659 = vld [vmem:[%s4618 + $0x140] sm:$0xff]
        %v4660 = vld [vmem:[%s4618 + $0x148] sm:$0xff]
        %v4661 = vld [vmem:[%s4618 + $0x150] sm:$0xff]
        %v4662 = vld [vmem:[%s4618 + $0x158] sm:$0xff]
        %v4663 = vld [vmem:[%s4618 + $0x160] sm:$0xff]
        %v4664 = vld [vmem:[%s4618 + $0x168] sm:$0xff]
        %v4665 = vld [vmem:[%s4618 + $0x170] sm:$0xff]
        %v4666 = vld [vmem:[%s4618 + $0x178] sm:$0xff]
        %v4667 = vrot.slane %v3641, 5
        %v4668 = vrot.slane %v3642, 5
        %v4669 = vrot.slane %v3643, 5
        %4673 = vmatprep.subr.mxu0 0.0
        %4674 = vmatpush1.msra.mxu0 %v4619
        %4675 = vmatprep.subr.mxu0 0.0
        %4676 = vmatpush1.msra.mxu0 %v4620
        %4677 = vmatprep.subr.mxu0 0.0
        %4678 = vmatpush1.msra.mxu0 %v4621
        %4679 = vmatprep.subr.mxu0 0.0
        %4680 = vmatpush1.msra.mxu0 %v4622
        %4681 = vmatprep.subr.mxu0 0.0
        %4682 = vmatpush1.msra.mxu0 %v4623
        %4683 = vmatprep.subr.mxu0 0.0
        %4684 = vmatpush1.msra.mxu0 %v4624
        %4685 = vmatprep.subr.mxu0 0.0
        %4686 = vmatpush1.msra.mxu0 %v4625
        %4687 = vmatprep.subr.mxu0 0.0
        %4688 = vmatpush1.msra.mxu0 %v4626
        %4689 = vmatprep.subr.mxu0 0.0
        %4690 = vmatpush1.msra.mxu0 %v4627
        %4691 = vmatprep.subr.mxu0 0.0
        %4692 = vmatpush1.msra.mxu0 %v4628
        %4693 = vmatprep.subr.mxu0 0.0
        %4694 = vmatpush1.msra.mxu0 %v4629
        %4695 = vmatprep.subr.mxu0 0.0
        %4696 = vmatpush1.msra.mxu0 %v4630
        %4697 = vmatprep.subr.mxu0 0.0
        %4698 = vmatpush1.msra.mxu0 %v4631
        %4699 = vmatprep.subr.mxu0 0.0
        %4700 = vmatpush1.msra.mxu0 %v4632
        %4701 = vmatprep.subr.mxu0 0.0
        %4702 = vmatpush1.msra.mxu0 %v4633
        %4703 = vmatprep.subr.mxu0 0.0
        %4704 = vmatpush1.msra.mxu0 %v4634
        %4705 = vmatprep.subr.mxu0 0.0
        %4706 = vmatpush1.msra.mxu0 %v4635
        %4707 = vmatprep.subr.mxu0 0.0
        %4708 = vmatpush1.msra.mxu0 %v4636
        %4709 = vmatprep.subr.mxu0 0.0
        %4710 = vmatpush1.msra.mxu0 %v4637
        %4711 = vmatprep.subr.mxu0 0.0
        %4712 = vmatpush1.msra.mxu0 %v4638
        %4713 = vmatprep.subr.mxu0 0.0
        %4714 = vmatpush1.msra.mxu0 %v4639
        %4715 = vmatprep.subr.mxu0 0.0
        %4716 = vmatpush1.msra.mxu0 %v4640
        %4717 = vmatprep.subr.mxu0 0.0
        %4718 = vmatpush1.msra.mxu0 %v4641
        %4719 = vmatprep.subr.mxu0 0.0
        %4720 = vmatpush1.msra.mxu0 %v4642
        %4721 = vmatprep.subr.mxu0 0.0
        %4722 = vmatpush1.msra.mxu0 %v4643
        %4723 = vmatprep.subr.mxu0 0.0
        %4724 = vmatpush1.msra.mxu0 %v4644
        %4725 = vmatprep.subr.mxu0 0.0
        %4726 = vmatpush1.msra.mxu0 %v4645
        %4727 = vmatprep.subr.mxu0 0.0
        %4728 = vmatpush1.msra.mxu0 %v4646
        %4729 = vmatprep.subr.mxu0 0.0
        %4730 = vmatpush1.msra.mxu0 %v4647
        %4731 = vmatprep.subr.mxu0 0.0
        %4732 = vmatpush1.msra.mxu0 %v4648
        %4733 = vmatprep.subr.mxu0 0.0
        %4734 = vmatpush1.msra.mxu0 %v4649
        %4735 = vmatprep.subr.mxu0 0.0
        %4736 = vmatpush1.msra.mxu0 %v4650
        %4737 = vmatprep.mubr.f32.mxu0 %v4668
        %4738 = vmatmul.mubr.f32.gmra.mrb[0].mxu0 %v4667
        %v4739 = vpop.f32.mrb[0].mxu0
        %v4740 = vadd.f32 0.0, %v4739
        %v4741 = vpop.f32.mrb[0].mxu0
        %4742 = vdwg.mxu0
        %4743 = vmatprep.subr.mxu0 0.0
        %4744 = vmatpush1.msra.mxu0 %v4651
        %4745 = vmatprep.subr.mxu0 0.0
        %4746 = vmatpush1.msra.mxu0 %v4652
        %4747 = vmatprep.subr.mxu0 0.0
        %4748 = vmatpush1.msra.mxu0 %v4653
        %4749 = vmatprep.subr.mxu0 0.0
        %4750 = vmatpush1.msra.mxu0 %v4654
        %4751 = vmatprep.subr.mxu0 0.0
        %4752 = vmatpush1.msra.mxu0 %v4655
        %4753 = vmatprep.subr.mxu0 0.0
        %4754 = vmatpush1.msra.mxu0 %v4656
        %4755 = vmatprep.subr.mxu0 0.0
        %4756 = vmatpush1.msra.mxu0 %v4657
        %4757 = vmatprep.subr.mxu0 0.0
        %4758 = vmatpush1.msra.mxu0 %v4658
        %4759 = vmatprep.subr.mxu0 0.0
        %4760 = vmatpush1.msra.mxu0 %v4659
        %4761 = vmatprep.subr.mxu0 0.0
        %4762 = vmatpush1.msra.mxu0 %v4660
        %4763 = vmatprep.subr.mxu0 0.0
        %4764 = vmatpush1.msra.mxu0 %v4661
        %4765 = vmatprep.subr.mxu0 0.0
        %4766 = vmatpush1.msra.mxu0 %v4662
        %4767 = vmatprep.subr.mxu0 0.0
        %4768 = vmatpush1.msra.mxu0 %v4663
        %4769 = vmatprep.subr.mxu0 0.0
        %4770 = vmatpush1.msra.mxu0 %v4664
        %4771 = vmatprep.subr.mxu0 0.0
        %4772 = vmatpush1.msra.mxu0 %v4665
        %4773 = vmatprep.subr.mxu0 0.0
        %4774 = vmatpush1.msra.mxu0 %v4666
        %4775 = vmatprep.subr.mxu0 0.0
        %4776 = vmatpush1.msra.mxu0 0.0
        %4777 = vmatprep.subr.mxu0 0.0
        %4778 = vmatpush1.msra.mxu0 0.0
        %4779 = vmatprep.subr.mxu0 0.0
        %4780 = vmatpush1.msra.mxu0 0.0
        %4781 = vmatprep.subr.mxu0 0.0
        %4782 = vmatpush1.msra.mxu0 0.0
        %4783 = vmatprep.subr.mxu0 0.0
        %4784 = vmatpush1.msra.mxu0 0.0
        %4785 = vmatprep.subr.mxu0 0.0
        %4786 = vmatpush1.msra.mxu0 0.0
        %4787 = vmatprep.subr.mxu0 0.0
        %4788 = vmatpush1.msra.mxu0 0.0
        %4789 = vmatprep.subr.mxu0 0.0
        %4790 = vmatpush1.msra.mxu0 0.0
        %4791 = vmatprep.subr.mxu0 0.0
        %4792 = vmatpush1.msra.mxu0 0.0
        %4793 = vmatprep.subr.mxu0 0.0
        %4794 = vmatpush1.msra.mxu0 0.0
        %4795 = vmatprep.subr.mxu0 0.0
        %4796 = vmatpush1.msra.mxu0 0.0
        %4797 = vmatprep.subr.mxu0 0.0
        %4798 = vmatpush1.msra.mxu0 0.0
        %4799 = vmatprep.subr.mxu0 0.0
        %4800 = vmatpush1.msra.mxu0 0.0
        %4801 = vmatprep.subr.mxu0 0.0
        %4802 = vmatpush1.msra.mxu0 0.0
        %4803 = vmatprep.subr.mxu0 0.0
        %4804 = vmatpush1.msra.mxu0 0.0
        %4805 = vmatprep.subr.mxu0 0.0
        %4806 = vmatpush1.msra.mxu0 0.0
        %4807 = vmatprep.mubr.f32.mxu0 0.0
        %4808 = vmatmul.mubr.f32.gmra.mrb[0].mxu0 %v4669
        %v4809 = vpop.f32.mrb[0].mxu0
        %v4810 = vadd.f32 %v4740, %v4809
        %v4811 = vpop.f32.mrb[0].mxu0
        %4812 = vdwg.mxu0
        %v4813 = vadd.f32 %v4617, %v4810
        %v4814 = vld [vmem:[%s12] sm:$0x1]
        %v4815 = vadd.f32 %v4813, %v4814
        %v4816 = vmax.f32 %v4815, 0.0
        %v4817 = vld [vmem:[%s13] sm:$0xff]
        %v4818 = vld [vmem:[%s13 + $0x8] sm:$0xff]
        %v4819 = vld [vmem:[%s13 + $0x10] sm:$0xff]
        %v4820 = vld [vmem:[%s13 + $0x18] sm:$0xff]
        %v4821 = vld [vmem:[%s13 + $0x20] sm:$0xff]
        %v4822 = vld [vmem:[%s13 + $0x28] sm:$0xff]
        %v4823 = vld [vmem:[%s13 + $0x30] sm:$0xff]
        %v4824 = vld [vmem:[%s13 + $0x38] sm:$0xff]
        %v4825 = vld [vmem:[%s13 + $0x40] sm:$0xff]
        %v4826 = vld [vmem:[%s13 + $0x48] sm:$0xff]
        %v4827 = vld [vmem:[%s13 + $0x50] sm:$0xff]
        %v4828 = vld [vmem:[%s13 + $0x58] sm:$0xff]
        %v4829 = vld [vmem:[%s13 + $0x60] sm:$0xff]
        %v4830 = vld [vmem:[%s13 + $0x68] sm:$0xff]
        %v4831 = vld [vmem:[%s13 + $0x70] sm:$0xff]
        %v4832 = vld [vmem:[%s13 + $0x78] sm:$0xff]
        %v4833 = vld [vmem:[%s14] sm:$0x1]
        %4834 = vmatprep.subr.mxu0 0.0
        %4835 = vmatpush1.msra.mxu0 %v4817
        %4836 = vmatprep.subr.mxu0 0.0
        %4837 = vmatpush1.msra.mxu0 %v4818
        %4838 = vmatprep.subr.mxu0 0.0
        %4839 = vmatpush1.msra.mxu0 %v4819
        %4840 = vmatprep.subr.mxu0 0.0
        %4841 = vmatpush1.msra.mxu0 %v4820
        %4842 = vmatprep.subr.mxu0 0.0
        %4843 = vmatpush1.msra.mxu0 %v4821
        %4844 = vmatprep.subr.mxu0 0.0
        %4845 = vmatpush1.msra.mxu0 %v4822
        %4846 = vmatprep.subr.mxu0 0.0
        %4847 = vmatpush1.msra.mxu0 %v4823
        %4848 = vmatprep.subr.mxu0 0.0
        %4849 = vmatpush1.msra.mxu0 %v4824
        %4850 = vmatprep.subr.mxu0 0.0
        %4851 = vmatpush1.msra.mxu0 %v4825
        %4852 = vmatprep.subr.mxu0 0.0
        %4853 = vmatpush1.msra.mxu0 %v4826
        %4854 = vmatprep.subr.mxu0 0.0
        %4855 = vmatpush1.msra.mxu0 %v4827
        %4856 = vmatprep.subr.mxu0 0.0
        %4857 = vmatpush1.msra.mxu0 %v4828
        %4858 = vmatprep.subr.mxu0 0.0
        %4859 = vmatpush1.msra.mxu0 %v4829
        %4860 = vmatprep.subr.mxu0 0.0
        %4861 = vmatpush1.msra.mxu0 %v4830
        %4862 = vmatprep.subr.mxu0 0.0
        %4863 = vmatpush1.msra.mxu0 %v4831
        %4864 = vmatprep.subr.mxu0 0.0
        %4865 = vmatpush1.msra.mxu0 %v4832
        %4866 = vmatprep.subr.mxu0 0.0
        %4867 = vmatpush1.msra.mxu0 0.0
        %4868 = vmatprep.subr.mxu0 0.0
        %4869 = vmatpush1.msra.mxu0 0.0
        %4870 = vmatprep.subr.mxu0 0.0
        %4871 = vmatpush1.msra.mxu0 0.0
        %4872 = vmatprep.subr.mxu0 0.0
        %4873 = vmatpush1.msra.mxu0 0.0
        %4874 = vmatprep.subr.mxu0 0.0
        %4875 = vmatpush1.msra.mxu0 0.0
        %4876 = vmatprep.subr.mxu0 0.0
        %4877 = vmatpush1.msra.mxu0 0.0
        %4878 = vmatprep.subr.mxu0 0.0
        %4879 = vmatpush1.msra.mxu0 0.0
        %4880 = vmatprep.subr.mxu0 0.0
        %4881 = vmatpush1.msra.mxu0 0.0
        %4882 = vmatprep.subr.mxu0 0.0
        %4883 = vmatpush1.msra.mxu0 0.0
        %4884 = vmatprep.subr.mxu0 0.0
        %4885 = vmatpush1.msra.mxu0 0.0
        %4886 = vmatprep.subr.mxu0 0.0
        %4887 = vmatpush1.msra.mxu0 0.0
        %4888 = vmatprep.subr.mxu0 0.0
        %4889 = vmatpush1.msra.mxu0 0.0
        %4890 = vmatprep.subr.mxu0 0.0
        %4891 = vmatpush1.msra.mxu0 0.0
        %4892 = vmatprep.subr.mxu0 0.0
        %4893 = vmatpush1.msra.mxu0 0.0
        %4894 = vmatprep.subr.mxu0 0.0
        %4895 = vmatpush1.msra.mxu0 0.0
        %4896 = vmatprep.subr.mxu0 0.0
        %4897 = vmatpush1.msra.mxu0 0.0
        %4898 = vmatprep.mubr.f32.mxu0 0.0
        %4899 = vmatmul.mubr.f32.gmra.mrb[0].mxu0 %v4816
        %v4900 = vpop.f32.mrb[0].mxu0
        %v4901 = vadd.f32 %v4833, %v4900
        %v4902 = vpop.f32.mrb[0].mxu0
        %4903 = vdwg.mxu0
        %4904 = vst [vmem:[%s486] sm:$0x1] %v4901
        %s4905 = sand.u32 %s357, 1
        %s4906 = scalar_lea.sflag [#allocation3], %s4905
        %s4907 = sand.u32 %s357, 1
        %s4908 = scalar_lea.vmem [#allocation2], %s4907
        // Predicated region
        $region81: #{forward.1} parent=79 // pred_check
          %p4909 = pneg %p367
        $region82: #{forward.1} parent=79 // pred_check_branch
          %4911 = sbr.rel (%p4909) target = $region84
        $region83: #{forward.1} parent=79 // pred_region
          %s4913 = ssub.s32 16, 16
          %4914 = vsyncadd %s4906, %s4913
          %s4915 = smul.addr %s29, 16
          %s4916 = scalar_lea.hbm %s15, %s4915
          %s4918 = sshll.u32 %s4908, 4
          %s4919 = int_to_ptr.vmem [resolvable:$true] %s4918
          %4921 = dma.vmem_to_hbm [thread:$0]  %s4919, 16, %s4916, %s4906
        $region84: #{forward.1} parent=79 // pred_fallthru
          _
      $region80: #{forward.1} parent=5 // pred_fallthru
        _
      %p4922 = scmp.le.s32.totalorder 2, %s24
      // Predicated region
      $region85: #{forward.1} parent=5 // pred_check
        %p4923 = pneg %p4922
      $region86: #{forward.1} parent=5 // pred_check_branch
        %4925 = sbr.rel (%p4923) target = $region88
      $region87: #{forward.1} parent=5 // pred_region
        %s4926 = ssub.s32 %s24, 2
        // Predicated region
        $region89: #{forward.1} parent=87 // pred_check
          %p4927 = pneg %p373
        $region90: #{forward.1} parent=87 // pred_check_branch
          %4929 = sbr.rel (%p4927) target = $region92
        $region91: #{forward.1} parent=87 // pred_region
          %s4930 = sand.u32 %s358, 1
          %s4931 = scalar_lea.sflag [#allocation3], %s4930
          %s4932 = sand.u32 %s358, 1
          %s4933 = scalar_lea.vmem [#allocation2], %s4932
          %4934 = dma.done %s4931, 16
        $region92: #{forward.1} parent=87 // pred_fallthru
          _
      $region88: #{forward.1} parent=5 // pred_fallthru
        _
    $region6: #{forward.1} parent=1 // loop_footer
      %s28 = sadd.s32 1, %s24
    $region7: #{forward.1} parent=1 // loop_footer_branch
      %23 = sbr.rel target = $region3
    $region8: #{forward.1} parent=1 // loop_exit
      _
    %4935 = vsyncpa [#allocation3], 1
    %s4936 = scalar_lea.sflag [#allocation3], 1
    %4937 = vsyncpa %s4936, 1

</llo_original>
